<compile_context>
chip_gen: v5e
topology: v5e:2x2
jax: 0.10.0
libtpu: 0.0.40
codegen_flags: <defaults>
</compile_context>

<pallas_src>
from functools import partial

import numpy as np
import jax
import jax.numpy as jnp
from jax import lax
from jax.experimental import pallas as pl
from jax.experimental.pallas import tpu as pltpu


# ------------------------------- helpers -------------------------------

def _pick_tile(full, target, grain):
    """Largest tile <= target that divides `full` and is a multiple of `grain`;
    falls back to the full extent (always legal for BlockSpec)."""
    if full <= target:
        return full
    t = (target // grain) * grain
    while t >= grain:
        if full % t == 0:
            return t
        t -= grain
    return full


# Safe on all generations: within the v5e/v6e scoped defaults and half of v7x's
# 64 MiB physical VMEM.  Tiles below (incl. double-buffering) stay well under this.
_VMEM_LIMIT = 32 * 1024 * 1024


# ------------------------- tiled projection matmuls -------------------------

def _matmul_kernel(x_ref, w_ref, o_ref, acc_ref):
    @pl.when(pl.program_id(2) == 0)
    def _():
        acc_ref[...] = jnp.zeros_like(acc_ref)

    acc_ref[...] += jnp.dot(x_ref[...], w_ref[...],
                            preferred_element_type=jnp.float32)

    @pl.when(pl.program_id(2) == pl.num_programs(2) - 1)
    def _():
        o_ref[...] = acc_ref[...].astype(o_ref.dtype)


def _matmul_bias_kernel(x_ref, w_ref, b_ref, o_ref, acc_ref):
    @pl.when(pl.program_id(2) == 0)
    def _():
        acc_ref[...] = jnp.zeros_like(acc_ref)

    acc_ref[...] += jnp.dot(x_ref[...], w_ref[...],
                            preferred_element_type=jnp.float32)

    @pl.when(pl.program_id(2) == pl.num_programs(2) - 1)
    def _():
        # bias added exactly once, in the finalize step (not per-K-step)
        o_ref[...] = (acc_ref[...] + b_ref[...].astype(jnp.float32)).astype(o_ref.dtype)


def pallas_matmul(x, w, bias=None, *, tm=512, tn=512, tk=512):
    """y = x @ w (+ bias); tiled (M//tm, N//tn, K//tk) grid with f32 accumulator.

    tm=512 default halves weight re-streaming vs tm=256 when M=b*n is large;
    tn>=256 keeps the v6e/v7x MXU output dimension full.
    """
    M, K = x.shape
    Kw, N = w.shape
    assert K == Kw
    tm = _pick_tile(M, tm, 8)
    tn = _pick_tile(N, tn, 128)
    tk = _pick_tile(K, tk, 128)
    grid = (M // tm, N // tn, K // tk)

    in_specs = [
        pl.BlockSpec((tm, tk), lambda i, j, k: (i, k)),
        pl.BlockSpec((tk, tn), lambda i, j, k: (k, j)),
    ]
    operands = [x, w]
    kernel = _matmul_kernel
    if bias is not None:
        in_specs.append(pl.BlockSpec((1, tn), lambda i, j, k: (0, j)))
        operands.append(bias.reshape(1, N))
        kernel = _matmul_bias_kernel

    return pl.pallas_call(
        kernel,
        out_shape=jax.ShapeDtypeStruct((M, N), x.dtype),
        grid=grid,
        in_specs=in_specs,
        out_specs=pl.BlockSpec((tm, tn), lambda i, j, k: (i, j)),
        scratch_shapes=[pltpu.VMEM((tm, tn), jnp.float32)],
        compiler_params=pltpu.CompilerParams(
            dimension_semantics=("parallel", "parallel", "arbitrary"),
            vmem_limit_bytes=_VMEM_LIMIT,
        ),
    )(*operands)


# --------------------------- flash attention core ---------------------------

def _flash_attn_kernel(q_ref, k_ref, v_ref, o_ref, acc_ref, m_ref, l_ref,
                       *, heads, dim_head):
    # q_ref: (1, tq, inner)   k_ref/v_ref: (1, tkv, inner)   o_ref: (1, tq, inner)
    # acc_ref: (heads, tq, dim_head) f32   m_ref/l_ref: (heads, tq, 1) f32
    # Head-major scratch keeps every kv-step update lane-aligned (head starts at
    # lane 0); the lane-offset interleave into lane-dense o_ref happens only once
    # per q tile, in the finalize.
    kv_idx = pl.program_id(2)

    @pl.when(kv_idx == 0)
    def _():
        acc_ref[...] = jnp.zeros_like(acc_ref)
        m_ref[...] = jnp.full_like(m_ref, -jnp.inf)
        l_ref[...] = jnp.zeros_like(l_ref)

    # All heads processed per grid step (static unrolled loop).
    for h in range(heads):
        lo = h * dim_head
        hi = lo + dim_head

        # softmax scale is already folded into the q columns of W_qkv upstream
        qh = q_ref[0, :, lo:hi]                              # (tq, d), input dtype
        kh = k_ref[0, :, lo:hi]                              # (tkv, d)
        vh = v_ref[0, :, lo:hi]                              # (tkv, d)

        # contract over the last dim of both operands -> no k.T transpose, MXU direct
        s = lax.dot_general(qh, kh, (((1,), (1,)), ((), ())),
                            preferred_element_type=jnp.float32)   # (tq, tkv) f32

        m_prev = m_ref[h]                                         # (tq, 1)
        m_new = jnp.maximum(m_prev, jnp.max(s, axis=-1, keepdims=True))
        alpha = jnp.exp(m_prev - m_new)                           # (tq, 1)
        p = jnp.exp(s - m_new)                                    # (tq, tkv)

        l_ref[h] = alpha * l_ref[h] + jnp.sum(p, axis=-1, keepdims=True)
        acc_ref[h] = alpha * acc_ref[h] + lax.dot_general(
            p.astype(vh.dtype), vh, (((1,), (0,)), ((), ())),
            preferred_element_type=jnp.float32)
        m_ref[h] = m_new

    @pl.when(kv_idx == pl.num_programs(2) - 1)
    def _():
        # Exact normalization (once per q tile, so exactness is free) and single
        # interleave into the lane-dense 'b n (h d)' output slab.
        for h in range(heads):
            lo = h * dim_head
            o_ref[0, :, lo:lo + dim_head] = (acc_ref[h] / l_ref[h]).astype(o_ref.dtype)


def pallas_flash_attention(qkv, *, heads, dim_head, tq=256, tkv=256):
    """qkv: (b, n, 3*inner) packed projection -> attention output (b, n, inner),
    already in 'b n (h d)' layout (lane-dense, heads merged inside the kernel).

    tq=256 halves K/V re-streaming vs tq=128 (memory-bound core); tkv=256 fills the
    2x256^2 MXU on v6e/v7x.  On v5e (4x128^2 MXU, lowest HBM BW) tkv=128 is a better
    choice; if the trace shows exposed K/V DMA there, add pipeline_mode=pl.Buffered(3)
    to k_spec/v_spec.
    """
    b, n, three_inner = qkv.shape
    inner = heads * dim_head
    assert three_inner == 3 * inner

    tq = _pick_tile(n, tq, 8)
    tkv = _pick_tile(n, tkv, 8)
    grid = (b, n // tq, n // tkv)

    # The last dim of qkv is blocked at granularity `inner`; block index 0/1/2
    # selects the q / k / v column group directly (no wrapper slicing/transposes).
    q_spec = pl.BlockSpec((1, tq, inner), lambda bi, qi, ki: (bi, qi, 0))
    k_spec = pl.BlockSpec((1, tkv, inner), lambda bi, qi, ki: (bi, ki, 1))
    v_spec = pl.BlockSpec((1, tkv, inner), lambda bi, qi, ki: (bi, ki, 2))
    o_spec = pl.BlockSpec((1, tq, inner), lambda bi, qi, ki: (bi, qi, 0))

    kernel = partial(_flash_attn_kernel, heads=heads, dim_head=dim_head)
    return pl.pallas_call(
        kernel,
        out_shape=jax.ShapeDtypeStruct((b, n, inner), qkv.dtype),
        grid=grid,
        in_specs=[q_spec, k_spec, v_spec],
        out_specs=o_spec,
        scratch_shapes=[
            pltpu.VMEM((heads, tq, dim_head), jnp.float32),  # per-head output acc
            pltpu.VMEM((heads, tq, 1), jnp.float32),         # running max per head
            pltpu.VMEM((heads, tq, 1), jnp.float32),         # running sum per head
        ],
        compiler_params=pltpu.CompilerParams(
            dimension_semantics=("parallel", "parallel", "arbitrary"),
            vmem_limit_bytes=_VMEM_LIMIT,
        ),
    )(qkv, qkv, qkv)


# ------------------------------ full forward ------------------------------

def attention_forward(x, params, *, heads, dim_head, compute_dtype=None):
    """x: (b, n, dim) -> (b, n, dim).

    compute_dtype=jnp.bfloat16 halves HBM/VMEM bytes of the memory-bound flash core
    and unlocks full MXU rate on v6e/v7x; softmax state and all accumulation stay f32.
    Default (None) computes in the input dtype.
    """
    b, n, dim = x.shape
    inner = heads * dim_head
    scale = dim ** (-0.5)  # matches the module: dim ** -0.5 (NOT dim_head)
    out_dtype = x.dtype
    cd = compute_dtype if compute_dtype is not None else x.dtype

    # Fold the softmax scale into the q columns of W_qkv (one-time, tiny elementwise
    # op fused by XLA) so the kernel never multiplies q by scale per kv step.
    wq_dtype = params["w_qkv"].dtype
    col_scale = jnp.concatenate([
        jnp.full((inner,), scale, dtype=wq_dtype),
        jnp.ones((2 * inner,), dtype=wq_dtype),
    ])
    w_qkv = (params["w_qkv"] * col_scale[None, :]).astype(cd)
    w_out = params["w_out"].astype(cd)
    b_out = params["b_out"]
    xc = x.astype(cd)

    # qkv projection (Linear, no bias) — tiled matmul
    qkv = pallas_matmul(xc.reshape(b * n, dim), w_qkv)               # (b*n, 3*inner)
    qkv = qkv.reshape(b, n, 3 * inner)                               # free reshape

    # flash attention; head split/merge handled by BlockSpecs + in-kernel slicing,
    # output comes out already in 'b n (h d)' layout (lane-dense)
    out = pallas_flash_attention(qkv, heads=heads, dim_head=dim_head)

    # output projection (Linear + bias); Dropout(p=0.0) is identity
    y = pallas_matmul(out.reshape(b * n, inner), w_out, b_out)
    return y.reshape(b, n, dim).astype(out_dtype)


# --------------------- reference (numpy, float64 ground truth) ---------------------

def attention_reference_np(x, params, *, heads, dim_head):
    x = np.asarray(x, dtype=np.float64)
    w_qkv = np.asarray(params["w_qkv"], dtype=np.float64)
    w_out = np.asarray(params["w_out"], dtype=np.float64)
    b_out = np.asarray(params["b_out"], dtype=np.float64)
    b, n, dim = x.shape
    inner = heads * dim_head
    scale = dim ** (-0.5)

    qkv = x @ w_qkv
    q, k, v = np.split(qkv, 3, axis=-1)

    def split_heads(t):
        return t.reshape(b, n, heads, dim_head).transpose(0, 2, 1, 3)

    q, k, v = map(split_heads, (q, k, v))
    dots = np.einsum("bhid,bhjd->bhij", q, k) * scale
    dots = dots - dots.max(axis=-1, keepdims=True)
    attn = np.exp(dots)
    attn = attn / attn.sum(axis=-1, keepdims=True)
    out = np.einsum("bhij,bhjd->bhid", attn, v)
    out = out.transpose(0, 2, 1, 3).reshape(b, n, inner)
    return out @ w_out + b_out


# ---------------------------------- main ----------------------------------

if __name__ == "__main__":
    # small shapes consistent with the module defaults
    b, n, dim = 2, 8, 32
    heads, dim_head = 8, 64
    inner = heads * dim_head

    key = jax.random.PRNGKey(0)
    kx, k1, k2, k3 = jax.random.split(key, 4)

    x = jax.random.normal(kx, (b, n, dim), dtype=jnp.float32)

    # deterministic parameter init (PyTorch Linear: y = x @ W^T; we store W^T directly)
    params = {
        "w_qkv": jax.random.normal(k1, (dim, inner * 3), dtype=jnp.float32) * (dim ** -0.5),
        "w_out": jax.random.normal(k2, (inner, dim), dtype=jnp.float32) * (inner ** -0.5),
        "b_out": jax.random.normal(k3, (dim,), dtype=jnp.float32) * 0.01,
    }

    fwd = jax.jit(partial(attention_forward, heads=heads, dim_head=dim_head))
    y = jax.block_until_ready(fwd(x, params))

    y_ref = attention_reference_np(x, params, heads=heads, dim_head=dim_head)
    assert y.shape == (b, n, dim)
    # float64 numpy ground truth; tolerance covers MXU pass-rounding of f32 operands
    # (normalization is now exact, no approx reciprocal).
    assert np.allclose(np.asarray(y, dtype=np.float64), y_ref, atol=2e-2, rtol=2e-2), \
        "mismatch vs reference"

    print("KERNEL_OK")
</pallas_src>

<mosaic_0001>
module attributes {stable_mosaic.version = 11 : i64} {
  func.func @_matmul_kernel(%arg0: i32, %arg1: i32, %arg2: i32, %arg3: memref<16x32xf32, #tpu.memory_space<vmem>>, %arg4: memref<32x512xf32, #tpu.memory_space<vmem>>, %arg5: memref<16x512xf32, #tpu.memory_space<vmem>>, %arg6: memref<16x512xf32, #tpu.memory_space<vmem>>) attributes {dimension_semantics = [#tpu.dimension_semantics<parallel>, #tpu.dimension_semantics<parallel>, #tpu.dimension_semantics<arbitrary>], iteration_bounds = array<i64: 1, 3, 1>, scalar_prefetch = 0 : i64, scratch_operands = 1 : i64, tpu.core_type = #tpu.core_type<tc>, window_params = [{transform_indices = @transform_0, window_bounds = array<i64: 16, 32>}, {transform_indices = @transform_1, window_bounds = array<i64: 32, 512>}, {transform_indices = @transform_2, window_bounds = array<i64: 16, 512>}]} {
    %c0_i32 = arith.constant 0 : i32
    %0 = arith.cmpi eq, %arg2, %c0_i32 : i32
    %1 = arith.extui %0 : i1 to i32
    %c0_i32_0 = arith.constant 0 : i32
    %2 = arith.cmpi ne, %1, %c0_i32_0 : i32
    scf.if %2 {
      %cst_10 = arith.constant 0.000000e+00 : f32
      %12 = vector.broadcast %cst_10 : f32 to vector<16x512xf32>
      %c0_11 = arith.constant 0 : index
      %c0_12 = arith.constant 0 : index
      %13 = vector.load %arg6[%c0_11, %c0_12] : memref<16x512xf32, #tpu.memory_space<vmem>>, vector<16x512xf32>
      tpu.vector_store %arg6[%c0_11, %c0_12], %12 {strides = array<i32>} : memref<16x512xf32, #tpu.memory_space<vmem>>, vector<16x512xf32>,
    } else {
    }
    %c0 = arith.constant 0 : index
    %c0_1 = arith.constant 0 : index
    %3 = vector.load %arg6[%c0, %c0_1] : memref<16x512xf32, #tpu.memory_space<vmem>>, vector<16x512xf32>
    %c0_2 = arith.constant 0 : index
    %c0_3 = arith.constant 0 : index
    %4 = vector.load %arg3[%c0_2, %c0_3] : memref<16x32xf32, #tpu.memory_space<vmem>>, vector<16x32xf32>
    %c0_4 = arith.constant 0 : index
    %c0_5 = arith.constant 0 : index
    %5 = vector.load %arg4[%c0_4, %c0_5] : memref<32x512xf32, #tpu.memory_space<vmem>>, vector<32x512xf32>
    %cst = arith.constant dense<0.000000e+00> : vector<16x512xf32>
    %6 = tpu.matmul %4, %5, %cst {dimension_numbers = #tpu.dot_dimension_numbers<[1], [0], [0], [1], [0, 0, 1, 1], [], []>} : vector<16x32xf32>, vector<32x512xf32>, vector<16x512xf32> -> vector<16x512xf32>
    %7 = arith.addf %3, %6 : vector<16x512xf32>
    %c0_6 = arith.constant 0 : index
    %c0_7 = arith.constant 0 : index
    %8 = vector.load %arg6[%c0_6, %c0_7] : memref<16x512xf32, #tpu.memory_space<vmem>>, vector<16x512xf32>
    tpu.vector_store %arg6[%c0_6, %c0_7], %7 {strides = array<i32>} : memref<16x512xf32, #tpu.memory_space<vmem>>, vector<16x512xf32>,
    %c0_i32_8 = arith.constant 0 : i32
    %9 = arith.cmpi eq, %arg2, %c0_i32_8 : i32
    %10 = arith.extui %9 : i1 to i32
    %c0_i32_9 = arith.constant 0 : i32
    %11 = arith.cmpi ne, %10, %c0_i32_9 : i32
    scf.if %11 {
      %c0_10 = arith.constant 0 : index
      %c0_11 = arith.constant 0 : index
      %12 = vector.load %arg6[%c0_10, %c0_11] : memref<16x512xf32, #tpu.memory_space<vmem>>, vector<16x512xf32>
      %c0_12 = arith.constant 0 : index
      %c0_13 = arith.constant 0 : index
      %13 = vector.load %arg5[%c0_12, %c0_13] : memref<16x512xf32, #tpu.memory_space<vmem>>, vector<16x512xf32>
      tpu.vector_store %arg5[%c0_12, %c0_13], %12 {strides = array<i32>} : memref<16x512xf32, #tpu.memory_space<vmem>>, vector<16x512xf32>,
    } else {
    }
    return
  }
  func.func @transform_0(%arg0: i32, %arg1: i32, %arg2: i32) -> (i32, i32) {
    %c0_i32 = arith.constant 0 : i32
    return %arg0, %arg2 : i32, i32
  }
  func.func @transform_1(%arg0: i32, %arg1: i32, %arg2: i32) -> (i32, i32) {
    %c0_i32 = arith.constant 0 : i32
    return %arg2, %arg1 : i32, i32
  }
  func.func @transform_2(%arg0: i32, %arg1: i32, %arg2: i32) -> (i32, i32) {
    %c0_i32 = arith.constant 0 : i32
    return %arg0, %arg1 : i32, i32
  }
}

module attributes {stable_mosaic.version = 11 : i64} {
  func.func @_flash_attn_kernel(%arg0: i32, %arg1: i32, %arg2: i32, %arg3: memref<1x8x512xf32, #tpu.memory_space<vmem>>, %arg4: memref<1x8x512xf32, #tpu.memory_space<vmem>>, %arg5: memref<1x8x512xf32, #tpu.memory_space<vmem>>, %arg6: memref<1x8x512xf32, #tpu.memory_space<vmem>>, %arg7: memref<8x8x64xf32, #tpu.memory_space<vmem>>, %arg8: memref<8x8x1xf32, #tpu.memory_space<vmem>>, %arg9: memref<8x8x1xf32, #tpu.memory_space<vmem>>) attributes {dimension_semantics = [#tpu.dimension_semantics<parallel>, #tpu.dimension_semantics<parallel>, #tpu.dimension_semantics<arbitrary>], iteration_bounds = array<i64: 2, 1, 1>, scalar_prefetch = 0 : i64, scratch_operands = 3 : i64, tpu.core_type = #tpu.core_type<tc>, window_params = [{transform_indices = @transform_0, window_bounds = array<i64: 1, 8, 512>}, {transform_indices = @transform_1, window_bounds = array<i64: 1, 8, 512>}, {transform_indices = @transform_2, window_bounds = array<i64: 1, 8, 512>}, {transform_indices = @transform_3, window_bounds = array<i64: 1, 8, 512>}]} {
    %c0_i32 = arith.constant 0 : i32
    %0 = arith.cmpi eq, %arg2, %c0_i32 : i32
    %1 = arith.extui %0 : i1 to i32
    %c0_i32_0 = arith.constant 0 : i32
    %2 = arith.cmpi ne, %1, %c0_i32_0 : i32
    scf.if %2 {
      %cst_235 = arith.constant 0.000000e+00 : f32
      %310 = vector.broadcast %cst_235 : f32 to vector<8x8x64xf32>
      %c0_236 = arith.constant 0 : index
      %c0_237 = arith.constant 0 : index
      %c0_238 = arith.constant 0 : index
      %311 = vector.load %arg7[%c0_236, %c0_237, %c0_238] : memref<8x8x64xf32, #tpu.memory_space<vmem>>, vector<8x8x64xf32>
      tpu.vector_store %arg7[%c0_236, %c0_237, %c0_238], %310 {strides = array<i32>} : memref<8x8x64xf32, #tpu.memory_space<vmem>>, vector<8x8x64xf32>,
      %cst_239 = arith.constant 0xFF800000 : f32
      %312 = vector.broadcast %cst_239 : f32 to vector<8x8x1xf32>
      %c0_240 = arith.constant 0 : index
      %c0_241 = arith.constant 0 : index
      %c0_242 = arith.constant 0 : index
      %313 = vector.load %arg8[%c0_240, %c0_241, %c0_242] : memref<8x8x1xf32, #tpu.memory_space<vmem>>, vector<8x8x1xf32>
      tpu.vector_store %arg8[%c0_240, %c0_241, %c0_242], %312 {strides = array<i32>} : memref<8x8x1xf32, #tpu.memory_space<vmem>>, vector<8x8x1xf32>,
      %cst_243 = arith.constant 0.000000e+00 : f32
      %314 = vector.broadcast %cst_243 : f32 to vector<8x8x1xf32>
      %c0_244 = arith.constant 0 : index
      %c0_245 = arith.constant 0 : index
      %c0_246 = arith.constant 0 : index
      %315 = vector.load %arg9[%c0_244, %c0_245, %c0_246] : memref<8x8x1xf32, #tpu.memory_space<vmem>>, vector<8x8x1xf32>
      tpu.vector_store %arg9[%c0_244, %c0_245, %c0_246], %314 {strides = array<i32>} : memref<8x8x1xf32, #tpu.memory_space<vmem>>, vector<8x8x1xf32>,
    } else {
    }
    %c0 = arith.constant 0 : index
    %c0_1 = arith.constant 0 : index
    %c0_2 = arith.constant 0 : index
    %3 = vector.load %arg3[%c0, %c0_1, %c0_2] : memref<1x8x512xf32, #tpu.memory_space<vmem>>, vector<1x8x64xf32>
    %4 = vector.shape_cast %3 : vector<1x8x64xf32> to vector<8x64xf32>
    %c0_3 = arith.constant 0 : index
    %c0_4 = arith.constant 0 : index
    %c0_5 = arith.constant 0 : index
    %5 = vector.load %arg4[%c0_3, %c0_4, %c0_5] : memref<1x8x512xf32, #tpu.memory_space<vmem>>, vector<1x8x64xf32>
    %6 = vector.shape_cast %5 : vector<1x8x64xf32> to vector<8x64xf32>
    %c0_6 = arith.constant 0 : index
    %c0_7 = arith.constant 0 : index
    %c0_8 = arith.constant 0 : index
    %7 = vector.load %arg5[%c0_6, %c0_7, %c0_8] : memref<1x8x512xf32, #tpu.memory_space<vmem>>, vector<1x8x64xf32>
    %8 = vector.shape_cast %7 : vector<1x8x64xf32> to vector<8x64xf32>
    %cst = arith.constant dense<0.000000e+00> : vector<8x8xf32>
    %9 = tpu.matmul %4, %6, %cst {dimension_numbers = #tpu.dot_dimension_numbers<[1], [1], [0], [0], [0, 0, 1, 0], [], []>} : vector<8x64xf32>, vector<8x64xf32>, vector<8x8xf32> -> vector<8x8xf32>
    %c0_9 = arith.constant 0 : index
    %c0_10 = arith.constant 0 : index
    %c0_11 = arith.constant 0 : index
    %10 = vector.load %arg8[%c0_9, %c0_10, %c0_11] : memref<8x8x1xf32, #tpu.memory_space<vmem>>, vector<1x8x1xf32>
    %11 = vector.shape_cast %10 : vector<1x8x1xf32> to vector<8x1xf32>
    %cst_12 = arith.constant dense<0xFF800000> : vector<8xf32>
    %12 = vector.multi_reduction <maximumf>, %9, %cst_12 [1] : vector<8x8xf32> to vector<8xf32>
    %13 = vector.shape_cast %12 : vector<8xf32> to vector<8x1xf32>
    %14 = arith.maximumf %11, %13 : vector<8x1xf32>
    %15 = arith.subf %11, %14 : vector<8x1xf32>
    %16 = math.exp %15 : vector<8x1xf32>
    %17 = vector.broadcast %14 : vector<8x1xf32> to vector<8x8xf32>
    %18 = arith.subf %9, %17 : vector<8x8xf32>
    %19 = math.exp %18 : vector<8x8xf32>
    %c0_13 = arith.constant 0 : index
    %c0_14 = arith.constant 0 : index
    %c0_15 = arith.constant 0 : index
    %20 = vector.load %arg9[%c0_13, %c0_14, %c0_15] : memref<8x8x1xf32, #tpu.memory_space<vmem>>, vector<1x8x1xf32>
    %21 = vector.shape_cast %20 : vector<1x8x1xf32> to vector<8x1xf32>
    %22 = arith.mulf %16, %21 : vector<8x1xf32>
    %cst_16 = arith.constant dense<0.000000e+00> : vector<8xf32>
    %23 = vector.multi_reduction <add>, %19, %cst_16 [1] : vector<8x8xf32> to vector<8xf32>
    %24 = vector.shape_cast %23 : vector<8xf32> to vector<8x1xf32>
    %25 = arith.addf %22, %24 : vector<8x1xf32>
    %c0_17 = arith.constant 0 : index
    %c0_18 = arith.constant 0 : index
    %c0_19 = arith.constant 0 : index
    %26 = vector.load %arg9[%c0_17, %c0_18, %c0_19] : memref<8x8x1xf32, #tpu.memory_space<vmem>>, vector<1x8x1xf32>
    %27 = vector.shape_cast %26 : vector<1x8x1xf32> to vector<8x1xf32>
    %28 = vector.shape_cast %25 : vector<8x1xf32> to vector<1x8x1xf32>
    tpu.vector_store %arg9[%c0_17, %c0_18, %c0_19], %28 {strides = array<i32>} : memref<8x8x1xf32, #tpu.memory_space<vmem>>, vector<1x8x1xf32>,
    %c0_20 = arith.constant 0 : index
    %c0_21 = arith.constant 0 : index
    %c0_22 = arith.constant 0 : index
    %29 = vector.load %arg7[%c0_20, %c0_21, %c0_22] : memref<8x8x64xf32, #tpu.memory_space<vmem>>, vector<1x8x64xf32>
    %30 = vector.shape_cast %29 : vector<1x8x64xf32> to vector<8x64xf32>
    %31 = vector.broadcast %16 : vector<8x1xf32> to vector<8x64xf32>
    %32 = arith.mulf %31, %30 : vector<8x64xf32>
    %cst_23 = arith.constant dense<0.000000e+00> : vector<8x64xf32>
    %33 = tpu.matmul %19, %8, %cst_23 {dimension_numbers = #tpu.dot_dimension_numbers<[1], [0], [0], [1], [0, 0, 1, 1], [], []>} : vector<8x8xf32>, vector<8x64xf32>, vector<8x64xf32> -> vector<8x64xf32>
    %34 = arith.addf %32, %33 : vector<8x64xf32>
    %c0_24 = arith.constant 0 : index
    %c0_25 = arith.constant 0 : index
    %c0_26 = arith.constant 0 : index
    %35 = vector.load %arg7[%c0_24, %c0_25, %c0_26] : memref<8x8x64xf32, #tpu.memory_space<vmem>>, vector<1x8x64xf32>
    %36 = vector.shape_cast %35 : vector<1x8x64xf32> to vector<8x64xf32>
    %37 = vector.shape_cast %34 : vector<8x64xf32> to vector<1x8x64xf32>
    tpu.vector_store %arg7[%c0_24, %c0_25, %c0_26], %37 {strides = array<i32>} : memref<8x8x64xf32, #tpu.memory_space<vmem>>, vector<1x8x64xf32>,
    %c0_27 = arith.constant 0 : index
    %c0_28 = arith.constant 0 : index
    %c0_29 = arith.constant 0 : index
    %38 = vector.load %arg8[%c0_27, %c0_28, %c0_29] : memref<8x8x1xf32, #tpu.memory_space<vmem>>, vector<1x8x1xf32>
    %39 = vector.shape_cast %38 : vector<1x8x1xf32> to vector<8x1xf32>
    %40 = vector.shape_cast %14 : vector<8x1xf32> to vector<1x8x1xf32>
    tpu.vector_store %arg8[%c0_27, %c0_28, %c0_29], %40 {strides = array<i32>} : memref<8x8x1xf32, #tpu.memory_space<vmem>>, vector<1x8x1xf32>,
    %c0_30 = arith.constant 0 : index
    %c0_31 = arith.constant 0 : index
    %c64 = arith.constant 64 : index
    %41 = vector.load %arg3[%c0_30, %c0_31, %c64] : memref<1x8x512xf32, #tpu.memory_space<vmem>>, vector<1x8x64xf32>
    %42 = vector.shape_cast %41 : vector<1x8x64xf32> to vector<8x64xf32>
    %c0_32 = arith.constant 0 : index
    %c0_33 = arith.constant 0 : index
    %c64_34 = arith.constant 64 : index
    %43 = vector.load %arg4[%c0_32, %c0_33, %c64_34] : memref<1x8x512xf32, #tpu.memory_space<vmem>>, vector<1x8x64xf32>
    %44 = vector.shape_cast %43 : vector<1x8x64xf32> to vector<8x64xf32>
    %c0_35 = arith.constant 0 : index
    %c0_36 = arith.constant 0 : index
    %c64_37 = arith.constant 64 : index
    %45 = vector.load %arg5[%c0_35, %c0_36, %c64_37] : memref<1x8x512xf32, #tpu.memory_space<vmem>>, vector<1x8x64xf32>
    %46 = vector.shape_cast %45 : vector<1x8x64xf32> to vector<8x64xf32>
    %cst_38 = arith.constant dense<0.000000e+00> : vector<8x8xf32>
    %47 = tpu.matmul %42, %44, %cst_38 {dimension_numbers = #tpu.dot_dimension_numbers<[1], [1], [0], [0], [0, 0, 1, 0], [], []>} : vector<8x64xf32>, vector<8x64xf32>, vector<8x8xf32> -> vector<8x8xf32>
    %c1 = arith.constant 1 : index
    %c0_39 = arith.constant 0 : index
    %c0_40 = arith.constant 0 : index
    %48 = vector.load %arg8[%c1, %c0_39, %c0_40] : memref<8x8x1xf32, #tpu.memory_space<vmem>>, vector<1x8x1xf32>
    %49 = vector.shape_cast %48 : vector<1x8x1xf32> to vector<8x1xf32>
    %cst_41 = arith.constant dense<0xFF800000> : vector<8xf32>
    %50 = vector.multi_reduction <maximumf>, %47, %cst_41 [1] : vector<8x8xf32> to vector<8xf32>
    %51 = vector.shape_cast %50 : vector<8xf32> to vector<8x1xf32>
    %52 = arith.maximumf %49, %51 : vector<8x1xf32>
    %53 = arith.subf %49, %52 : vector<8x1xf32>
    %54 = math.exp %53 : vector<8x1xf32>
    %55 = vector.broadcast %52 : vector<8x1xf32> to vector<8x8xf32>
    %56 = arith.subf %47, %55 : vector<8x8xf32>
    %57 = math.exp %56 : vector<8x8xf32>
    %c1_42 = arith.constant 1 : index
    %c0_43 = arith.constant 0 : index
    %c0_44 = arith.constant 0 : index
    %58 = vector.load %arg9[%c1_42, %c0_43, %c0_44] : memref<8x8x1xf32, #tpu.memory_space<vmem>>, vector<1x8x1xf32>
    %59 = vector.shape_cast %58 : vector<1x8x1xf32> to vector<8x1xf32>
    %60 = arith.mulf %54, %59 : vector<8x1xf32>
    %cst_45 = arith.constant dense<0.000000e+00> : vector<8xf32>
    %61 = vector.multi_reduction <add>, %57, %cst_45 [1] : vector<8x8xf32> to vector<8xf32>
    %62 = vector.shape_cast %61 : vector<8xf32> to vector<8x1xf32>
    %63 = arith.addf %60, %62 : vector<8x1xf32>
    %c1_46 = arith.constant 1 : index
    %c0_47 = arith.constant 0 : index
    %c0_48 = arith.constant 0 : index
    %64 = vector.load %arg9[%c1_46, %c0_47, %c0_48] : memref<8x8x1xf32, #tpu.memory_space<vmem>>, vector<1x8x1xf32>
    %65 = vector.shape_cast %64 : vector<1x8x1xf32> to vector<8x1xf32>
    %66 = vector.shape_cast %63 : vector<8x1xf32> to vector<1x8x1xf32>
    tpu.vector_store %arg9[%c1_46, %c0_47, %c0_48], %66 {strides = array<i32>} : memref<8x8x1xf32, #tpu.memory_space<vmem>>, vector<1x8x1xf32>,
    %c1_49 = arith.constant 1 : index
    %c0_50 = arith.constant 0 : index
    %c0_51 = arith.constant 0 : index
    %67 = vector.load %arg7[%c1_49, %c0_50, %c0_51] : memref<8x8x64xf32, #tpu.memory_space<vmem>>, vector<1x8x64xf32>
    %68 = vector.shape_cast %67 : vector<1x8x64xf32> to vector<8x64xf32>
    %69 = vector.broadcast %54 : vector<8x1xf32> to vector<8x64xf32>
    %70 = arith.mulf %69, %68 : vector<8x64xf32>
    %cst_52 = arith.constant dense<0.000000e+00> : vector<8x64xf32>
    %71 = tpu.matmul %57, %46, %cst_52 {dimension_numbers = #tpu.dot_dimension_numbers<[1], [0], [0], [1], [0, 0, 1, 1], [], []>} : vector<8x8xf32>, vector<8x64xf32>, vector<8x64xf32> -> vector<8x64xf32>
    %72 = arith.addf %70, %71 : vector<8x64xf32>
    %c1_53 = arith.constant 1 : index
    %c0_54 = arith.constant 0 : index
    %c0_55 = arith.constant 0 : index
    %73 = vector.load %arg7[%c1_53, %c0_54, %c0_55] : memref<8x8x64xf32, #tpu.memory_space<vmem>>, vector<1x8x64xf32>
    %74 = vector.shape_cast %73 : vector<1x8x64xf32> to vector<8x64xf32>
    %75 = vector.shape_cast %72 : vector<8x64xf32> to vector<1x8x64xf32>
    tpu.vector_store %arg7[%c1_53, %c0_54, %c0_55], %75 {strides = array<i32>} : memref<8x8x64xf32, #tpu.memory_space<vmem>>, vector<1x8x64xf32>,
    %c1_56 = arith.constant 1 : index
    %c0_57 = arith.constant 0 : index
    %c0_58 = arith.constant 0 : index
    %76 = vector.load %arg8[%c1_56, %c0_57, %c0_58] : memref<8x8x1xf32, #tpu.memory_space<vmem>>, vector<1x8x1xf32>
    %77 = vector.shape_cast %76 : vector<1x8x1xf32> to vector<8x1xf32>
    %78 = vector.shape_cast %52 : vector<8x1xf32> to vector<1x8x1xf32>
    tpu.vector_store %arg8[%c1_56, %c0_57, %c0_58], %78 {strides = array<i32>} : memref<8x8x1xf32, #tpu.memory_space<vmem>>, vector<1x8x1xf32>,
    %c0_59 = arith.constant 0 : index
    %c0_60 = arith.constant 0 : index
    %c128 = arith.constant 128 : index
    %79 = vector.load %arg3[%c0_59, %c0_60, %c128] : memref<1x8x512xf32, #tpu.memory_space<vmem>>, vector<1x8x64xf32>
    %80 = vector.shape_cast %79 : vector<1x8x64xf32> to vector<8x64xf32>
    %c0_61 = arith.constant 0 : index
    %c0_62 = arith.constant 0 : index
    %c128_63 = arith.constant 128 : index
    %81 = vector.load %arg4[%c0_61, %c0_62, %c128_63] : memref<1x8x512xf32, #tpu.memory_space<vmem>>, vector<1x8x64xf32>
    %82 = vector.shape_cast %81 : vector<1x8x64xf32> to vector<8x64xf32>
    %c0_64 = arith.constant 0 : index
    %c0_65 = arith.constant 0 : index
    %c128_66 = arith.constant 128 : index
    %83 = vector.load %arg5[%c0_64, %c0_65, %c128_66] : memref<1x8x512xf32, #tpu.memory_space<vmem>>, vector<1x8x64xf32>
    %84 = vector.shape_cast %83 : vector<1x8x64xf32> to vector<8x64xf32>
    %cst_67 = arith.constant dense<0.000000e+00> : vector<8x8xf32>
    %85 = tpu.matmul %80, %82, %cst_67 {dimension_numbers = #tpu.dot_dimension_numbers<[1], [1], [0], [0], [0, 0, 1, 0], [], []>} : vector<8x64xf32>, vector<8x64xf32>, vector<8x8xf32> -> vector<8x8xf32>
    %c2 = arith.constant 2 : index
    %c0_68 = arith.constant 0 : index
    %c0_69 = arith.constant 0 : index
    %86 = vector.load %arg8[%c2, %c0_68, %c0_69] : memref<8x8x1xf32, #tpu.memory_space<vmem>>, vector<1x8x1xf32>
    %87 = vector.shape_cast %86 : vector<1x8x1xf32> to vector<8x1xf32>
    %cst_70 = arith.constant dense<0xFF800000> : vector<8xf32>
    %88 = vector.multi_reduction <maximumf>, %85, %cst_70 [1] : vector<8x8xf32> to vector<8xf32>
    %89 = vector.shape_cast %88 : vector<8xf32> to vector<8x1xf32>
    %90 = arith.maximumf %87, %89 : vector<8x1xf32>
    %91 = arith.subf %87, %90 : vector<8x1xf32>
    %92 = math.exp %91 : vector<8x1xf32>
    %93 = vector.broadcast %90 : vector<8x1xf32> to vector<8x8xf32>
    %94 = arith.subf %85, %93 : vector<8x8xf32>
    %95 = math.exp %94 : vector<8x8xf32>
    %c2_71 = arith.constant 2 : index
    %c0_72 = arith.constant 0 : index
    %c0_73 = arith.constant 0 : index
    %96 = vector.load %arg9[%c2_71, %c0_72, %c0_73] : memref<8x8x1xf32, #tpu.memory_space<vmem>>, vector<1x8x1xf32>
    %97 = vector.shape_cast %96 : vector<1x8x1xf32> to vector<8x1xf32>
    %98 = arith.mulf %92, %97 : vector<8x1xf32>
    %cst_74 = arith.constant dense<0.000000e+00> : vector<8xf32>
    %99 = vector.multi_reduction <add>, %95, %cst_74 [1] : vector<8x8xf32> to vector<8xf32>
    %100 = vector.shape_cast %99 : vector<8xf32> to vector<8x1xf32>
    %101 = arith.addf %98, %100 : vector<8x1xf32>
    %c2_75 = arith.constant 2 : index
    %c0_76 = arith.constant 0 : index
    %c0_77 = arith.constant 0 : index
    %102 = vector.load %arg9[%c2_75, %c0_76, %c0_77] : memref<8x8x1xf32, #tpu.memory_space<vmem>>, vector<1x8x1xf32>
    %103 = vector.shape_cast %102 : vector<1x8x1xf32> to vector<8x1xf32>
    %104 = vector.shape_cast %101 : vector<8x1xf32> to vector<1x8x1xf32>
    tpu.vector_store %arg9[%c2_75, %c0_76, %c0_77], %104 {strides = array<i32>} : memref<8x8x1xf32, #tpu.memory_space<vmem>>, vector<1x8x1xf32>,
    %c2_78 = arith.constant 2 : index
    %c0_79 = arith.constant 0 : index
    %c0_80 = arith.constant 0 : index
    %105 = vector.load %arg7[%c2_78, %c0_79, %c0_80] : memref<8x8x64xf32, #tpu.memory_space<vmem>>, vector<1x8x64xf32>
    %106 = vector.shape_cast %105 : vector<1x8x64xf32> to vector<8x64xf32>
    %107 = vector.broadcast %92 : vector<8x1xf32> to vector<8x64xf32>
    %108 = arith.mulf %107, %106 : vector<8x64xf32>
    %cst_81 = arith.constant dense<0.000000e+00> : vector<8x64xf32>
    %109 = tpu.matmul %95, %84, %cst_81 {dimension_numbers = #tpu.dot_dimension_numbers<[1], [0], [0], [1], [0, 0, 1, 1], [], []>} : vector<8x8xf32>, vector<8x64xf32>, vector<8x64xf32> -> vector<8x64xf32>
    %110 = arith.addf %108, %109 : vector<8x64xf32>
    %c2_82 = arith.constant 2 : index
    %c0_83 = arith.constant 0 : index
    %c0_84 = arith.constant 0 : index
    %111 = vector.load %arg7[%c2_82, %c0_83, %c0_84] : memref<8x8x64xf32, #tpu.memory_space<vmem>>, vector<1x8x64xf32>
    %112 = vector.shape_cast %111 : vector<1x8x64xf32> to vector<8x64xf32>
    %113 = vector.shape_cast %110 : vector<8x64xf32> to vector<1x8x64xf32>
    tpu.vector_store %arg7[%c2_82, %c0_83, %c0_84], %113 {strides = array<i32>} : memref<8x8x64xf32, #tpu.memory_space<vmem>>, vector<1x8x64xf32>,
    %c2_85 = arith.constant 2 : index
    %c0_86 = arith.constant 0 : index
    %c0_87 = arith.constant 0 : index
    %114 = vector.load %arg8[%c2_85, %c0_86, %c0_87] : memref<8x8x1xf32, #tpu.memory_space<vmem>>, vector<1x8x1xf32>
    %115 = vector.shape_cast %114 : vector<1x8x1xf32> to vector<8x1xf32>
    %116 = vector.shape_cast %90 : vector<8x1xf32> to vector<1x8x1xf32>
    tpu.vector_store %arg8[%c2_85, %c0_86, %c0_87], %116 {strides = array<i32>} : memref<8x8x1xf32, #tpu.memory_space<vmem>>, vector<1x8x1xf32>,
    %c0_88 = arith.constant 0 : index
    %c0_89 = arith.constant 0 : index
    %c192 = arith.constant 192 : index
    %117 = vector.load %arg3[%c0_88, %c0_89, %c192] : memref<1x8x512xf32, #tpu.memory_space<vmem>>, vector<1x8x64xf32>
    %118 = vector.shape_cast %117 : vector<1x8x64xf32> to vector<8x64xf32>
    %c0_90 = arith.constant 0 : index
    %c0_91 = arith.constant 0 : index
    %c192_92 = arith.constant 192 : index
    %119 = vector.load %arg4[%c0_90, %c0_91, %c192_92] : memref<1x8x512xf32, #tpu.memory_space<vmem>>, vector<1x8x64xf32>
    %120 = vector.shape_cast %119 : vector<1x8x64xf32> to vector<8x64xf32>
    %c0_93 = arith.constant 0 : index
    %c0_94 = arith.constant 0 : index
    %c192_95 = arith.constant 192 : index
    %121 = vector.load %arg5[%c0_93, %c0_94, %c192_95] : memref<1x8x512xf32, #tpu.memory_space<vmem>>, vector<1x8x64xf32>
    %122 = vector.shape_cast %121 : vector<1x8x64xf32> to vector<8x64xf32>
    %cst_96 = arith.constant dense<0.000000e+00> : vector<8x8xf32>
    %123 = tpu.matmul %118, %120, %cst_96 {dimension_numbers = #tpu.dot_dimension_numbers<[1], [1], [0], [0], [0, 0, 1, 0], [], []>} : vector<8x64xf32>, vector<8x64xf32>, vector<8x8xf32> -> vector<8x8xf32>
    %c3 = arith.constant 3 : index
    %c0_97 = arith.constant 0 : index
    %c0_98 = arith.constant 0 : index
    %124 = vector.load %arg8[%c3, %c0_97, %c0_98] : memref<8x8x1xf32, #tpu.memory_space<vmem>>, vector<1x8x1xf32>
    %125 = vector.shape_cast %124 : vector<1x8x1xf32> to vector<8x1xf32>
    %cst_99 = arith.constant dense<0xFF800000> : vector<8xf32>
    %126 = vector.multi_reduction <maximumf>, %123, %cst_99 [1] : vector<8x8xf32> to vector<8xf32>
    %127 = vector.shape_cast %126 : vector<8xf32> to vector<8x1xf32>
    %128 = arith.maximumf %125, %127 : vector<8x1xf32>
    %129 = arith.subf %125, %128 : vector<8x1xf32>
    %130 = math.exp %129 : vector<8x1xf32>
    %131 = vector.broadcast %128 : vector<8x1xf32> to vector<8x8xf32>
    %132 = arith.subf %123, %131 : vector<8x8xf32>
    %133 = math.exp %132 : vector<8x8xf32>
    %c3_100 = arith.constant 3 : index
    %c0_101 = arith.constant 0 : index
    %c0_102 = arith.constant 0 : index
    %134 = vector.load %arg9[%c3_100, %c0_101, %c0_102] : memref<8x8x1xf32, #tpu.memory_space<vmem>>, vector<1x8x1xf32>
    %135 = vector.shape_cast %134 : vector<1x8x1xf32> to vector<8x1xf32>
    %136 = arith.mulf %130, %135 : vector<8x1xf32>
    %cst_103 = arith.constant dense<0.000000e+00> : vector<8xf32>
    %137 = vector.multi_reduction <add>, %133, %cst_103 [1] : vector<8x8xf32> to vector<8xf32>
    %138 = vector.shape_cast %137 : vector<8xf32> to vector<8x1xf32>
    %139 = arith.addf %136, %138 : vector<8x1xf32>
    %c3_104 = arith.constant 3 : index
    %c0_105 = arith.constant 0 : index
    %c0_106 = arith.constant 0 : index
    %140 = vector.load %arg9[%c3_104, %c0_105, %c0_106] : memref<8x8x1xf32, #tpu.memory_space<vmem>>, vector<1x8x1xf32>
    %141 = vector.shape_cast %140 : vector<1x8x1xf32> to vector<8x1xf32>
    %142 = vector.shape_cast %139 : vector<8x1xf32> to vector<1x8x1xf32>
    tpu.vector_store %arg9[%c3_104, %c0_105, %c0_106], %142 {strides = array<i32>} : memref<8x8x1xf32, #tpu.memory_space<vmem>>, vector<1x8x1xf32>,
    %c3_107 = arith.constant 3 : index
    %c0_108 = arith.constant 0 : index
    %c0_109 = arith.constant 0 : index
    %143 = vector.load %arg7[%c3_107, %c0_108, %c0_109] : memref<8x8x64xf32, #tpu.memory_space<vmem>>, vector<1x8x64xf32>
    %144 = vector.shape_cast %143 : vector<1x8x64xf32> to vector<8x64xf32>
    %145 = vector.broadcast %130 : vector<8x1xf32> to vector<8x64xf32>
    %146 = arith.mulf %145, %144 : vector<8x64xf32>
    %cst_110 = arith.constant dense<0.000000e+00> : vector<8x64xf32>
    %147 = tpu.matmul %133, %122, %cst_110 {dimension_numbers = #tpu.dot_dimension_numbers<[1], [0], [0], [1], [0, 0, 1, 1], [], []>} : vector<8x8xf32>, vector<8x64xf32>, vector<8x64xf32> -> vector<8x64xf32>
    %148 = arith.addf %146, %147 : vector<8x64xf32>
    %c3_111 = arith.constant 3 : index
    %c0_112 = arith.constant 0 : index
    %c0_113 = arith.constant 0 : index
    %149 = vector.load %arg7[%c3_111, %c0_112, %c0_113] : memref<8x8x64xf32, #tpu.memory_space<vmem>>, vector<1x8x64xf32>
    %150 = vector.shape_cast %149 : vector<1x8x64xf32> to vector<8x64xf32>
    %151 = vector.shape_cast %148 : vector<8x64xf32> to vector<1x8x64xf32>
    tpu.vector_store %arg7[%c3_111, %c0_112, %c0_113], %151 {strides = array<i32>} : memref<8x8x64xf32, #tpu.memory_space<vmem>>, vector<1x8x64xf32>,
    %c3_114 = arith.constant 3 : index
    %c0_115 = arith.constant 0 : index
    %c0_116 = arith.constant 0 : index
    %152 = vector.load %arg8[%c3_114, %c0_115, %c0_116] : memref<8x8x1xf32, #tpu.memory_space<vmem>>, vector<1x8x1xf32>
    %153 = vector.shape_cast %152 : vector<1x8x1xf32> to vector<8x1xf32>
    %154 = vector.shape_cast %128 : vector<8x1xf32> to vector<1x8x1xf32>
    tpu.vector_store %arg8[%c3_114, %c0_115, %c0_116], %154 {strides = array<i32>} : memref<8x8x1xf32, #tpu.memory_space<vmem>>, vector<1x8x1xf32>,
    %c0_117 = arith.constant 0 : index
    %c0_118 = arith.constant 0 : index
    %c256 = arith.constant 256 : index
    %155 = vector.load %arg3[%c0_117, %c0_118, %c256] : memref<1x8x512xf32, #tpu.memory_space<vmem>>, vector<1x8x64xf32>
    %156 = vector.shape_cast %155 : vector<1x8x64xf32> to vector<8x64xf32>
    %c0_119 = arith.constant 0 : index
    %c0_120 = arith.constant 0 : index
    %c256_121 = arith.constant 256 : index
    %157 = vector.load %arg4[%c0_119, %c0_120, %c256_121] : memref<1x8x512xf32, #tpu.memory_space<vmem>>, vector<1x8x64xf32>
    %158 = vector.shape_cast %157 : vector<1x8x64xf32> to vector<8x64xf32>
    %c0_122 = arith.constant 0 : index
    %c0_123 = arith.constant 0 : index
    %c256_124 = arith.constant 256 : index
    %159 = vector.load %arg5[%c0_122, %c0_123, %c256_124] : memref<1x8x512xf32, #tpu.memory_space<vmem>>, vector<1x8x64xf32>
    %160 = vector.shape_cast %159 : vector<1x8x64xf32> to vector<8x64xf32>
    %cst_125 = arith.constant dense<0.000000e+00> : vector<8x8xf32>
    %161 = tpu.matmul %156, %158, %cst_125 {dimension_numbers = #tpu.dot_dimension_numbers<[1], [1], [0], [0], [0, 0, 1, 0], [], []>} : vector<8x64xf32>, vector<8x64xf32>, vector<8x8xf32> -> vector<8x8xf32>
    %c4 = arith.constant 4 : index
    %c0_126 = arith.constant 0 : index
    %c0_127 = arith.constant 0 : index
    %162 = vector.load %arg8[%c4, %c0_126, %c0_127] : memref<8x8x1xf32, #tpu.memory_space<vmem>>, vector<1x8x1xf32>
    %163 = vector.shape_cast %162 : vector<1x8x1xf32> to vector<8x1xf32>
    %cst_128 = arith.constant dense<0xFF800000> : vector<8xf32>
    %164 = vector.multi_reduction <maximumf>, %161, %cst_128 [1] : vector<8x8xf32> to vector<8xf32>
    %165 = vector.shape_cast %164 : vector<8xf32> to vector<8x1xf32>
    %166 = arith.maximumf %163, %165 : vector<8x1xf32>
    %167 = arith.subf %163, %166 : vector<8x1xf32>
    %168 = math.exp %167 : vector<8x1xf32>
    %169 = vector.broadcast %166 : vector<8x1xf32> to vector<8x8xf32>
    %170 = arith.subf %161, %169 : vector<8x8xf32>
    %171 = math.exp %170 : vector<8x8xf32>
    %c4_129 = arith.constant 4 : index
    %c0_130 = arith.constant 0 : index
    %c0_131 = arith.constant 0 : index
    %172 = vector.load %arg9[%c4_129, %c0_130, %c0_131] : memref<8x8x1xf32, #tpu.memory_space<vmem>>, vector<1x8x1xf32>
    %173 = vector.shape_cast %172 : vector<1x8x1xf32> to vector<8x1xf32>
    %174 = arith.mulf %168, %173 : vector<8x1xf32>
    %cst_132 = arith.constant dense<0.000000e+00> : vector<8xf32>
    %175 = vector.multi_reduction <add>, %171, %cst_132 [1] : vector<8x8xf32> to vector<8xf32>
    %176 = vector.shape_cast %175 : vector<8xf32> to vector<8x1xf32>
    %177 = arith.addf %174, %176 : vector<8x1xf32>
    %c4_133 = arith.constant 4 : index
    %c0_134 = arith.constant 0 : index
    %c0_135 = arith.constant 0 : index
    %178 = vector.load %arg9[%c4_133, %c0_134, %c0_135] : memref<8x8x1xf32, #tpu.memory_space<vmem>>, vector<1x8x1xf32>
    %179 = vector.shape_cast %178 : vector<1x8x1xf32> to vector<8x1xf32>
    %180 = vector.shape_cast %177 : vector<8x1xf32> to vector<1x8x1xf32>
    tpu.vector_store %arg9[%c4_133, %c0_134, %c0_135], %180 {strides = array<i32>} : memref<8x8x1xf32, #tpu.memory_space<vmem>>, vector<1x8x1xf32>,
    %c4_136 = arith.constant 4 : index
    %c0_137 = arith.constant 0 : index
    %c0_138 = arith.constant 0 : index
    %181 = vector.load %arg7[%c4_136, %c0_137, %c0_138] : memref<8x8x64xf32, #tpu.memory_space<vmem>>, vector<1x8x64xf32>
    %182 = vector.shape_cast %181 : vector<1x8x64xf32> to vector<8x64xf32>
    %183 = vector.broadcast %168 : vector<8x1xf32> to vector<8x64xf32>
    %184 = arith.mulf %183, %182 : vector<8x64xf32>
    %cst_139 = arith.constant dense<0.000000e+00> : vector<8x64xf32>
    %185 = tpu.matmul %171, %160, %cst_139 {dimension_numbers = #tpu.dot_dimension_numbers<[1], [0], [0], [1], [0, 0, 1, 1], [], []>} : vector<8x8xf32>, vector<8x64xf32>, vector<8x64xf32> -> vector<8x64xf32>
    %186 = arith.addf %184, %185 : vector<8x64xf32>
    %c4_140 = arith.constant 4 : index
    %c0_141 = arith.constant 0 : index
    %c0_142 = arith.constant 0 : index
    %187 = vector.load %arg7[%c4_140, %c0_141, %c0_142] : memref<8x8x64xf32, #tpu.memory_space<vmem>>, vector<1x8x64xf32>
    %188 = vector.shape_cast %187 : vector<1x8x64xf32> to vector<8x64xf32>
    %189 = vector.shape_cast %186 : vector<8x64xf32> to vector<1x8x64xf32>
    tpu.vector_store %arg7[%c4_140, %c0_141, %c0_142], %189 {strides = array<i32>} : memref<8x8x64xf32, #tpu.memory_space<vmem>>, vector<1x8x64xf32>,
    %c4_143 = arith.constant 4 : index
    %c0_144 = arith.constant 0 : index
    %c0_145 = arith.constant 0 : index
    %190 = vector.load %arg8[%c4_143, %c0_144, %c0_145] : memref<8x8x1xf32, #tpu.memory_space<vmem>>, vector<1x8x1xf32>
    %191 = vector.shape_cast %190 : vector<1x8x1xf32> to vector<8x1xf32>
    %192 = vector.shape_cast %166 : vector<8x1xf32> to vector<1x8x1xf32>
    tpu.vector_store %arg8[%c4_143, %c0_144, %c0_145], %192 {strides = array<i32>} : memref<8x8x1xf32, #tpu.memory_space<vmem>>, vector<1x8x1xf32>,
    %c0_146 = arith.constant 0 : index
    %c0_147 = arith.constant 0 : index
    %c320 = arith.constant 320 : index
    %193 = vector.load %arg3[%c0_146, %c0_147, %c320] : memref<1x8x512xf32, #tpu.memory_space<vmem>>, vector<1x8x64xf32>
    %194 = vector.shape_cast %193 : vector<1x8x64xf32> to vector<8x64xf32>
    %c0_148 = arith.constant 0 : index
    %c0_149 = arith.constant 0 : index
    %c320_150 = arith.constant 320 : index
    %195 = vector.load %arg4[%c0_148, %c0_149, %c320_150] : memref<1x8x512xf32, #tpu.memory_space<vmem>>, vector<1x8x64xf32>
    %196 = vector.shape_cast %195 : vector<1x8x64xf32> to vector<8x64xf32>
    %c0_151 = arith.constant 0 : index
    %c0_152 = arith.constant 0 : index
    %c320_153 = arith.constant 320 : index
    %197 = vector.load %arg5[%c0_151, %c0_152, %c320_153] : memref<1x8x512xf32, #tpu.memory_space<vmem>>, vector<1x8x64xf32>
    %198 = vector.shape_cast %197 : vector<1x8x64xf32> to vector<8x64xf32>
    %cst_154 = arith.constant dense<0.000000e+00> : vector<8x8xf32>
    %199 = tpu.matmul %194, %196, %cst_154 {dimension_numbers = #tpu.dot_dimension_numbers<[1], [1], [0], [0], [0, 0, 1, 0], [], []>} : vector<8x64xf32>, vector<8x64xf32>, vector<8x8xf32> -> vector<8x8xf32>
    %c5 = arith.constant 5 : index
    %c0_155 = arith.constant 0 : index
    %c0_156 = arith.constant 0 : index
    %200 = vector.load %arg8[%c5, %c0_155, %c0_156] : memref<8x8x1xf32, #tpu.memory_space<vmem>>, vector<1x8x1xf32>
    %201 = vector.shape_cast %200 : vector<1x8x1xf32> to vector<8x1xf32>
    %cst_157 = arith.constant dense<0xFF800000> : vector<8xf32>
    %202 = vector.multi_reduction <maximumf>, %199, %cst_157 [1] : vector<8x8xf32> to vector<8xf32>
    %203 = vector.shape_cast %202 : vector<8xf32> to vector<8x1xf32>
    %204 = arith.maximumf %201, %203 : vector<8x1xf32>
    %205 = arith.subf %201, %204 : vector<8x1xf32>
    %206 = math.exp %205 : vector<8x1xf32>
    %207 = vector.broadcast %204 : vector<8x1xf32> to vector<8x8xf32>
    %208 = arith.subf %199, %207 : vector<8x8xf32>
    %209 = math.exp %208 : vector<8x8xf32>
    %c5_158 = arith.constant 5 : index
    %c0_159 = arith.constant 0 : index
    %c0_160 = arith.constant 0 : index
    %210 = vector.load %arg9[%c5_158, %c0_159, %c0_160] : memref<8x8x1xf32, #tpu.memory_space<vmem>>, vector<1x8x1xf32>
    %211 = vector.shape_cast %210 : vector<1x8x1xf32> to vector<8x1xf32>
    %212 = arith.mulf %206, %211 : vector<8x1xf32>
    %cst_161 = arith.constant dense<0.000000e+00> : vector<8xf32>
    %213 = vector.multi_reduction <add>, %209, %cst_161 [1] : vector<8x8xf32> to vector<8xf32>
    %214 = vector.shape_cast %213 : vector<8xf32> to vector<8x1xf32>
    %215 = arith.addf %212, %214 : vector<8x1xf32>
    %c5_162 = arith.constant 5 : index
    %c0_163 = arith.constant 0 : index
    %c0_164 = arith.constant 0 : index
    %216 = vector.load %arg9[%c5_162, %c0_163, %c0_164] : memref<8x8x1xf32, #tpu.memory_space<vmem>>, vector<1x8x1xf32>
    %217 = vector.shape_cast %216 : vector<1x8x1xf32> to vector<8x1xf32>
    %218 = vector.shape_cast %215 : vector<8x1xf32> to vector<1x8x1xf32>
    tpu.vector_store %arg9[%c5_162, %c0_163, %c0_164], %218 {strides = array<i32>} : memref<8x8x1xf32, #tpu.memory_space<vmem>>, vector<1x8x1xf32>,
    %c5_165 = arith.constant 5 : index
    %c0_166 = arith.constant 0 : index
    %c0_167 = arith.constant 0 : index
    %219 = vector.load %arg7[%c5_165, %c0_166, %c0_167] : memref<8x8x64xf32, #tpu.memory_space<vmem>>, vector<1x8x64xf32>
    %220 = vector.shape_cast %219 : vector<1x8x64xf32> to vector<8x64xf32>
    %221 = vector.broadcast %206 : vector<8x1xf32> to vector<8x64xf32>
    %222 = arith.mulf %221, %220 : vector<8x64xf32>
    %cst_168 = arith.constant dense<0.000000e+00> : vector<8x64xf32>
    %223 = tpu.matmul %209, %198, %cst_168 {dimension_numbers = #tpu.dot_dimension_numbers<[1], [0], [0], [1], [0, 0, 1, 1], [], []>} : vector<8x8xf32>, vector<8x64xf32>, vector<8x64xf32> -> vector<8x64xf32>
    %224 = arith.addf %222, %223 : vector<8x64xf32>
    %c5_169 = arith.constant 5 : index
    %c0_170 = arith.constant 0 : index
    %c0_171 = arith.constant 0 : index
    %225 = vector.load %arg7[%c5_169, %c0_170, %c0_171] : memref<8x8x64xf32, #tpu.memory_space<vmem>>, vector<1x8x64xf32>
    %226 = vector.shape_cast %225 : vector<1x8x64xf32> to vector<8x64xf32>
    %227 = vector.shape_cast %224 : vector<8x64xf32> to vector<1x8x64xf32>
    tpu.vector_store %arg7[%c5_169, %c0_170, %c0_171], %227 {strides = array<i32>} : memref<8x8x64xf32, #tpu.memory_space<vmem>>, vector<1x8x64xf32>,
    %c5_172 = arith.constant 5 : index
    %c0_173 = arith.constant 0 : index
    %c0_174 = arith.constant 0 : index
    %228 = vector.load %arg8[%c5_172, %c0_173, %c0_174] : memref<8x8x1xf32, #tpu.memory_space<vmem>>, vector<1x8x1xf32>
    %229 = vector.shape_cast %228 : vector<1x8x1xf32> to vector<8x1xf32>
    %230 = vector.shape_cast %204 : vector<8x1xf32> to vector<1x8x1xf32>
    tpu.vector_store %arg8[%c5_172, %c0_173, %c0_174], %230 {strides = array<i32>} : memref<8x8x1xf32, #tpu.memory_space<vmem>>, vector<1x8x1xf32>,
    %c0_175 = arith.constant 0 : index
    %c0_176 = arith.constant 0 : index
    %c384 = arith.constant 384 : index
    %231 = vector.load %arg3[%c0_175, %c0_176, %c384] : memref<1x8x512xf32, #tpu.memory_space<vmem>>, vector<1x8x64xf32>
    %232 = vector.shape_cast %231 : vector<1x8x64xf32> to vector<8x64xf32>
    %c0_177 = arith.constant 0 : index
    %c0_178 = arith.constant 0 : index
    %c384_179 = arith.constant 384 : index
    %233 = vector.load %arg4[%c0_177, %c0_178, %c384_179] : memref<1x8x512xf32, #tpu.memory_space<vmem>>, vector<1x8x64xf32>
    %234 = vector.shape_cast %233 : vector<1x8x64xf32> to vector<8x64xf32>
    %c0_180 = arith.constant 0 : index
    %c0_181 = arith.constant 0 : index
    %c384_182 = arith.constant 384 : index
    %235 = vector.load %arg5[%c0_180, %c0_181, %c384_182] : memref<1x8x512xf32, #tpu.memory_space<vmem>>, vector<1x8x64xf32>
    %236 = vector.shape_cast %235 : vector<1x8x64xf32> to vector<8x64xf32>
    %cst_183 = arith.constant dense<0.000000e+00> : vector<8x8xf32>
    %237 = tpu.matmul %232, %234, %cst_183 {dimension_numbers = #tpu.dot_dimension_numbers<[1], [1], [0], [0], [0, 0, 1, 0], [], []>} : vector<8x64xf32>, vector<8x64xf32>, vector<8x8xf32> -> vector<8x8xf32>
    %c6 = arith.constant 6 : index
    %c0_184 = arith.constant 0 : index
    %c0_185 = arith.constant 0 : index
    %238 = vector.load %arg8[%c6, %c0_184, %c0_185] : memref<8x8x1xf32, #tpu.memory_space<vmem>>, vector<1x8x1xf32>
    %239 = vector.shape_cast %238 : vector<1x8x1xf32> to vector<8x1xf32>
    %cst_186 = arith.constant dense<0xFF800000> : vector<8xf32>
    %240 = vector.multi_reduction <maximumf>, %237, %cst_186 [1] : vector<8x8xf32> to vector<8xf32>
    %241 = vector.shape_cast %240 : vector<8xf32> to vector<8x1xf32>
    %242 = arith.maximumf %239, %241 : vector<8x1xf32>
    %243 = arith.subf %239, %242 : vector<8x1xf32>
    %244 = math.exp %243 : vector<8x1xf32>
    %245 = vector.broadcast %242 : vector<8x1xf32> to vector<8x8xf32>
    %246 = arith.subf %237, %245 : vector<8x8xf32>
    %247 = math.exp %246 : vector<8x8xf32>
    %c6_187 = arith.constant 6 : index
    %c0_188 = arith.constant 0 : index
    %c0_189 = arith.constant 0 : index
    %248 = vector.load %arg9[%c6_187, %c0_188, %c0_189] : memref<8x8x1xf32, #tpu.memory_space<vmem>>, vector<1x8x1xf32>
    %249 = vector.shape_cast %248 : vector<1x8x1xf32> to vector<8x1xf32>
    %250 = arith.mulf %244, %249 : vector<8x1xf32>
    %cst_190 = arith.constant dense<0.000000e+00> : vector<8xf32>
    %251 = vector.multi_reduction <add>, %247, %cst_190 [1] : vector<8x8xf32> to vector<8xf32>
    %252 = vector.shape_cast %251 : vector<8xf32> to vector<8x1xf32>
    %253 = arith.addf %250, %252 : vector<8x1xf32>
    %c6_191 = arith.constant 6 : index
    %c0_192 = arith.constant 0 : index
    %c0_193 = arith.constant 0 : index
    %254 = vector.load %arg9[%c6_191, %c0_192, %c0_193] : memref<8x8x1xf32, #tpu.memory_space<vmem>>, vector<1x8x1xf32>
    %255 = vector.shape_cast %254 : vector<1x8x1xf32> to vector<8x1xf32>
    %256 = vector.shape_cast %253 : vector<8x1xf32> to vector<1x8x1xf32>
    tpu.vector_store %arg9[%c6_191, %c0_192, %c0_193], %256 {strides = array<i32>} : memref<8x8x1xf32, #tpu.memory_space<vmem>>, vector<1x8x1xf32>,
    %c6_194 = arith.constant 6 : index
    %c0_195 = arith.constant 0 : index
    %c0_196 = arith.constant 0 : index
    %257 = vector.load %arg7[%c6_194, %c0_195, %c0_196] : memref<8x8x64xf32, #tpu.memory_space<vmem>>, vector<1x8x64xf32>
    %258 = vector.shape_cast %257 : vector<1x8x64xf32> to vector<8x64xf32>
    %259 = vector.broadcast %244 : vector<8x1xf32> to vector<8x64xf32>
    %260 = arith.mulf %259, %258 : vector<8x64xf32>
    %cst_197 = arith.constant dense<0.000000e+00> : vector<8x64xf32>
    %261 = tpu.matmul %247, %236, %cst_197 {dimension_numbers = #tpu.dot_dimension_numbers<[1], [0], [0], [1], [0, 0, 1, 1], [], []>} : vector<8x8xf32>, vector<8x64xf32>, vector<8x64xf32> -> vector<8x64xf32>
    %262 = arith.addf %260, %261 : vector<8x64xf32>
    %c6_198 = arith.constant 6 : index
    %c0_199 = arith.constant 0 : index
    %c0_200 = arith.constant 0 : index
    %263 = vector.load %arg7[%c6_198, %c0_199, %c0_200] : memref<8x8x64xf32, #tpu.memory_space<vmem>>, vector<1x8x64xf32>
    %264 = vector.shape_cast %263 : vector<1x8x64xf32> to vector<8x64xf32>
    %265 = vector.shape_cast %262 : vector<8x64xf32> to vector<1x8x64xf32>
    tpu.vector_store %arg7[%c6_198, %c0_199, %c0_200], %265 {strides = array<i32>} : memref<8x8x64xf32, #tpu.memory_space<vmem>>, vector<1x8x64xf32>,
    %c6_201 = arith.constant 6 : index
    %c0_202 = arith.constant 0 : index
    %c0_203 = arith.constant 0 : index
    %266 = vector.load %arg8[%c6_201, %c0_202, %c0_203] : memref<8x8x1xf32, #tpu.memory_space<vmem>>, vector<1x8x1xf32>
    %267 = vector.shape_cast %266 : vector<1x8x1xf32> to vector<8x1xf32>
    %268 = vector.shape_cast %242 : vector<8x1xf32> to vector<1x8x1xf32>
    tpu.vector_store %arg8[%c6_201, %c0_202, %c0_203], %268 {strides = array<i32>} : memref<8x8x1xf32, #tpu.memory_space<vmem>>, vector<1x8x1xf32>,
    %c0_204 = arith.constant 0 : index
    %c0_205 = arith.constant 0 : index
    %c448 = arith.constant 448 : index
    %269 = vector.load %arg3[%c0_204, %c0_205, %c448] : memref<1x8x512xf32, #tpu.memory_space<vmem>>, vector<1x8x64xf32>
    %270 = vector.shape_cast %269 : vector<1x8x64xf32> to vector<8x64xf32>
    %c0_206 = arith.constant 0 : index
    %c0_207 = arith.constant 0 : index
    %c448_208 = arith.constant 448 : index
    %271 = vector.load %arg4[%c0_206, %c0_207, %c448_208] : memref<1x8x512xf32, #tpu.memory_space<vmem>>, vector<1x8x64xf32>
    %272 = vector.shape_cast %271 : vector<1x8x64xf32> to vector<8x64xf32>
    %c0_209 = arith.constant 0 : index
    %c0_210 = arith.constant 0 : index
    %c448_211 = arith.constant 448 : index
    %273 = vector.load %arg5[%c0_209, %c0_210, %c448_211] : memref<1x8x512xf32, #tpu.memory_space<vmem>>, vector<1x8x64xf32>
    %274 = vector.shape_cast %273 : vector<1x8x64xf32> to vector<8x64xf32>
    %cst_212 = arith.constant dense<0.000000e+00> : vector<8x8xf32>
    %275 = tpu.matmul %270, %272, %cst_212 {dimension_numbers = #tpu.dot_dimension_numbers<[1], [1], [0], [0], [0, 0, 1, 0], [], []>} : vector<8x64xf32>, vector<8x64xf32>, vector<8x8xf32> -> vector<8x8xf32>
    %c7 = arith.constant 7 : index
    %c0_213 = arith.constant 0 : index
    %c0_214 = arith.constant 0 : index
    %276 = vector.load %arg8[%c7, %c0_213, %c0_214] : memref<8x8x1xf32, #tpu.memory_space<vmem>>, vector<1x8x1xf32>
    %277 = vector.shape_cast %276 : vector<1x8x1xf32> to vector<8x1xf32>
    %cst_215 = arith.constant dense<0xFF800000> : vector<8xf32>
    %278 = vector.multi_reduction <maximumf>, %275, %cst_215 [1] : vector<8x8xf32> to vector<8xf32>
    %279 = vector.shape_cast %278 : vector<8xf32> to vector<8x1xf32>
    %280 = arith.maximumf %277, %279 : vector<8x1xf32>
    %281 = arith.subf %277, %280 : vector<8x1xf32>
    %282 = math.exp %281 : vector<8x1xf32>
    %283 = vector.broadcast %280 : vector<8x1xf32> to vector<8x8xf32>
    %284 = arith.subf %275, %283 : vector<8x8xf32>
    %285 = math.exp %284 : vector<8x8xf32>
    %c7_216 = arith.constant 7 : index
    %c0_217 = arith.constant 0 : index
    %c0_218 = arith.constant 0 : index
    %286 = vector.load %arg9[%c7_216, %c0_217, %c0_218] : memref<8x8x1xf32, #tpu.memory_space<vmem>>, vector<1x8x1xf32>
    %287 = vector.shape_cast %286 : vector<1x8x1xf32> to vector<8x1xf32>
    %288 = arith.mulf %282, %287 : vector<8x1xf32>
    %cst_219 = arith.constant dense<0.000000e+00> : vector<8xf32>
    %289 = vector.multi_reduction <add>, %285, %cst_219 [1] : vector<8x8xf32> to vector<8xf32>
    %290 = vector.shape_cast %289 : vector<8xf32> to vector<8x1xf32>
    %291 = arith.addf %288, %290 : vector<8x1xf32>
    %c7_220 = arith.constant 7 : index
    %c0_221 = arith.constant 0 : index
    %c0_222 = arith.constant 0 : index
    %292 = vector.load %arg9[%c7_220, %c0_221, %c0_222] : memref<8x8x1xf32, #tpu.memory_space<vmem>>, vector<1x8x1xf32>
    %293 = vector.shape_cast %292 : vector<1x8x1xf32> to vector<8x1xf32>
    %294 = vector.shape_cast %291 : vector<8x1xf32> to vector<1x8x1xf32>
    tpu.vector_store %arg9[%c7_220, %c0_221, %c0_222], %294 {strides = array<i32>} : memref<8x8x1xf32, #tpu.memory_space<vmem>>, vector<1x8x1xf32>,
    %c7_223 = arith.constant 7 : index
    %c0_224 = arith.constant 0 : index
    %c0_225 = arith.constant 0 : index
    %295 = vector.load %arg7[%c7_223, %c0_224, %c0_225] : memref<8x8x64xf32, #tpu.memory_space<vmem>>, vector<1x8x64xf32>
    %296 = vector.shape_cast %295 : vector<1x8x64xf32> to vector<8x64xf32>
    %297 = vector.broadcast %282 : vector<8x1xf32> to vector<8x64xf32>
    %298 = arith.mulf %297, %296 : vector<8x64xf32>
    %cst_226 = arith.constant dense<0.000000e+00> : vector<8x64xf32>
    %299 = tpu.matmul %285, %274, %cst_226 {dimension_numbers = #tpu.dot_dimension_numbers<[1], [0], [0], [1], [0, 0, 1, 1], [], []>} : vector<8x8xf32>, vector<8x64xf32>, vector<8x64xf32> -> vector<8x64xf32>
    %300 = arith.addf %298, %299 : vector<8x64xf32>
    %c7_227 = arith.constant 7 : index
    %c0_228 = arith.constant 0 : index
    %c0_229 = arith.constant 0 : index
    %301 = vector.load %arg7[%c7_227, %c0_228, %c0_229] : memref<8x8x64xf32, #tpu.memory_space<vmem>>, vector<1x8x64xf32>
    %302 = vector.shape_cast %301 : vector<1x8x64xf32> to vector<8x64xf32>
    %303 = vector.shape_cast %300 : vector<8x64xf32> to vector<1x8x64xf32>
    tpu.vector_store %arg7[%c7_227, %c0_228, %c0_229], %303 {strides = array<i32>} : memref<8x8x64xf32, #tpu.memory_space<vmem>>, vector<1x8x64xf32>,
    %c7_230 = arith.constant 7 : index
    %c0_231 = arith.constant 0 : index
    %c0_232 = arith.constant 0 : index
    %304 = vector.load %arg8[%c7_230, %c0_231, %c0_232] : memref<8x8x1xf32, #tpu.memory_space<vmem>>, vector<1x8x1xf32>
    %305 = vector.shape_cast %304 : vector<1x8x1xf32> to vector<8x1xf32>
    %306 = vector.shape_cast %280 : vector<8x1xf32> to vector<1x8x1xf32>
    tpu.vector_store %arg8[%c7_230, %c0_231, %c0_232], %306 {strides = array<i32>} : memref<8x8x1xf32, #tpu.memory_space<vmem>>, vector<1x8x1xf32>,
    %c0_i32_233 = arith.constant 0 : i32
    %307 = arith.cmpi eq, %arg2, %c0_i32_233 : i32
    %308 = arith.extui %307 : i1 to i32
    %c0_i32_234 = arith.constant 0 : i32
    %309 = arith.cmpi ne, %308, %c0_i32_234 : i32
    scf.if %309 {
      %c0_235 = arith.constant 0 : index
      %c0_236 = arith.constant 0 : index
      %c0_237 = arith.constant 0 : index
      %310 = vector.load %arg7[%c0_235, %c0_236, %c0_237] : memref<8x8x64xf32, #tpu.memory_space<vmem>>, vector<1x8x64xf32>
      %311 = vector.shape_cast %310 : vector<1x8x64xf32> to vector<8x64xf32>
      %c0_238 = arith.constant 0 : index
      %c0_239 = arith.constant 0 : index
      %c0_240 = arith.constant 0 : index
      %312 = vector.load %arg9[%c0_238, %c0_239, %c0_240] : memref<8x8x1xf32, #tpu.memory_space<vmem>>, vector<1x8x1xf32>
      %313 = vector.shape_cast %312 : vector<1x8x1xf32> to vector<8x1xf32>
      %314 = vector.broadcast %313 : vector<8x1xf32> to vector<8x64xf32>
      %315 = arith.divf %311, %314 : vector<8x64xf32>
      %c0_241 = arith.constant 0 : index
      %c0_242 = arith.constant 0 : index
      %c0_243 = arith.constant 0 : index
      %316 = vector.load %arg6[%c0_241, %c0_242, %c0_243] : memref<1x8x512xf32, #tpu.memory_space<vmem>>, vector<1x8x64xf32>
      %317 = vector.shape_cast %316 : vector<1x8x64xf32> to vector<8x64xf32>
      %318 = vector.shape_cast %315 : vector<8x64xf32> to vector<1x8x64xf32>
      tpu.vector_store %arg6[%c0_241, %c0_242, %c0_243], %318 {strides = array<i32>} : memref<1x8x512xf32, #tpu.memory_space<vmem>>, vector<1x8x64xf32>,
      %c1_244 = arith.constant 1 : index
      %c0_245 = arith.constant 0 : index
      %c0_246 = arith.constant 0 : index
      %319 = vector.load %arg7[%c1_244, %c0_245, %c0_246] : memref<8x8x64xf32, #tpu.memory_space<vmem>>, vector<1x8x64xf32>
      %320 = vector.shape_cast %319 : vector<1x8x64xf32> to vector<8x64xf32>
      %c1_247 = arith.constant 1 : index
      %c0_248 = arith.constant 0 : index
      %c0_249 = arith.constant 0 : index
      %321 = vector.load %arg9[%c1_247, %c0_248, %c0_249] : memref<8x8x1xf32, #tpu.memory_space<vmem>>, vector<1x8x1xf32>
      %322 = vector.shape_cast %321 : vector<1x8x1xf32> to vector<8x1xf32>
      %323 = vector.broadcast %322 : vector<8x1xf32> to vector<8x64xf32>
      %324 = arith.divf %320, %323 : vector<8x64xf32>
      %c0_250 = arith.constant 0 : index
      %c0_251 = arith.constant 0 : index
      %c64_252 = arith.constant 64 : index
      %325 = vector.load %arg6[%c0_250, %c0_251, %c64_252] : memref<1x8x512xf32, #tpu.memory_space<vmem>>, vector<1x8x64xf32>
      %326 = vector.shape_cast %325 : vector<1x8x64xf32> to vector<8x64xf32>
      %327 = vector.shape_cast %324 : vector<8x64xf32> to vector<1x8x64xf32>
      tpu.vector_store %arg6[%c0_250, %c0_251, %c64_252], %327 {strides = array<i32>} : memref<1x8x512xf32, #tpu.memory_space<vmem>>, vector<1x8x64xf32>,
      %c2_253 = arith.constant 2 : index
      %c0_254 = arith.constant 0 : index
      %c0_255 = arith.constant 0 : index
      %328 = vector.load %arg7[%c2_253, %c0_254, %c0_255] : memref<8x8x64xf32, #tpu.memory_space<vmem>>, vector<1x8x64xf32>
      %329 = vector.shape_cast %328 : vector<1x8x64xf32> to vector<8x64xf32>
      %c2_256 = arith.constant 2 : index
      %c0_257 = arith.constant 0 : index
      %c0_258 = arith.constant 0 : index
      %330 = vector.load %arg9[%c2_256, %c0_257, %c0_258] : memref<8x8x1xf32, #tpu.memory_space<vmem>>, vector<1x8x1xf32>
      %331 = vector.shape_cast %330 : vector<1x8x1xf32> to vector<8x1xf32>
      %332 = vector.broadcast %331 : vector<8x1xf32> to vector<8x64xf32>
      %333 = arith.divf %329, %332 : vector<8x64xf32>
      %c0_259 = arith.constant 0 : index
      %c0_260 = arith.constant 0 : index
      %c128_261 = arith.constant 128 : index
      %334 = vector.load %arg6[%c0_259, %c0_260, %c128_261] : memref<1x8x512xf32, #tpu.memory_space<vmem>>, vector<1x8x64xf32>
      %335 = vector.shape_cast %334 : vector<1x8x64xf32> to vector<8x64xf32>
      %336 = vector.shape_cast %333 : vector<8x64xf32> to vector<1x8x64xf32>
      tpu.vector_store %arg6[%c0_259, %c0_260, %c128_261], %336 {strides = array<i32>} : memref<1x8x512xf32, #tpu.memory_space<vmem>>, vector<1x8x64xf32>,
      %c3_262 = arith.constant 3 : index
      %c0_263 = arith.constant 0 : index
      %c0_264 = arith.constant 0 : index
      %337 = vector.load %arg7[%c3_262, %c0_263, %c0_264] : memref<8x8x64xf32, #tpu.memory_space<vmem>>, vector<1x8x64xf32>
      %338 = vector.shape_cast %337 : vector<1x8x64xf32> to vector<8x64xf32>
      %c3_265 = arith.constant 3 : index
      %c0_266 = arith.constant 0 : index
      %c0_267 = arith.constant 0 : index
      %339 = vector.load %arg9[%c3_265, %c0_266, %c0_267] : memref<8x8x1xf32, #tpu.memory_space<vmem>>, vector<1x8x1xf32>
      %340 = vector.shape_cast %339 : vector<1x8x1xf32> to vector<8x1xf32>
      %341 = vector.broadcast %340 : vector<8x1xf32> to vector<8x64xf32>
      %342 = arith.divf %338, %341 : vector<8x64xf32>
      %c0_268 = arith.constant 0 : index
      %c0_269 = arith.constant 0 : index
      %c192_270 = arith.constant 192 : index
      %343 = vector.load %arg6[%c0_268, %c0_269, %c192_270] : memref<1x8x512xf32, #tpu.memory_space<vmem>>, vector<1x8x64xf32>
      %344 = vector.shape_cast %343 : vector<1x8x64xf32> to vector<8x64xf32>
      %345 = vector.shape_cast %342 : vector<8x64xf32> to vector<1x8x64xf32>
      tpu.vector_store %arg6[%c0_268, %c0_269, %c192_270], %345 {strides = array<i32>} : memref<1x8x512xf32, #tpu.memory_space<vmem>>, vector<1x8x64xf32>,
      %c4_271 = arith.constant 4 : index
      %c0_272 = arith.constant 0 : index
      %c0_273 = arith.constant 0 : index
      %346 = vector.load %arg7[%c4_271, %c0_272, %c0_273] : memref<8x8x64xf32, #tpu.memory_space<vmem>>, vector<1x8x64xf32>
      %347 = vector.shape_cast %346 : vector<1x8x64xf32> to vector<8x64xf32>
      %c4_274 = arith.constant 4 : index
      %c0_275 = arith.constant 0 : index
      %c0_276 = arith.constant 0 : index
      %348 = vector.load %arg9[%c4_274, %c0_275, %c0_276] : memref<8x8x1xf32, #tpu.memory_space<vmem>>, vector<1x8x1xf32>
      %349 = vector.shape_cast %348 : vector<1x8x1xf32> to vector<8x1xf32>
      %350 = vector.broadcast %349 : vector<8x1xf32> to vector<8x64xf32>
      %351 = arith.divf %347, %350 : vector<8x64xf32>
      %c0_277 = arith.constant 0 : index
      %c0_278 = arith.constant 0 : index
      %c256_279 = arith.constant 256 : index
      %352 = vector.load %arg6[%c0_277, %c0_278, %c256_279] : memref<1x8x512xf32, #tpu.memory_space<vmem>>, vector<1x8x64xf32>
      %353 = vector.shape_cast %352 : vector<1x8x64xf32> to vector<8x64xf32>
      %354 = vector.shape_cast %351 : vector<8x64xf32> to vector<1x8x64xf32>
      tpu.vector_store %arg6[%c0_277, %c0_278, %c256_279], %354 {strides = array<i32>} : memref<1x8x512xf32, #tpu.memory_space<vmem>>, vector<1x8x64xf32>,
      %c5_280 = arith.constant 5 : index
      %c0_281 = arith.constant 0 : index
      %c0_282 = arith.constant 0 : index
      %355 = vector.load %arg7[%c5_280, %c0_281, %c0_282] : memref<8x8x64xf32, #tpu.memory_space<vmem>>, vector<1x8x64xf32>
      %356 = vector.shape_cast %355 : vector<1x8x64xf32> to vector<8x64xf32>
      %c5_283 = arith.constant 5 : index
      %c0_284 = arith.constant 0 : index
      %c0_285 = arith.constant 0 : index
      %357 = vector.load %arg9[%c5_283, %c0_284, %c0_285] : memref<8x8x1xf32, #tpu.memory_space<vmem>>, vector<1x8x1xf32>
      %358 = vector.shape_cast %357 : vector<1x8x1xf32> to vector<8x1xf32>
      %359 = vector.broadcast %358 : vector<8x1xf32> to vector<8x64xf32>
      %360 = arith.divf %356, %359 : vector<8x64xf32>
      %c0_286 = arith.constant 0 : index
      %c0_287 = arith.constant 0 : index
      %c320_288 = arith.constant 320 : index
      %361 = vector.load %arg6[%c0_286, %c0_287, %c320_288] : memref<1x8x512xf32, #tpu.memory_space<vmem>>, vector<1x8x64xf32>
      %362 = vector.shape_cast %361 : vector<1x8x64xf32> to vector<8x64xf32>
      %363 = vector.shape_cast %360 : vector<8x64xf32> to vector<1x8x64xf32>
      tpu.vector_store %arg6[%c0_286, %c0_287, %c320_288], %363 {strides = array<i32>} : memref<1x8x512xf32, #tpu.memory_space<vmem>>, vector<1x8x64xf32>,
      %c6_289 = arith.constant 6 : index
      %c0_290 = arith.constant 0 : index
      %c0_291 = arith.constant 0 : index
      %364 = vector.load %arg7[%c6_289, %c0_290, %c0_291] : memref<8x8x64xf32, #tpu.memory_space<vmem>>, vector<1x8x64xf32>
      %365 = vector.shape_cast %364 : vector<1x8x64xf32> to vector<8x64xf32>
      %c6_292 = arith.constant 6 : index
      %c0_293 = arith.constant 0 : index
      %c0_294 = arith.constant 0 : index
      %366 = vector.load %arg9[%c6_292, %c0_293, %c0_294] : memref<8x8x1xf32, #tpu.memory_space<vmem>>, vector<1x8x1xf32>
      %367 = vector.shape_cast %366 : vector<1x8x1xf32> to vector<8x1xf32>
      %368 = vector.broadcast %367 : vector<8x1xf32> to vector<8x64xf32>
      %369 = arith.divf %365, %368 : vector<8x64xf32>
      %c0_295 = arith.constant 0 : index
      %c0_296 = arith.constant 0 : index
      %c384_297 = arith.constant 384 : index
      %370 = vector.load %arg6[%c0_295, %c0_296, %c384_297] : memref<1x8x512xf32, #tpu.memory_space<vmem>>, vector<1x8x64xf32>
      %371 = vector.shape_cast %370 : vector<1x8x64xf32> to vector<8x64xf32>
      %372 = vector.shape_cast %369 : vector<8x64xf32> to vector<1x8x64xf32>
      tpu.vector_store %arg6[%c0_295, %c0_296, %c384_297], %372 {strides = array<i32>} : memref<1x8x512xf32, #tpu.memory_space<vmem>>, vector<1x8x64xf32>,
      %c7_298 = arith.constant 7 : index
      %c0_299 = arith.constant 0 : index
      %c0_300 = arith.constant 0 : index
      %373 = vector.load %arg7[%c7_298, %c0_299, %c0_300] : memref<8x8x64xf32, #tpu.memory_space<vmem>>, vector<1x8x64xf32>
      %374 = vector.shape_cast %373 : vector<1x8x64xf32> to vector<8x64xf32>
      %c7_301 = arith.constant 7 : index
      %c0_302 = arith.constant 0 : index
      %c0_303 = arith.constant 0 : index
      %375 = vector.load %arg9[%c7_301, %c0_302, %c0_303] : memref<8x8x1xf32, #tpu.memory_space<vmem>>, vector<1x8x1xf32>
      %376 = vector.shape_cast %375 : vector<1x8x1xf32> to vector<8x1xf32>
      %377 = vector.broadcast %376 : vector<8x1xf32> to vector<8x64xf32>
      %378 = arith.divf %374, %377 : vector<8x64xf32>
      %c0_304 = arith.constant 0 : index
      %c0_305 = arith.constant 0 : index
      %c448_306 = arith.constant 448 : index
      %379 = vector.load %arg6[%c0_304, %c0_305, %c448_306] : memref<1x8x512xf32, #tpu.memory_space<vmem>>, vector<1x8x64xf32>
      %380 = vector.shape_cast %379 : vector<1x8x64xf32> to vector<8x64xf32>
      %381 = vector.shape_cast %378 : vector<8x64xf32> to vector<1x8x64xf32>
      tpu.vector_store %arg6[%c0_304, %c0_305, %c448_306], %381 {strides = array<i32>} : memref<1x8x512xf32, #tpu.memory_space<vmem>>, vector<1x8x64xf32>,
    } else {
    }
    return
  }
  func.func @transform_0(%arg0: i32, %arg1: i32, %arg2: i32) -> (i32, i32, i32) {
    %c0_i32 = arith.constant 0 : i32
    %c0_i32_0 = arith.constant 0 : i32
    return %arg0, %arg1, %c0_i32 : i32, i32, i32
  }
  func.func @transform_1(%arg0: i32, %arg1: i32, %arg2: i32) -> (i32, i32, i32) {
    %c1_i32 = arith.constant 1 : i32
    %c0_i32 = arith.constant 0 : i32
    return %arg0, %arg2, %c1_i32 : i32, i32, i32
  }
  func.func @transform_2(%arg0: i32, %arg1: i32, %arg2: i32) -> (i32, i32, i32) {
    %c2_i32 = arith.constant 2 : i32
    %c0_i32 = arith.constant 0 : i32
    return %arg0, %arg2, %c2_i32 : i32, i32, i32
  }
  func.func @transform_3(%arg0: i32, %arg1: i32, %arg2: i32) -> (i32, i32, i32) {
    %c0_i32 = arith.constant 0 : i32
    %c0_i32_0 = arith.constant 0 : i32
    return %arg0, %arg1, %c0_i32 : i32, i32, i32
  }
}

module attributes {stable_mosaic.version = 11 : i64} {
  func.func @_matmul_bias_kernel(%arg0: i32, %arg1: i32, %arg2: i32, %arg3: memref<16x512xf32, #tpu.memory_space<vmem>>, %arg4: memref<512x32xf32, #tpu.memory_space<vmem>>, %arg5: memref<1x32xf32, #tpu.memory_space<vmem>>, %arg6: memref<16x32xf32, #tpu.memory_space<vmem>>, %arg7: memref<16x32xf32, #tpu.memory_space<vmem>>) attributes {dimension_semantics = [#tpu.dimension_semantics<parallel>, #tpu.dimension_semantics<parallel>, #tpu.dimension_semantics<arbitrary>], iteration_bounds = array<i64: 1, 1, 1>, scalar_prefetch = 0 : i64, scratch_operands = 1 : i64, tpu.core_type = #tpu.core_type<tc>, window_params = [{transform_indices = @transform_0, window_bounds = array<i64: 16, 512>}, {transform_indices = @transform_1, window_bounds = array<i64: 512, 32>}, {transform_indices = @transform_2, window_bounds = array<i64: 1, 32>}, {transform_indices = @transform_3, window_bounds = array<i64: 16, 32>}]} {
    %c0_i32 = arith.constant 0 : i32
    %0 = arith.cmpi eq, %arg2, %c0_i32 : i32
    %1 = arith.extui %0 : i1 to i32
    %c0_i32_0 = arith.constant 0 : i32
    %2 = arith.cmpi ne, %1, %c0_i32_0 : i32
    scf.if %2 {
      %cst_10 = arith.constant 0.000000e+00 : f32
      %12 = vector.broadcast %cst_10 : f32 to vector<16x32xf32>
      %c0_11 = arith.constant 0 : index
      %c0_12 = arith.constant 0 : index
      %13 = vector.load %arg7[%c0_11, %c0_12] : memref<16x32xf32, #tpu.memory_space<vmem>>, vector<16x32xf32>
      tpu.vector_store %arg7[%c0_11, %c0_12], %12 {strides = array<i32>} : memref<16x32xf32, #tpu.memory_space<vmem>>, vector<16x32xf32>,
    } else {
    }
    %c0 = arith.constant 0 : index
    %c0_1 = arith.constant 0 : index
    %3 = vector.load %arg7[%c0, %c0_1] : memref<16x32xf32, #tpu.memory_space<vmem>>, vector<16x32xf32>
    %c0_2 = arith.constant 0 : index
    %c0_3 = arith.constant 0 : index
    %4 = vector.load %arg3[%c0_2, %c0_3] : memref<16x512xf32, #tpu.memory_space<vmem>>, vector<16x512xf32>
    %c0_4 = arith.constant 0 : index
    %c0_5 = arith.constant 0 : index
    %5 = vector.load %arg4[%c0_4, %c0_5] : memref<512x32xf32, #tpu.memory_space<vmem>>, vector<512x32xf32>
    %cst = arith.constant dense<0.000000e+00> : vector<16x32xf32>
    %6 = tpu.matmul %4, %5, %cst {dimension_numbers = #tpu.dot_dimension_numbers<[1], [0], [0], [1], [0, 0, 1, 1], [], []>} : vector<16x512xf32>, vector<512x32xf32>, vector<16x32xf32> -> vector<16x32xf32>
    %7 = arith.addf %3, %6 : vector<16x32xf32>
    %c0_6 = arith.constant 0 : index
    %c0_7 = arith.constant 0 : index
    %8 = vector.load %arg7[%c0_6, %c0_7] : memref<16x32xf32, #tpu.memory_space<vmem>>, vector<16x32xf32>
    tpu.vector_store %arg7[%c0_6, %c0_7], %7 {strides = array<i32>} : memref<16x32xf32, #tpu.memory_space<vmem>>, vector<16x32xf32>,
    %c0_i32_8 = arith.constant 0 : i32
    %9 = arith.cmpi eq, %arg2, %c0_i32_8 : i32
    %10 = arith.extui %9 : i1 to i32
    %c0_i32_9 = arith.constant 0 : i32
    %11 = arith.cmpi ne, %10, %c0_i32_9 : i32
    scf.if %11 {
      %c0_10 = arith.constant 0 : index
      %c0_11 = arith.constant 0 : index
      %12 = vector.load %arg7[%c0_10, %c0_11] : memref<16x32xf32, #tpu.memory_space<vmem>>, vector<16x32xf32>
      %c0_12 = arith.constant 0 : index
      %c0_13 = arith.constant 0 : index
      %13 = vector.load %arg5[%c0_12, %c0_13] : memref<1x32xf32, #tpu.memory_space<vmem>>, vector<1x32xf32>
      %14 = vector.broadcast %13 : vector<1x32xf32> to vector<16x32xf32>
      %15 = arith.addf %12, %14 : vector<16x32xf32>
      %c0_14 = arith.constant 0 : index
      %c0_15 = arith.constant 0 : index
      %16 = vector.load %arg6[%c0_14, %c0_15] : memref<16x32xf32, #tpu.memory_space<vmem>>, vector<16x32xf32>
      tpu.vector_store %arg6[%c0_14, %c0_15], %15 {strides = array<i32>} : memref<16x32xf32, #tpu.memory_space<vmem>>, vector<16x32xf32>,
    } else {
    }
    return
  }
  func.func @transform_0(%arg0: i32, %arg1: i32, %arg2: i32) -> (i32, i32) {
    %c0_i32 = arith.constant 0 : i32
    return %arg0, %arg2 : i32, i32
  }
  func.func @transform_1(%arg0: i32, %arg1: i32, %arg2: i32) -> (i32, i32) {
    %c0_i32 = arith.constant 0 : i32
    return %arg2, %arg1 : i32, i32
  }
  func.func @transform_2(%arg0: i32, %arg1: i32, %arg2: i32) -> (i32, i32) {
    %c0_i32 = arith.constant 0 : i32
    %c0_i32_0 = arith.constant 0 : i32
    return %c0_i32, %arg1 : i32, i32
  }
  func.func @transform_3(%arg0: i32, %arg1: i32, %arg2: i32) -> (i32, i32) {
    %c0_i32 = arith.constant 0 : i32
    return %arg0, %arg1 : i32, i32
  }
}

</mosaic_0001>

<llo_original>
// kernel: attention_forward.3
$region0: #{attention_forward.3}
  #allocation0 [shape = 'u32[]', space=smem, size = 0x4, offset = 0x4, fixed_abs, tag = 'smem constant byte address 0x4 - core index']
  #allocation1 [shape = 'u32[72,128]{1,0:T(1,128)}', space=vmem, size = 0x9000, scoped, tag = 'internal scratch']
  #allocation2 [shape = 'f32[16,512]{1,0:T(8,128)}', space=vmem, size = 0x8000, scoped, tag = 'scratch operand']
  %s0 = inlined_call_operand.vmem [shape: f32[16,32], index: 0, kind: input, shape index: {}]
  %s1 = inlined_call_operand.vmem [shape: f32[32,1536], index: 1, kind: input, shape index: {}]
  %s2 = inlined_call_operand.vmem [shape: f32[16,1536], index: 2, kind: output, shape index: {}]
  %s3 = sld [smem:[#allocation0]]
  $region91: #{attention_forward.3} parent=0
    _
  %s5 = ssub.s32 1, %s3
  %s6 = scalar_select 0, %s5, %s3
  $region1: #{attention_forward.3} parent=0
    #allocation3 [shape = 'u8[131072]{0}', space=vmem, size = 0x20000, scoped, tag = 'input window, operand 1']
    #allocation4 [shape = 'u8[65536]{0}', space=vmem, size = 0x10000, scoped, tag = 'output window, operand 0']
    loop: start=0, step=1, limit=5
    $region2: #{attention_forward.3} parent=1 // loop_pre_header
      _
    $region3: #{attention_forward.3} parent=1 // loop_header
      %s8 = sphi 0, %s12
      %p9 = scmp.ge.s32.totalorder %s8, 5
      %s15 = sphi 0, %s34
      %s16 = sphi 0, %s30
      %s17 = sphi 0, %s26
      %s18 = sphi 0, %s15
      %s19 = sphi 0, %s16
      %s20 = sphi 0, %s17
      %s21 = sphi 0, %s18
      %s22 = sphi 0, %s19
      %s23 = sphi 0, %s20
      %s39 = sphi 0, %s41
      %s42 = sphi 0, %s39
      %s43 = sphi 0, %s42
      %s59 = sphi 0, %s43
      %s67 = sphi 0, %s69
      %s70 = sphi 0, %s67
      %s71 = sphi 0, %s70
      %s87 = sphi 0, %s71
      %s95 = sphi 0, %s97
      %s98 = sphi 0, %s95
      %s99 = sphi 0, %s98
      %s115 = sphi 0, %s99
    $region4: #{attention_forward.3} parent=1 // loop_header_branch
      %11 = sbr.rel (%p9) target = $region8
    $region5: #{attention_forward.3} parent=1 // loop_body
      %s13 = ssub.s32 %s8, 1
      %s14 = ssub.s32 %s8, 2
      %s24 = sadd.s32 1, %s17
      %p25 = scmp.ge.s32.totalorder %s24, 1
      %s26 = scalar_select %p25, 0, %s24
      %s27 = sadd.s32 1, %s16
      %s28 = scalar_select %p25, %s27, %s16
      %p29 = scmp.ge.s32.totalorder %s28, 3
      %s30 = scalar_select %p29, 0, %s28
      %s31 = sadd.s32 1, %s15
      %s32 = scalar_select %p29, %s31, %s15
      %p33 = scmp.ge.s32.totalorder %s32, 1
      %s34 = scalar_select %p33, 0, %s32
      %s35 = ssub.s32 %s15, %s34
      %s36 = ssub.s32 %s17, %s26
      %s37 = sor.u32 %s35, %s36
      %p38 = scmp.eq.s32.totalorder %s37, 0
      %s40 = sadd.s32 %s39, 1
      %s41 = scalar_select %p38, %s39, %s40
      %p44 = pneg %p38
      %p45 = scmp.eq.s32.totalorder %s8, 2
      %p46 = por %p44, %p45
      %p47 = scmp.ne.s32.totalorder %s39, %s42
      %p48 = scmp.eq.s32.totalorder %s8, 0
      %p49 = por %p47, %p48
      %p50 = scmp.ne.s32.totalorder %s39, %s42
      %p51 = scmp.eq.s32.totalorder %s13, 2
      %p52 = por %p50, %p51
      %p53 = scmp.ne.s32.totalorder %s42, %s43
      %p54 = scmp.eq.s32.totalorder %s13, 0
      %p55 = por %p53, %p54
      %p56 = scmp.ne.s32.totalorder %s42, %s43
      %p57 = scmp.eq.s32.totalorder %s14, 2
      %p58 = por %p56, %p57
      %p60 = scmp.ne.s32.totalorder %s43, %s59
      %p61 = scmp.eq.s32.totalorder %s14, 0
      %p62 = por %p60, %p61
      %s63 = ssub.s32 %s17, %s26
      %s64 = ssub.s32 %s16, %s30
      %s65 = sor.u32 %s63, %s64
      %p66 = scmp.eq.s32.totalorder %s65, 0
      %s68 = sadd.s32 %s67, 1
      %s69 = scalar_select %p66, %s67, %s68
      %p72 = pneg %p66
      %p73 = scmp.eq.s32.totalorder %s8, 2
      %p74 = por %p72, %p73
      %p75 = scmp.ne.s32.totalorder %s67, %s70
      %p76 = scmp.eq.s32.totalorder %s8, 0
      %p77 = por %p75, %p76
      %p78 = scmp.ne.s32.totalorder %s67, %s70
      %p79 = scmp.eq.s32.totalorder %s13, 2
      %p80 = por %p78, %p79
      %p81 = scmp.ne.s32.totalorder %s70, %s71
      %p82 = scmp.eq.s32.totalorder %s13, 0
      %p83 = por %p81, %p82
      %p84 = scmp.ne.s32.totalorder %s70, %s71
      %p85 = scmp.eq.s32.totalorder %s14, 2
      %p86 = por %p84, %p85
      %p88 = scmp.ne.s32.totalorder %s71, %s87
      %p89 = scmp.eq.s32.totalorder %s14, 0
      %p90 = por %p88, %p89
      %s91 = ssub.s32 %s15, %s34
      %s92 = ssub.s32 %s16, %s30
      %s93 = sor.u32 %s91, %s92
      %p94 = scmp.eq.s32.totalorder %s93, 0
      %s96 = sadd.s32 %s95, 1
      %s97 = scalar_select %p94, %s95, %s96
      %p100 = pneg %p94
      %p101 = scmp.eq.s32.totalorder %s8, 2
      %p102 = por %p100, %p101
      %p103 = scmp.ne.s32.totalorder %s95, %s98
      %p104 = scmp.eq.s32.totalorder %s8, 0
      %p105 = por %p103, %p104
      %p106 = scmp.ne.s32.totalorder %s95, %s98
      %p107 = scmp.eq.s32.totalorder %s13, 2
      %p108 = por %p106, %p107
      %p109 = scmp.ne.s32.totalorder %s98, %s99
      %p110 = scmp.eq.s32.totalorder %s13, 0
      %p111 = por %p109, %p110
      %p112 = scmp.ne.s32.totalorder %s98, %s99
      %p113 = scmp.eq.s32.totalorder %s14, 2
      %p114 = por %p112, %p113
      %p116 = scmp.ne.s32.totalorder %s99, %s115
      %p117 = scmp.eq.s32.totalorder %s14, 0
      %p118 = por %p116, %p117
      %p119 = scmp.le.s32.totalorder 1, %s8
      %p120 = scmp.lt.s32.totalorder %s8, 4
      %p121 = pnand %p119, %p120
      %p122 = pneg %p121
      // Predicated region
      $region9: #{attention_forward.3} parent=5 // pred_check
        _
      $region10: #{attention_forward.3} parent=5 // pred_check_branch
        %124 = sbr.rel (%p121) target = $region12
      $region11: #{attention_forward.3} parent=5 // pred_region
        %s125 = ssub.s32 %s8, 1
        // Predicated region
        $region13: #{attention_forward.3} parent=11 // pred_check
          %p126 = pneg %p55
        $region14: #{attention_forward.3} parent=11 // pred_check_branch
          %128 = sbr.rel (%p126) target = $region16
        $region15: #{attention_forward.3} parent=11 // pred_region
          %s129 = smul.u32 2, %s18
          %p130 = scmp.lt.s32.totalorder %s129, 1
          %s131 = scalar_select %p130, %s129, 1
          %p132 = scmp.lt.s32.totalorder %s20, 0
          %s133 = scalar_select %p132, %s20, 0
          %s134 = sadd.s32 %s133, %s131
          %s135 = smul.addr %s134, 8
          %s136 = scalar_lea.vmem %s0, %s135
          %s137 = smul.u32 2, %s18
        $region16: #{attention_forward.3} parent=11 // pred_fallthru
          _
      $region12: #{attention_forward.3} parent=5 // pred_fallthru
        _
      %p138 = scmp.lt.s32.totalorder %s8, 3
      // Predicated region
      $region17: #{attention_forward.3} parent=5 // pred_check
        %p139 = pneg %p138
      $region18: #{attention_forward.3} parent=5 // pred_check_branch
        %141 = sbr.rel (%p139) target = $region20
      $region19: #{attention_forward.3} parent=5 // pred_region
        // Predicated region
        $region21: #{attention_forward.3} parent=19 // pred_check
          %p142 = pneg %p77
        $region22: #{attention_forward.3} parent=19 // pred_check_branch
          %144 = sbr.rel (%p142) target = $region24
        $region23: #{attention_forward.3} parent=19 // pred_region
          %s145 = sand.u32 %s67, 1
          %s146 = sand.u32 %s67, 1
          %s147 = smul.addr %s146, 128
          %s148 = scalar_lea.vmem [#allocation3], %s147
          %s149 = smul.u32 4, %s17
          %s150 = smul.u32 4, %s16
          %s151 = smul.addr %s149, 12
          %s152 = sadd.s32 %s150, %s151
          %s153 = smul.addr %s152, 8
          %s154 = scalar_lea.vmem %s1, %s153
          // Predicated region
          $region25: #{attention_forward.3} parent=23 // pred_check
            _
          $region26: #{attention_forward.3} parent=23 // pred_check_branch
            %156 = sbr.rel (0) target = $region28
          $region27: #{attention_forward.3} parent=23 // pred_region
            // Predicated region
            $region29: #{attention_forward.3} parent=27 // pred_check
              _
            $region30: #{attention_forward.3} parent=27 // pred_check_branch
              %158 = sbr.rel (0) target = $region32
            $region31: #{attention_forward.3} parent=27 // pred_region
              loop: start=0, step=1, limit=1
              $region33: #{attention_forward.3} parent=31 // loop_pre_header
                _
              $region34: #{attention_forward.3} parent=31 // loop_header
                %s160 = sphi 0, %s164
                %p161 = scmp.ge.s32.totalorder %s160, 1
                %s165 = sphi %s154, %s154
                %s166 = sphi %s148, %s148
              $region35: #{attention_forward.3} parent=31 // loop_header_branch
                %163 = sbr.rel (%p161) target = $region39
              $region36: #{attention_forward.3} parent=31 // loop_body
                %v167 = vld [vmem:[%s165] sm:$0xff]
                %168 = vst [vmem:[%s166] sm:$0xff] %v167
                %v169 = vld [vmem:[%s165 + $0x8] sm:$0xff]
                %170 = vst [vmem:[%s166 + $0x8] sm:$0xff] %v169
                %v171 = vld [vmem:[%s165 + $0x10] sm:$0xff]
                %172 = vst [vmem:[%s166 + $0x10] sm:$0xff] %v171
                %v173 = vld [vmem:[%s165 + $0x18] sm:$0xff]
                %174 = vst [vmem:[%s166 + $0x18] sm:$0xff] %v173
                %v175 = vld [vmem:[%s165 + $0x60] sm:$0xff]
                %176 = vst [vmem:[%s166 + $0x20] sm:$0xff] %v175
                %v177 = vld [vmem:[%s165 + $0x68] sm:$0xff]
                %178 = vst [vmem:[%s166 + $0x28] sm:$0xff] %v177
                %v179 = vld [vmem:[%s165 + $0x70] sm:$0xff]
                %180 = vst [vmem:[%s166 + $0x30] sm:$0xff] %v179
                %v181 = vld [vmem:[%s165 + $0x78] sm:$0xff]
                %182 = vst [vmem:[%s166 + $0x38] sm:$0xff] %v181
                %v183 = vld [vmem:[%s165 + $0xc0] sm:$0xff]
                %184 = vst [vmem:[%s166 + $0x40] sm:$0xff] %v183
                %v185 = vld [vmem:[%s165 + $0xc8] sm:$0xff]
                %186 = vst [vmem:[%s166 + $0x48] sm:$0xff] %v185
                %v187 = vld [vmem:[%s165 + $0xd0] sm:$0xff]
                %188 = vst [vmem:[%s166 + $0x50] sm:$0xff] %v187
                %v189 = vld [vmem:[%s165 + $0xd8] sm:$0xff]
                %190 = vst [vmem:[%s166 + $0x58] sm:$0xff] %v189
                %v191 = vld [vmem:[%s165 + $0x120] sm:$0xff]
                %192 = vst [vmem:[%s166 + $0x60] sm:$0xff] %v191
                %v193 = vld [vmem:[%s165 + $0x128] sm:$0xff]
                %194 = vst [vmem:[%s166 + $0x68] sm:$0xff] %v193
                %v195 = vld [vmem:[%s165 + $0x130] sm:$0xff]
                %196 = vst [vmem:[%s166 + $0x70] sm:$0xff] %v195
                %v197 = vld [vmem:[%s165 + $0x138] sm:$0xff]
                %198 = vst [vmem:[%s166 + $0x78] sm:$0xff] %v197
              $region37: #{attention_forward.3} parent=31 // loop_footer
                %s164 = sadd.s32 1, %s160
              $region38: #{attention_forward.3} parent=31 // loop_footer_branch
                %159 = sbr.rel target = $region34
              $region39: #{attention_forward.3} parent=31 // loop_exit
                _
            $region32: #{attention_forward.3} parent=27 // pred_fallthru
              _
            // Predicated region
            $region40: #{attention_forward.3} parent=27 // pred_check
              _
            $region41: #{attention_forward.3} parent=27 // pred_check_branch
              %200 = sbr.rel target = $region43
            $region42: #{attention_forward.3} parent=27 // pred_region
              _
            $region43: #{attention_forward.3} parent=27 // pred_fallthru
              _
          $region28: #{attention_forward.3} parent=23 // pred_fallthru
            _
          %201 = vnop
        $region24: #{attention_forward.3} parent=19 // pred_fallthru
          _
      $region20: #{attention_forward.3} parent=5 // pred_fallthru
        _
      %p202 = scmp.le.s32.totalorder 1, %s8
      %p203 = scmp.lt.s32.totalorder %s8, 4
      %p204 = pnand %p202, %p203
      %p205 = pneg %p204
      // Predicated region
      $region44: #{attention_forward.3} parent=5 // pred_check
        _
      $region45: #{attention_forward.3} parent=5 // pred_check_branch
        %207 = sbr.rel (%p204) target = $region47
      $region46: #{attention_forward.3} parent=5 // pred_region
        %s208 = ssub.s32 %s8, 1
        %s209 = sand.u32 %s70, 1
        %s210 = sand.u32 %s70, 1
        %s211 = smul.addr %s210, 128
        %s212 = scalar_lea.vmem [#allocation3], %s211
        // Predicated region
        $region48: #{attention_forward.3} parent=46 // pred_check
          %p213 = pneg %p83
        $region49: #{attention_forward.3} parent=46 // pred_check_branch
          %215 = sbr.rel (%p213) target = $region51
        $region50: #{attention_forward.3} parent=46 // pred_region
          _
        $region51: #{attention_forward.3} parent=46 // pred_fallthru
          _
        %s216 = smul.u32 2, %s18
        %p217 = scmp.lt.s32.totalorder %s216, 1
        %s218 = scalar_select %p217, %s216, 1
        %p219 = scmp.lt.s32.totalorder %s20, 0
        %s220 = scalar_select %p219, %s20, 0
        %s221 = sadd.s32 %s220, %s218
        %s222 = smul.addr %s221, 8
        %s223 = scalar_lea.vmem %s0, %s222
        %p224 = pneg %p55
        %p225 = pneg %p52
        %s226 = sand.u32 %s70, 1
        %s227 = sand.u32 %s70, 1
        %s228 = smul.addr %s227, 128
        %s229 = scalar_lea.vmem [#allocation3], %s228
        %p230 = pneg %p83
        %p231 = pneg %p80
        %p232 = pneg %p111
        %p233 = pneg %p108
        %s234 = sand.u32 %s98, 1
        %s235 = sand.u32 %s98, 1
        %s236 = smul.addr %s235, 64
        %s237 = scalar_lea.vmem [#allocation4], %s236
        %s238 = smul.u32 2, %s18
        %p239 = scmp.lt.s32.totalorder %s238, 1
        %s240 = scalar_select %p239, %s238, 1
        %p241 = scmp.lt.s32.totalorder %s20, 0
        %s242 = scalar_select %p241, %s20, 0
        %s243 = sadd.s32 %s242, %s240
        %s244 = smul.addr %s243, 8
        %s245 = scalar_lea.vmem %s0, %s244
        %s246 = smul.u32 2, %s18
        %s247 = smul.u32 4, %s20
        %s248 = smul.u32 4, %s19
        %s249 = smul.u32 2, %s18
        %s250 = smul.u32 4, %s19
        %p251 = scmp.eq.s32.totalorder %s20, 0
        // Predicated region
        $region52: #{attention_forward.3} parent=46 // pred_check
          %p252 = pneg %p251
        $region53: #{attention_forward.3} parent=46 // pred_check_branch
          %254 = sbr.rel (%p252) target = $region55
        $region54: #{attention_forward.3} parent=46 // pred_region
          %255 = vst [vmem:[#allocation2] sm:$0xff] 0.0
          %256 = vst [vmem:[#allocation2 + $0x8] sm:$0xff] 0.0
          %257 = vst [vmem:[#allocation2 + $0x10] sm:$0xff] 0.0
          %258 = vst [vmem:[#allocation2 + $0x18] sm:$0xff] 0.0
          %259 = vst [vmem:[#allocation2 + $0x20] sm:$0xff] 0.0
          %260 = vst [vmem:[#allocation2 + $0x28] sm:$0xff] 0.0
          %261 = vst [vmem:[#allocation2 + $0x30] sm:$0xff] 0.0
          %262 = vst [vmem:[#allocation2 + $0x38] sm:$0xff] 0.0
        $region55: #{attention_forward.3} parent=46 // pred_fallthru
          _
        %v263 = vld [vmem:[#allocation2] sm:$0xff]
        %v264 = vld [vmem:[#allocation2 + $0x8] sm:$0xff]
        %v265 = vld [vmem:[#allocation2 + $0x10] sm:$0xff]
        %v266 = vld [vmem:[#allocation2 + $0x18] sm:$0xff]
        %v267 = vld [vmem:[#allocation2 + $0x20] sm:$0xff]
        %v268 = vld [vmem:[#allocation2 + $0x28] sm:$0xff]
        %v269 = vld [vmem:[#allocation2 + $0x30] sm:$0xff]
        %v270 = vld [vmem:[#allocation2 + $0x38] sm:$0xff]
        %v271 = vld [vmem:[%s245] sm:$0xff]
        %v272 = vld [vmem:[%s245 + $0x8] sm:$0xff]
        %v273 = vld [vmem:[%s212] sm:$0xff]
        %v274 = vld [vmem:[%s212 + $0x8] sm:$0xff]
        %v275 = vld [vmem:[%s212 + $0x10] sm:$0xff]
        %v276 = vld [vmem:[%s212 + $0x18] sm:$0xff]
        %v277 = vld [vmem:[%s212 + $0x20] sm:$0xff]
        %v278 = vld [vmem:[%s212 + $0x28] sm:$0xff]
        %v279 = vld [vmem:[%s212 + $0x30] sm:$0xff]
        %v280 = vld [vmem:[%s212 + $0x38] sm:$0xff]
        %v281 = vld [vmem:[%s212 + $0x40] sm:$0xff]
        %v282 = vld [vmem:[%s212 + $0x48] sm:$0xff]
        %v283 = vld [vmem:[%s212 + $0x50] sm:$0xff]
        %v284 = vld [vmem:[%s212 + $0x58] sm:$0xff]
        %v285 = vld [vmem:[%s212 + $0x60] sm:$0xff]
        %v286 = vld [vmem:[%s212 + $0x68] sm:$0xff]
        %v287 = vld [vmem:[%s212 + $0x70] sm:$0xff]
        %v288 = vld [vmem:[%s212 + $0x78] sm:$0xff]
        %vm289 = vcmask 261120
        %v291 = vsel %vm289, %v271, 0
        %v294 = vsel %vm289, %v272, 0
        %296 = vmatpush.msra.mxu0 0.0
        %297 = vmatpush.msra.mxu0 0.0
        %298 = vmatpush.msra.mxu0 0.0
        %299 = vmatpush.msra.mxu0 0.0
        %300 = vmatpush.msra.mxu0 0.0
        %301 = vmatpush.msra.mxu0 0.0
        %302 = vmatpush.msra.mxu0 0.0
        %303 = vmatpush.msra.mxu0 0.0
        %304 = vmatpush.msra.mxu0 0.0
        %305 = vmatpush.msra.mxu0 0.0
        %306 = vmatpush.msra.mxu0 0.0
        %307 = vmatpush.msra.mxu0 0.0
        %308 = vmatpush.msra.mxu0 %v285
        %309 = vmatpush.msra.mxu0 %v281
        %310 = vmatpush.msra.mxu0 %v277
        %311 = vmatpush.msra.mxu0 %v273
        %312 = vmatmul.f32.gmra.mxu0 %v291
        %v313 = vpop.f32.mrf.mxu0
        %v314 = vadd.f32 0.0, %v313
        %315 = vmatmul.f32.gmra.mxu0 %v294
        %v316 = vpop.f32.mrf.mxu0
        %v317 = vadd.f32 0.0, %v316
        %318 = vdwg.mxu0
        %319 = vmatpush.msra.mxu0 0.0
        %320 = vmatpush.msra.mxu0 0.0
        %321 = vmatpush.msra.mxu0 0.0
        %322 = vmatpush.msra.mxu0 0.0
        %323 = vmatpush.msra.mxu0 0.0
        %324 = vmatpush.msra.mxu0 0.0
        %325 = vmatpush.msra.mxu0 0.0
        %326 = vmatpush.msra.mxu0 0.0
        %327 = vmatpush.msra.mxu0 0.0
        %328 = vmatpush.msra.mxu0 0.0
        %329 = vmatpush.msra.mxu0 0.0
        %330 = vmatpush.msra.mxu0 0.0
        %331 = vmatpush.msra.mxu0 %v286
        %332 = vmatpush.msra.mxu0 %v282
        %333 = vmatpush.msra.mxu0 %v278
        %334 = vmatpush.msra.mxu0 %v274
        %335 = vmatmul.f32.gmra.mxu0 %v291
        %v336 = vpop.f32.mrf.mxu0
        %v337 = vadd.f32 0.0, %v336
        %338 = vmatmul.f32.gmra.mxu0 %v294
        %v339 = vpop.f32.mrf.mxu0
        %v340 = vadd.f32 0.0, %v339
        %341 = vdwg.mxu0
        %342 = vmatpush.msra.mxu0 0.0
        %343 = vmatpush.msra.mxu0 0.0
        %344 = vmatpush.msra.mxu0 0.0
        %345 = vmatpush.msra.mxu0 0.0
        %346 = vmatpush.msra.mxu0 0.0
        %347 = vmatpush.msra.mxu0 0.0
        %348 = vmatpush.msra.mxu0 0.0
        %349 = vmatpush.msra.mxu0 0.0
        %350 = vmatpush.msra.mxu0 0.0
        %351 = vmatpush.msra.mxu0 0.0
        %352 = vmatpush.msra.mxu0 0.0
        %353 = vmatpush.msra.mxu0 0.0
        %354 = vmatpush.msra.mxu0 %v287
        %355 = vmatpush.msra.mxu0 %v283
        %356 = vmatpush.msra.mxu0 %v279
        %357 = vmatpush.msra.mxu0 %v275
        %358 = vmatmul.f32.gmra.mxu0 %v291
        %v359 = vpop.f32.mrf.mxu0
        %v360 = vadd.f32 0.0, %v359
        %361 = vmatmul.f32.gmra.mxu0 %v294
        %v362 = vpop.f32.mrf.mxu0
        %v363 = vadd.f32 0.0, %v362
        %364 = vdwg.mxu0
        %365 = vmatpush.msra.mxu0 0.0
        %366 = vmatpush.msra.mxu0 0.0
        %367 = vmatpush.msra.mxu0 0.0
        %368 = vmatpush.msra.mxu0 0.0
        %369 = vmatpush.msra.mxu0 0.0
        %370 = vmatpush.msra.mxu0 0.0
        %371 = vmatpush.msra.mxu0 0.0
        %372 = vmatpush.msra.mxu0 0.0
        %373 = vmatpush.msra.mxu0 0.0
        %374 = vmatpush.msra.mxu0 0.0
        %375 = vmatpush.msra.mxu0 0.0
        %376 = vmatpush.msra.mxu0 0.0
        %377 = vmatpush.msra.mxu0 %v288
        %378 = vmatpush.msra.mxu0 %v284
        %379 = vmatpush.msra.mxu0 %v280
        %380 = vmatpush.msra.mxu0 %v276
        %381 = vmatmul.f32.gmra.mxu0 %v291
        %v382 = vpop.f32.mrf.mxu0
        %v383 = vadd.f32 0.0, %v382
        %384 = vmatmul.f32.gmra.mxu0 %v294
        %v385 = vpop.f32.mrf.mxu0
        %v386 = vadd.f32 0.0, %v385
        %387 = vdwg.mxu0
        %v388 = vadd.f32 %v263, %v314
        %v389 = vadd.f32 %v264, %v337
        %v390 = vadd.f32 %v265, %v360
        %v391 = vadd.f32 %v266, %v383
        %v392 = vadd.f32 %v267, %v317
        %v393 = vadd.f32 %v268, %v340
        %v394 = vadd.f32 %v269, %v363
        %v395 = vadd.f32 %v270, %v386
        %396 = vst [vmem:[#allocation2] sm:$0xff] %v388
        %397 = vst [vmem:[#allocation2 + $0x8] sm:$0xff] %v389
        %398 = vst [vmem:[#allocation2 + $0x10] sm:$0xff] %v390
        %399 = vst [vmem:[#allocation2 + $0x18] sm:$0xff] %v391
        %400 = vst [vmem:[#allocation2 + $0x20] sm:$0xff] %v392
        %401 = vst [vmem:[#allocation2 + $0x28] sm:$0xff] %v393
        %402 = vst [vmem:[#allocation2 + $0x30] sm:$0xff] %v394
        %403 = vst [vmem:[#allocation2 + $0x38] sm:$0xff] %v395
        // Predicated region
        $region56: #{attention_forward.3} parent=46 // pred_check
          %p404 = pneg %p251
        $region57: #{attention_forward.3} parent=46 // pred_check_branch
          %406 = sbr.rel (%p404) target = $region59
        $region58: #{attention_forward.3} parent=46 // pred_region
          %v407 = vld [vmem:[#allocation2] sm:$0xff]
          %v408 = vld [vmem:[#allocation2 + $0x8] sm:$0xff]
          %v409 = vld [vmem:[#allocation2 + $0x10] sm:$0xff]
          %v410 = vld [vmem:[#allocation2 + $0x18] sm:$0xff]
          %v411 = vld [vmem:[#allocation2 + $0x20] sm:$0xff]
          %v412 = vld [vmem:[#allocation2 + $0x28] sm:$0xff]
          %v413 = vld [vmem:[#allocation2 + $0x30] sm:$0xff]
          %v414 = vld [vmem:[#allocation2 + $0x38] sm:$0xff]
          %415 = vst [vmem:[%s237] sm:$0xff] %v407
          %416 = vst [vmem:[%s237 + $0x8] sm:$0xff] %v408
          %417 = vst [vmem:[%s237 + $0x10] sm:$0xff] %v409
          %418 = vst [vmem:[%s237 + $0x18] sm:$0xff] %v410
          %419 = vst [vmem:[%s237 + $0x20] sm:$0xff] %v411
          %420 = vst [vmem:[%s237 + $0x28] sm:$0xff] %v412
          %421 = vst [vmem:[%s237 + $0x30] sm:$0xff] %v413
          %422 = vst [vmem:[%s237 + $0x38] sm:$0xff] %v414
        $region59: #{attention_forward.3} parent=46 // pred_fallthru
          _
        %s423 = sand.u32 %s98, 1
        %s424 = sand.u32 %s98, 1
        %s425 = smul.addr %s424, 64
        %s426 = scalar_lea.vmem [#allocation4], %s425
        // Predicated region
        $region60: #{attention_forward.3} parent=46 // pred_check
          %p427 = pneg %p108
        $region61: #{attention_forward.3} parent=46 // pred_check_branch
          %429 = sbr.rel (%p427) target = $region63
        $region62: #{attention_forward.3} parent=46 // pred_region
          %s430 = smul.u32 2, %s18
          %s431 = smul.u32 4, %s19
          %s432 = smul.addr %s430, 12
          %s433 = sadd.s32 %s431, %s432
          %s434 = smul.addr %s433, 8
          %s435 = scalar_lea.vmem %s2, %s434
          // Predicated region
          $region64: #{attention_forward.3} parent=62 // pred_check
            _
          $region65: #{attention_forward.3} parent=62 // pred_check_branch
            %437 = sbr.rel (0) target = $region67
          $region66: #{attention_forward.3} parent=62 // pred_region
            // Predicated region
            $region68: #{attention_forward.3} parent=66 // pred_check
              _
            $region69: #{attention_forward.3} parent=66 // pred_check_branch
              %439 = sbr.rel (0) target = $region71
            $region70: #{attention_forward.3} parent=66 // pred_region
              loop: start=0, step=1, limit=1
              $region72: #{attention_forward.3} parent=70 // loop_pre_header
                _
              $region73: #{attention_forward.3} parent=70 // loop_header
                %s441 = sphi 0, %s445
                %p442 = scmp.ge.s32.totalorder %s441, 1
                %s446 = sphi %s426, %s426
                %s447 = sphi %s435, %s435
              $region74: #{attention_forward.3} parent=70 // loop_header_branch
                %444 = sbr.rel (%p442) target = $region78
              $region75: #{attention_forward.3} parent=70 // loop_body
                %v448 = vld [vmem:[%s446] sm:$0xff]
                %449 = vst [vmem:[%s447] sm:$0xff] %v448
                %v450 = vld [vmem:[%s446 + $0x8] sm:$0xff]
                %451 = vst [vmem:[%s447 + $0x8] sm:$0xff] %v450
                %v452 = vld [vmem:[%s446 + $0x10] sm:$0xff]
                %453 = vst [vmem:[%s447 + $0x10] sm:$0xff] %v452
                %v454 = vld [vmem:[%s446 + $0x18] sm:$0xff]
                %455 = vst [vmem:[%s447 + $0x18] sm:$0xff] %v454
                %v456 = vld [vmem:[%s446 + $0x20] sm:$0xff]
                %457 = vst [vmem:[%s447 + $0x60] sm:$0xff] %v456
                %v458 = vld [vmem:[%s446 + $0x28] sm:$0xff]
                %459 = vst [vmem:[%s447 + $0x68] sm:$0xff] %v458
                %v460 = vld [vmem:[%s446 + $0x30] sm:$0xff]
                %461 = vst [vmem:[%s447 + $0x70] sm:$0xff] %v460
                %v462 = vld [vmem:[%s446 + $0x38] sm:$0xff]
                %463 = vst [vmem:[%s447 + $0x78] sm:$0xff] %v462
              $region76: #{attention_forward.3} parent=70 // loop_footer
                %s445 = sadd.s32 1, %s441
              $region77: #{attention_forward.3} parent=70 // loop_footer_branch
                %440 = sbr.rel target = $region73
              $region78: #{attention_forward.3} parent=70 // loop_exit
                _
            $region71: #{attention_forward.3} parent=66 // pred_fallthru
              _
            // Predicated region
            $region79: #{attention_forward.3} parent=66 // pred_check
              _
            $region80: #{attention_forward.3} parent=66 // pred_check_branch
              %465 = sbr.rel target = $region82
            $region81: #{attention_forward.3} parent=66 // pred_region
              _
            $region82: #{attention_forward.3} parent=66 // pred_fallthru
              _
          $region67: #{attention_forward.3} parent=62 // pred_fallthru
            _
          %466 = vnop
        $region63: #{attention_forward.3} parent=46 // pred_fallthru
          _
      $region47: #{attention_forward.3} parent=5 // pred_fallthru
        _
      %p467 = scmp.le.s32.totalorder 2, %s8
      // Predicated region
      $region83: #{attention_forward.3} parent=5 // pred_check
        %p468 = pneg %p467
      $region84: #{attention_forward.3} parent=5 // pred_check_branch
        %470 = sbr.rel (%p468) target = $region86
      $region85: #{attention_forward.3} parent=5 // pred_region
        %s471 = ssub.s32 %s8, 2
        // Predicated region
        $region87: #{attention_forward.3} parent=85 // pred_check
          %p472 = pneg %p114
        $region88: #{attention_forward.3} parent=85 // pred_check_branch
          %474 = sbr.rel (%p472) target = $region90
        $region89: #{attention_forward.3} parent=85 // pred_region
          %s475 = sand.u32 %s99, 1
          %s476 = sand.u32 %s99, 1
          %s477 = smul.addr %s476, 64
          %s478 = scalar_lea.vmem [#allocation4], %s477
        $region90: #{attention_forward.3} parent=85 // pred_fallthru
          _
      $region86: #{attention_forward.3} parent=5 // pred_fallthru
        _
    $region6: #{attention_forward.3} parent=1 // loop_footer
      %s12 = sadd.s32 1, %s8
    $region7: #{attention_forward.3} parent=1 // loop_footer_branch
      %7 = sbr.rel target = $region3
    $region8: #{attention_forward.3} parent=1 // loop_exit
      _

// kernel: attention_forward.5
$region0: #{attention_forward.5}
  #allocation0 [shape = 'u32[]', space=smem, size = 0x4, offset = 0x4, fixed_abs, tag = 'smem constant byte address 0x4 - core index']
  #allocation1 [shape = 'u32[72,128]{1,0:T(1,128)}', space=vmem, size = 0x9000, scoped, tag = 'internal scratch']
  #allocation2 [shape = 'f32[16,32]{1,0:T(8,128)}', space=vmem, size = 0x2000, scoped, tag = 'scratch operand']
  %s0 = inlined_call_operand.vmem [shape: f32[16,512], index: 0, kind: input, shape index: {}]
  %s1 = inlined_call_operand.vmem [shape: f32[512,32], index: 1, kind: input, shape index: {}]
  %s2 = inlined_call_operand.vmem [shape: f32[1,32], index: 2, kind: input, shape index: {}]
  %s3 = inlined_call_operand.hbm [shape: f32[16,32], index: 3, kind: output, shape index: {}]
  %s4 = sld [smem:[#allocation0]]
  $region30: #{attention_forward.5} parent=0
    _
  %s6 = ssub.s32 1, %s4
  %s7 = scalar_select 0, %s6, %s4
  $region1: #{attention_forward.5} parent=0
    #allocation3 [shape = 'u8[8192]{0}', space=vmem, size = 0x2000, scoped, tag = 'output window, operand 0, single buffered']
    #allocation4 [shape = 's32[1]{0}', space=sflag, size = 0x4, scoped, tag = 'scoped memory for attention_forward.5']
    %8 = vsyncpa [#allocation4], 0
    // Predicated region
    $region2: #{attention_forward.5} parent=1 // pred_check
      _
    $region3: #{attention_forward.5} parent=1 // pred_check_branch
      %10 = sbr.rel (0) target = $region5
    $region4: #{attention_forward.5} parent=1 // pred_region
      _
    $region5: #{attention_forward.5} parent=1 // pred_fallthru
      _
    // Predicated region
    $region6: #{attention_forward.5} parent=1 // pred_check
      _
    $region7: #{attention_forward.5} parent=1 // pred_check_branch
      %12 = sbr.rel (0) target = $region9
    $region8: #{attention_forward.5} parent=1 // pred_region
      _
    $region9: #{attention_forward.5} parent=1 // pred_fallthru
      _
    // Predicated region
    $region10: #{attention_forward.5} parent=1 // pred_check
      _
    $region11: #{attention_forward.5} parent=1 // pred_check_branch
      %14 = sbr.rel (0) target = $region13
    $region12: #{attention_forward.5} parent=1 // pred_region
      _
    $region13: #{attention_forward.5} parent=1 // pred_fallthru
      _
    %p15 = scmp.eq.s32.totalorder 0, 0
    // Predicated region
    $region14: #{attention_forward.5} parent=1 // pred_check
      %p16 = pneg %p15
    $region15: #{attention_forward.5} parent=1 // pred_check_branch
      %18 = sbr.rel (%p16) target = $region17
    $region16: #{attention_forward.5} parent=1 // pred_region
      %vm19 = vcmask 261120
      %20 = vst.msk [vmem:[#allocation2] sm:$0xff] %vm19, 0.0
      %21 = vst.msk [vmem:[#allocation2 + $0x8] sm:$0xff] %vm19, 0.0
    $region17: #{attention_forward.5} parent=1 // pred_fallthru
      _
    %v22 = vld [vmem:[#allocation2] sm:$0xff]
    %v23 = vld [vmem:[#allocation2 + $0x8] sm:$0xff]
    %v24 = vld [vmem:[%s0] sm:$0xff]
    %v25 = vld [vmem:[%s0 + $0x8] sm:$0xff]
    %v26 = vld [vmem:[%s0 + $0x10] sm:$0xff]
    %v27 = vld [vmem:[%s0 + $0x18] sm:$0xff]
    %v28 = vld [vmem:[%s0 + $0x20] sm:$0xff]
    %v29 = vld [vmem:[%s0 + $0x28] sm:$0xff]
    %v30 = vld [vmem:[%s0 + $0x30] sm:$0xff]
    %v31 = vld [vmem:[%s0 + $0x38] sm:$0xff]
    %v32 = vld [vmem:[%s1] sm:$0xff]
    %v33 = vld [vmem:[%s1 + $0x8] sm:$0xff]
    %v34 = vld [vmem:[%s1 + $0x10] sm:$0xff]
    %v35 = vld [vmem:[%s1 + $0x18] sm:$0xff]
    %v36 = vld [vmem:[%s1 + $0x20] sm:$0xff]
    %v37 = vld [vmem:[%s1 + $0x28] sm:$0xff]
    %v38 = vld [vmem:[%s1 + $0x30] sm:$0xff]
    %v39 = vld [vmem:[%s1 + $0x38] sm:$0xff]
    %v40 = vld [vmem:[%s1 + $0x40] sm:$0xff]
    %v41 = vld [vmem:[%s1 + $0x48] sm:$0xff]
    %v42 = vld [vmem:[%s1 + $0x50] sm:$0xff]
    %v43 = vld [vmem:[%s1 + $0x58] sm:$0xff]
    %v44 = vld [vmem:[%s1 + $0x60] sm:$0xff]
    %v45 = vld [vmem:[%s1 + $0x68] sm:$0xff]
    %v46 = vld [vmem:[%s1 + $0x70] sm:$0xff]
    %v47 = vld [vmem:[%s1 + $0x78] sm:$0xff]
    %v48 = vld [vmem:[%s1 + $0x80] sm:$0xff]
    %v49 = vld [vmem:[%s1 + $0x88] sm:$0xff]
    %v50 = vld [vmem:[%s1 + $0x90] sm:$0xff]
    %v51 = vld [vmem:[%s1 + $0x98] sm:$0xff]
    %v52 = vld [vmem:[%s1 + $0xa0] sm:$0xff]
    %v53 = vld [vmem:[%s1 + $0xa8] sm:$0xff]
    %v54 = vld [vmem:[%s1 + $0xb0] sm:$0xff]
    %v55 = vld [vmem:[%s1 + $0xb8] sm:$0xff]
    %v56 = vld [vmem:[%s1 + $0xc0] sm:$0xff]
    %v57 = vld [vmem:[%s1 + $0xc8] sm:$0xff]
    %v58 = vld [vmem:[%s1 + $0xd0] sm:$0xff]
    %v59 = vld [vmem:[%s1 + $0xd8] sm:$0xff]
    %v60 = vld [vmem:[%s1 + $0xe0] sm:$0xff]
    %v61 = vld [vmem:[%s1 + $0xe8] sm:$0xff]
    %v62 = vld [vmem:[%s1 + $0xf0] sm:$0xff]
    %v63 = vld [vmem:[%s1 + $0xf8] sm:$0xff]
    %v64 = vld [vmem:[%s1 + $0x100] sm:$0xff]
    %v65 = vld [vmem:[%s1 + $0x108] sm:$0xff]
    %v66 = vld [vmem:[%s1 + $0x110] sm:$0xff]
    %v67 = vld [vmem:[%s1 + $0x118] sm:$0xff]
    %v68 = vld [vmem:[%s1 + $0x120] sm:$0xff]
    %v69 = vld [vmem:[%s1 + $0x128] sm:$0xff]
    %v70 = vld [vmem:[%s1 + $0x130] sm:$0xff]
    %v71 = vld [vmem:[%s1 + $0x138] sm:$0xff]
    %v72 = vld [vmem:[%s1 + $0x140] sm:$0xff]
    %v73 = vld [vmem:[%s1 + $0x148] sm:$0xff]
    %v74 = vld [vmem:[%s1 + $0x150] sm:$0xff]
    %v75 = vld [vmem:[%s1 + $0x158] sm:$0xff]
    %v76 = vld [vmem:[%s1 + $0x160] sm:$0xff]
    %v77 = vld [vmem:[%s1 + $0x168] sm:$0xff]
    %v78 = vld [vmem:[%s1 + $0x170] sm:$0xff]
    %v79 = vld [vmem:[%s1 + $0x178] sm:$0xff]
    %v80 = vld [vmem:[%s1 + $0x180] sm:$0xff]
    %v81 = vld [vmem:[%s1 + $0x188] sm:$0xff]
    %v82 = vld [vmem:[%s1 + $0x190] sm:$0xff]
    %v83 = vld [vmem:[%s1 + $0x198] sm:$0xff]
    %v84 = vld [vmem:[%s1 + $0x1a0] sm:$0xff]
    %v85 = vld [vmem:[%s1 + $0x1a8] sm:$0xff]
    %v86 = vld [vmem:[%s1 + $0x1b0] sm:$0xff]
    %v87 = vld [vmem:[%s1 + $0x1b8] sm:$0xff]
    %v88 = vld [vmem:[%s1 + $0x1c0] sm:$0xff]
    %v89 = vld [vmem:[%s1 + $0x1c8] sm:$0xff]
    %v90 = vld [vmem:[%s1 + $0x1d0] sm:$0xff]
    %v91 = vld [vmem:[%s1 + $0x1d8] sm:$0xff]
    %v92 = vld [vmem:[%s1 + $0x1e0] sm:$0xff]
    %v93 = vld [vmem:[%s1 + $0x1e8] sm:$0xff]
    %v94 = vld [vmem:[%s1 + $0x1f0] sm:$0xff]
    %v95 = vld [vmem:[%s1 + $0x1f8] sm:$0xff]
    %96 = vmatpush.msra.mxu0 %v47
    %97 = vmatpush.msra.mxu0 %v46
    %98 = vmatpush.msra.mxu0 %v45
    %99 = vmatpush.msra.mxu0 %v44
    %100 = vmatpush.msra.mxu0 %v43
    %101 = vmatpush.msra.mxu0 %v42
    %102 = vmatpush.msra.mxu0 %v41
    %103 = vmatpush.msra.mxu0 %v40
    %104 = vmatpush.msra.mxu0 %v39
    %105 = vmatpush.msra.mxu0 %v38
    %106 = vmatpush.msra.mxu0 %v37
    %107 = vmatpush.msra.mxu0 %v36
    %108 = vmatpush.msra.mxu0 %v35
    %109 = vmatpush.msra.mxu0 %v34
    %110 = vmatpush.msra.mxu0 %v33
    %111 = vmatpush.msra.mxu0 %v32
    %112 = vmatmul.f32.gmra.mxu0 %v24
    %v113 = vpop.f32.mrf.mxu0
    %v114 = vadd.f32 0.0, %v113
    %115 = vmatmul.f32.gmra.mxu0 %v28
    %v116 = vpop.f32.mrf.mxu0
    %v117 = vadd.f32 0.0, %v116
    %118 = vdwg.mxu0
    %119 = vmatpush.msra.mxu0 %v63
    %120 = vmatpush.msra.mxu0 %v62
    %121 = vmatpush.msra.mxu0 %v61
    %122 = vmatpush.msra.mxu0 %v60
    %123 = vmatpush.msra.mxu0 %v59
    %124 = vmatpush.msra.mxu0 %v58
    %125 = vmatpush.msra.mxu0 %v57
    %126 = vmatpush.msra.mxu0 %v56
    %127 = vmatpush.msra.mxu0 %v55
    %128 = vmatpush.msra.mxu0 %v54
    %129 = vmatpush.msra.mxu0 %v53
    %130 = vmatpush.msra.mxu0 %v52
    %131 = vmatpush.msra.mxu0 %v51
    %132 = vmatpush.msra.mxu0 %v50
    %133 = vmatpush.msra.mxu0 %v49
    %134 = vmatpush.msra.mxu0 %v48
    %135 = vmatmul.f32.gmra.mxu0 %v25
    %v136 = vpop.f32.mrf.mxu0
    %v137 = vadd.f32 %v114, %v136
    %138 = vmatmul.f32.gmra.mxu0 %v29
    %v139 = vpop.f32.mrf.mxu0
    %v140 = vadd.f32 %v117, %v139
    %141 = vdwg.mxu0
    %142 = vmatpush.msra.mxu0 %v79
    %143 = vmatpush.msra.mxu0 %v78
    %144 = vmatpush.msra.mxu0 %v77
    %145 = vmatpush.msra.mxu0 %v76
    %146 = vmatpush.msra.mxu0 %v75
    %147 = vmatpush.msra.mxu0 %v74
    %148 = vmatpush.msra.mxu0 %v73
    %149 = vmatpush.msra.mxu0 %v72
    %150 = vmatpush.msra.mxu0 %v71
    %151 = vmatpush.msra.mxu0 %v70
    %152 = vmatpush.msra.mxu0 %v69
    %153 = vmatpush.msra.mxu0 %v68
    %154 = vmatpush.msra.mxu0 %v67
    %155 = vmatpush.msra.mxu0 %v66
    %156 = vmatpush.msra.mxu0 %v65
    %157 = vmatpush.msra.mxu0 %v64
    %158 = vmatmul.f32.gmra.mxu0 %v26
    %v159 = vpop.f32.mrf.mxu0
    %v160 = vadd.f32 %v137, %v159
    %161 = vmatmul.f32.gmra.mxu0 %v30
    %v162 = vpop.f32.mrf.mxu0
    %v163 = vadd.f32 %v140, %v162
    %164 = vdwg.mxu0
    %165 = vmatpush.msra.mxu0 %v95
    %166 = vmatpush.msra.mxu0 %v94
    %167 = vmatpush.msra.mxu0 %v93
    %168 = vmatpush.msra.mxu0 %v92
    %169 = vmatpush.msra.mxu0 %v91
    %170 = vmatpush.msra.mxu0 %v90
    %171 = vmatpush.msra.mxu0 %v89
    %172 = vmatpush.msra.mxu0 %v88
    %173 = vmatpush.msra.mxu0 %v87
    %174 = vmatpush.msra.mxu0 %v86
    %175 = vmatpush.msra.mxu0 %v85
    %176 = vmatpush.msra.mxu0 %v84
    %177 = vmatpush.msra.mxu0 %v83
    %178 = vmatpush.msra.mxu0 %v82
    %179 = vmatpush.msra.mxu0 %v81
    %180 = vmatpush.msra.mxu0 %v80
    %181 = vmatmul.f32.gmra.mxu0 %v27
    %v182 = vpop.f32.mrf.mxu0
    %v183 = vadd.f32 %v160, %v182
    %184 = vmatmul.f32.gmra.mxu0 %v31
    %v185 = vpop.f32.mrf.mxu0
    %v186 = vadd.f32 %v163, %v185
    %187 = vdwg.mxu0
    %v188 = vadd.f32 %v22, %v183
    %v189 = vadd.f32 %v23, %v186
    %vm190 = vcmask 261120
    %191 = vst.msk [vmem:[#allocation2] sm:$0xff] %vm190, %v188
    %192 = vst.msk [vmem:[#allocation2 + $0x8] sm:$0xff] %vm190, %v189
    // Predicated region
    $region18: #{attention_forward.5} parent=1 // pred_check
      %p193 = pneg %p15
    $region19: #{attention_forward.5} parent=1 // pred_check_branch
      %195 = sbr.rel (%p193) target = $region21
    $region20: #{attention_forward.5} parent=1 // pred_region
      %v196 = vld [vmem:[#allocation2] sm:$0xff]
      %v197 = vld [vmem:[#allocation2 + $0x8] sm:$0xff]
      %v198 = vld [vmem:[%s2] sm:$0x1]
      %v200 = vperm.slane %v198, 0
      %v202 = vadd.f32 %v196, %v200
      %v203 = vadd.f32 %v197, %v200
      %204 = vst.msk [vmem:[#allocation3] sm:$0xff] %vm190, %v202
      %205 = vst.msk [vmem:[#allocation3 + $0x8] sm:$0xff] %vm190, %v203
    $region21: #{attention_forward.5} parent=1 // pred_fallthru
      _
    // Predicated region
    $region22: #{attention_forward.5} parent=1 // pred_check
      _
    $region23: #{attention_forward.5} parent=1 // pred_check_branch
      %207 = sbr.rel (0) target = $region25
    $region24: #{attention_forward.5} parent=1 // pred_region
      %209 = vsyncadd [#allocation4], 0
      %s210 = sshll.u32 [#allocation3], 4
      %s211 = int_to_ptr.vmem [resolvable:$true] %s210
      %s212 = sshll.u32 %s3, 4
      %s213 = int_to_ptr.hbm [resolvable:$true] %s212
      %218 = dma.vmem_to_hbm [thread:$0]  %s211, 256, %s213, [#allocation4], 128, 128, 8
    $region25: #{attention_forward.5} parent=1 // pred_fallthru
      _
    // Predicated region
    $region26: #{attention_forward.5} parent=1 // pred_check
      _
    $region27: #{attention_forward.5} parent=1 // pred_check_branch
      %220 = sbr.rel (0) target = $region29
    $region28: #{attention_forward.5} parent=1 // pred_region
      %222 = dma.done [#allocation4], 256
    $region29: #{attention_forward.5} parent=1 // pred_fallthru
      _
    %223 = vsyncpa [#allocation4], 1

// kernel: attention_forward.4
$region0: #{attention_forward.4}
  #allocation0 [shape = 'u32[]', space=smem, size = 0x4, offset = 0x4, fixed_abs, tag = 'smem constant byte address 0x4 - core index']
  #allocation1 [shape = 'u32[72,128]{1,0:T(1,128)}', space=vmem, size = 0x9000, scoped, tag = 'internal scratch']
  #allocation2 [shape = 'f32[8,8,64]{2,1,0:T(8,128)}', space=vmem, size = 0x8000, scoped, tag = 'scratch operand']
  #allocation3 [shape = 'f32[8,8,1]{2,1,0:T(8,128)}', space=vmem, size = 0x8000, scoped, tag = 'scratch operand']
  #allocation4 [shape = 'f32[8,8,1]{2,1,0:T(8,128)}', space=vmem, size = 0x8000, scoped, tag = 'scratch operand']
  %s0 = inlined_call_operand.vmem [shape: f32[2,8,1536], index: 0, kind: input, shape index: {}, may-alias: {0,1,2}]
  %s1 = inlined_call_operand.vmem [shape: f32[2,8,1536], index: 1, kind: input, shape index: {}, may-alias: {0,1,2}]
  %s2 = inlined_call_operand.vmem [shape: f32[2,8,1536], index: 2, kind: input, shape index: {}, may-alias: {0,1,2}]
  %s3 = inlined_call_operand.vmem [shape: f32[2,8,512], index: 3, kind: output, shape index: {}]
  %s4 = sld [smem:[#allocation0]]
  $region53: #{attention_forward.4} parent=0
    _
  %s6 = ssub.s32 1, %s4
  %s7 = scalar_select 0, %s6, %s4
  loop: start=0, step=1, limit=4
  $region2: #{attention_forward.4} parent=0 // loop_pre_header
    _
  $region3: #{attention_forward.4} parent=0 // loop_header
    %s9 = sphi 0, %s13
    %p10 = scmp.ge.s32.totalorder %s9, 4
    %s16 = sphi 0, %s35
    %s17 = sphi 0, %s31
    %s18 = sphi 0, %s27
    %s19 = sphi 0, %s16
    %s20 = sphi 0, %s17
    %s21 = sphi 0, %s18
    %s22 = sphi 0, %s19
    %s23 = sphi 0, %s20
    %s24 = sphi 0, %s21
    %s40 = sphi 0, %s42
    %s43 = sphi 0, %s40
    %s44 = sphi 0, %s43
    %s60 = sphi 0, %s44
    %s68 = sphi 0, %s70
    %s71 = sphi 0, %s68
    %s72 = sphi 0, %s71
    %s88 = sphi 0, %s72
    %s96 = sphi 0, %s98
    %s99 = sphi 0, %s96
    %s100 = sphi 0, %s99
    %s116 = sphi 0, %s100
    %s124 = sphi 0, %s126
    %s127 = sphi 0, %s124
    %s128 = sphi 0, %s127
    %s144 = sphi 0, %s128
  $region4: #{attention_forward.4} parent=0 // loop_header_branch
    %12 = sbr.rel (%p10) target = $region8
  $region5: #{attention_forward.4} parent=0 // loop_body
    %s14 = ssub.s32 %s9, 1
    %s15 = ssub.s32 %s9, 2
    %s25 = sadd.s32 1, %s18
    %p26 = scmp.ge.s32.totalorder %s25, 1
    %s27 = scalar_select %p26, 0, %s25
    %s28 = sadd.s32 1, %s17
    %s29 = scalar_select %p26, %s28, %s17
    %p30 = scmp.ge.s32.totalorder %s29, 1
    %s31 = scalar_select %p30, 0, %s29
    %s32 = sadd.s32 1, %s16
    %s33 = scalar_select %p30, %s32, %s16
    %p34 = scmp.ge.s32.totalorder %s33, 2
    %s35 = scalar_select %p34, 0, %s33
    %s36 = ssub.s32 %s16, %s35
    %s37 = ssub.s32 %s17, %s31
    %s38 = sor.u32 %s36, %s37
    %p39 = scmp.eq.s32.totalorder %s38, 0
    %s41 = sadd.s32 %s40, 1
    %s42 = scalar_select %p39, %s40, %s41
    %p45 = pneg %p39
    %p46 = scmp.eq.s32.totalorder %s9, 1
    %p47 = por %p45, %p46
    %p48 = scmp.ne.s32.totalorder %s40, %s43
    %p49 = scmp.eq.s32.totalorder %s9, 0
    %p50 = por %p48, %p49
    %p51 = scmp.ne.s32.totalorder %s40, %s43
    %p52 = scmp.eq.s32.totalorder %s14, 1
    %p53 = por %p51, %p52
    %p54 = scmp.ne.s32.totalorder %s43, %s44
    %p55 = scmp.eq.s32.totalorder %s14, 0
    %p56 = por %p54, %p55
    %p57 = scmp.ne.s32.totalorder %s43, %s44
    %p58 = scmp.eq.s32.totalorder %s15, 1
    %p59 = por %p57, %p58
    %p61 = scmp.ne.s32.totalorder %s44, %s60
    %p62 = scmp.eq.s32.totalorder %s15, 0
    %p63 = por %p61, %p62
    %s64 = ssub.s32 %s16, %s35
    %s65 = ssub.s32 %s18, %s27
    %s66 = sor.u32 %s64, %s65
    %p67 = scmp.eq.s32.totalorder %s66, 0
    %s69 = sadd.s32 %s68, 1
    %s70 = scalar_select %p67, %s68, %s69
    %p73 = pneg %p67
    %p74 = scmp.eq.s32.totalorder %s9, 1
    %p75 = por %p73, %p74
    %p76 = scmp.ne.s32.totalorder %s68, %s71
    %p77 = scmp.eq.s32.totalorder %s9, 0
    %p78 = por %p76, %p77
    %p79 = scmp.ne.s32.totalorder %s68, %s71
    %p80 = scmp.eq.s32.totalorder %s14, 1
    %p81 = por %p79, %p80
    %p82 = scmp.ne.s32.totalorder %s71, %s72
    %p83 = scmp.eq.s32.totalorder %s14, 0
    %p84 = por %p82, %p83
    %p85 = scmp.ne.s32.totalorder %s71, %s72
    %p86 = scmp.eq.s32.totalorder %s15, 1
    %p87 = por %p85, %p86
    %p89 = scmp.ne.s32.totalorder %s72, %s88
    %p90 = scmp.eq.s32.totalorder %s15, 0
    %p91 = por %p89, %p90
    %s92 = ssub.s32 %s16, %s35
    %s93 = ssub.s32 %s18, %s27
    %s94 = sor.u32 %s92, %s93
    %p95 = scmp.eq.s32.totalorder %s94, 0
    %s97 = sadd.s32 %s96, 1
    %s98 = scalar_select %p95, %s96, %s97
    %p101 = pneg %p95
    %p102 = scmp.eq.s32.totalorder %s9, 1
    %p103 = por %p101, %p102
    %p104 = scmp.ne.s32.totalorder %s96, %s99
    %p105 = scmp.eq.s32.totalorder %s9, 0
    %p106 = por %p104, %p105
    %p107 = scmp.ne.s32.totalorder %s96, %s99
    %p108 = scmp.eq.s32.totalorder %s14, 1
    %p109 = por %p107, %p108
    %p110 = scmp.ne.s32.totalorder %s99, %s100
    %p111 = scmp.eq.s32.totalorder %s14, 0
    %p112 = por %p110, %p111
    %p113 = scmp.ne.s32.totalorder %s99, %s100
    %p114 = scmp.eq.s32.totalorder %s15, 1
    %p115 = por %p113, %p114
    %p117 = scmp.ne.s32.totalorder %s100, %s116
    %p118 = scmp.eq.s32.totalorder %s15, 0
    %p119 = por %p117, %p118
    %s120 = ssub.s32 %s16, %s35
    %s121 = ssub.s32 %s17, %s31
    %s122 = sor.u32 %s120, %s121
    %p123 = scmp.eq.s32.totalorder %s122, 0
    %s125 = sadd.s32 %s124, 1
    %s126 = scalar_select %p123, %s124, %s125
    %p129 = pneg %p123
    %p130 = scmp.eq.s32.totalorder %s9, 1
    %p131 = por %p129, %p130
    %p132 = scmp.ne.s32.totalorder %s124, %s127
    %p133 = scmp.eq.s32.totalorder %s9, 0
    %p134 = por %p132, %p133
    %p135 = scmp.ne.s32.totalorder %s124, %s127
    %p136 = scmp.eq.s32.totalorder %s14, 1
    %p137 = por %p135, %p136
    %p138 = scmp.ne.s32.totalorder %s127, %s128
    %p139 = scmp.eq.s32.totalorder %s14, 0
    %p140 = por %p138, %p139
    %p141 = scmp.ne.s32.totalorder %s127, %s128
    %p142 = scmp.eq.s32.totalorder %s15, 1
    %p143 = por %p141, %p142
    %p145 = scmp.ne.s32.totalorder %s128, %s144
    %p146 = scmp.eq.s32.totalorder %s15, 0
    %p147 = por %p145, %p146
    %p148 = scmp.le.s32.totalorder 1, %s9
    %p149 = scmp.lt.s32.totalorder %s9, 3
    %p150 = pnand %p148, %p149
    %p151 = pneg %p150
    // Predicated region
    $region9: #{attention_forward.4} parent=5 // pred_check
      _
    $region10: #{attention_forward.4} parent=5 // pred_check_branch
      %153 = sbr.rel (%p150) target = $region12
    $region11: #{attention_forward.4} parent=5 // pred_region
      %s154 = ssub.s32 %s9, 1
    $region12: #{attention_forward.4} parent=5 // pred_fallthru
      _
    %p155 = scmp.lt.s32.totalorder %s9, 2
    // Predicated region
    $region13: #{attention_forward.4} parent=5 // pred_check
      %p156 = pneg %p155
    $region14: #{attention_forward.4} parent=5 // pred_check_branch
      %158 = sbr.rel (%p156) target = $region16
    $region15: #{attention_forward.4} parent=5 // pred_region
      // Predicated region
      $region17: #{attention_forward.4} parent=15 // pred_check
        %p159 = pneg %p50
      $region18: #{attention_forward.4} parent=15 // pred_check_branch
        %161 = sbr.rel (%p159) target = $region20
      $region19: #{attention_forward.4} parent=15 // pred_region
        %p162 = scmp.lt.s32.totalorder %s16, 1
        %s163 = scalar_select %p162, %s16, 1
        %p164 = scmp.lt.s32.totalorder %s17, 0
        %s165 = scalar_select %p164, %s17, 0
        %s166 = smul.addr %s165, 12
        %s167 = smul.addr %s163, 12
        %s168 = sadd.s32 %s166, %s167
        %s169 = smul.addr %s168, 8
        %s170 = scalar_lea.vmem %s0, %s169
      $region20: #{attention_forward.4} parent=15 // pred_fallthru
        _
      // Predicated region
      $region21: #{attention_forward.4} parent=15 // pred_check
        %p171 = pneg %p78
      $region22: #{attention_forward.4} parent=15 // pred_check_branch
        %173 = sbr.rel (%p171) target = $region24
      $region23: #{attention_forward.4} parent=15 // pred_region
        %p174 = scmp.lt.s32.totalorder %s16, 1
        %s175 = scalar_select %p174, %s16, 1
        %p176 = scmp.lt.s32.totalorder %s18, 0
        %s177 = scalar_select %p176, %s18, 0
        %s178 = smul.addr %s177, 12
        %s179 = sadd.s32 4, %s178
        %s180 = smul.addr %s175, 12
        %s181 = sadd.s32 %s179, %s180
        %s182 = smul.addr %s181, 8
        %s183 = scalar_lea.vmem %s1, %s182
      $region24: #{attention_forward.4} parent=15 // pred_fallthru
        _
      // Predicated region
      $region25: #{attention_forward.4} parent=15 // pred_check
        %p184 = pneg %p106
      $region26: #{attention_forward.4} parent=15 // pred_check_branch
        %186 = sbr.rel (%p184) target = $region28
      $region27: #{attention_forward.4} parent=15 // pred_region
        %p187 = scmp.lt.s32.totalorder %s16, 1
        %s188 = scalar_select %p187, %s16, 1
        %p189 = scmp.lt.s32.totalorder %s18, 0
        %s190 = scalar_select %p189, %s18, 0
        %s191 = smul.addr %s190, 12
        %s192 = sadd.s32 8, %s191
        %s193 = smul.addr %s188, 12
        %s194 = sadd.s32 %s192, %s193
        %s195 = smul.addr %s194, 8
        %s196 = scalar_lea.vmem %s2, %s195
      $region28: #{attention_forward.4} parent=15 // pred_fallthru
        _
    $region16: #{attention_forward.4} parent=5 // pred_fallthru
      _
    %p197 = scmp.le.s32.totalorder 1, %s9
    %p198 = scmp.lt.s32.totalorder %s9, 3
    %p199 = pnand %p197, %p198
    %p200 = pneg %p199
    // Predicated region
    $region29: #{attention_forward.4} parent=5 // pred_check
      _
    $region30: #{attention_forward.4} parent=5 // pred_check_branch
      %202 = sbr.rel (%p199) target = $region32
    $region31: #{attention_forward.4} parent=5 // pred_region
      %s203 = ssub.s32 %s9, 1
      %p204 = scmp.lt.s32.totalorder %s19, 1
      %s205 = scalar_select %p204, %s19, 1
      %p206 = scmp.lt.s32.totalorder %s20, 0
      %s207 = scalar_select %p206, %s20, 0
      %s208 = smul.addr %s207, 12
      %s209 = smul.addr %s205, 12
      %s210 = sadd.s32 %s208, %s209
      %s211 = smul.addr %s210, 8
      %s212 = scalar_lea.vmem %s0, %s211
      %p213 = pneg %p56
      %p214 = pneg %p53
      %p215 = scmp.lt.s32.totalorder %s19, 1
      %s216 = scalar_select %p215, %s19, 1
      %p217 = scmp.lt.s32.totalorder %s21, 0
      %s218 = scalar_select %p217, %s21, 0
      %s219 = smul.addr %s218, 12
      %s220 = sadd.s32 4, %s219
      %s221 = smul.addr %s216, 12
      %s222 = sadd.s32 %s220, %s221
      %s223 = smul.addr %s222, 8
      %s224 = scalar_lea.vmem %s1, %s223
      %p225 = pneg %p84
      %p226 = pneg %p81
      %p227 = scmp.lt.s32.totalorder %s19, 1
      %s228 = scalar_select %p227, %s19, 1
      %p229 = scmp.lt.s32.totalorder %s21, 0
      %s230 = scalar_select %p229, %s21, 0
      %s231 = smul.addr %s230, 12
      %s232 = sadd.s32 8, %s231
      %s233 = smul.addr %s228, 12
      %s234 = sadd.s32 %s232, %s233
      %s235 = smul.addr %s234, 8
      %s236 = scalar_lea.vmem %s2, %s235
      %p237 = pneg %p112
      %p238 = pneg %p109
      %p239 = pneg %p140
      %p240 = pneg %p137
      %p241 = scmp.lt.s32.totalorder %s19, 1
      %s242 = scalar_select %p241, %s19, 1
      %p243 = scmp.lt.s32.totalorder %s20, 0
      %s244 = scalar_select %p243, %s20, 0
      %s245 = smul.addr %s244, 4
      %s246 = smul.addr %s242, 4
      %s247 = sadd.s32 %s245, %s246
      %s248 = smul.addr %s247, 8
      %s249 = scalar_lea.vmem %s3, %s248
      %p250 = scmp.lt.s32.totalorder %s19, 1
      %s251 = scalar_select %p250, %s19, 1
      %p252 = scmp.lt.s32.totalorder %s20, 0
      %s253 = scalar_select %p252, %s20, 0
      %s254 = smul.addr %s253, 12
      %s255 = smul.addr %s251, 12
      %s256 = sadd.s32 %s254, %s255
      %s257 = smul.addr %s256, 8
      %s258 = scalar_lea.vmem %s0, %s257
      %p259 = scmp.lt.s32.totalorder %s19, 1
      %s260 = scalar_select %p259, %s19, 1
      %p261 = scmp.lt.s32.totalorder %s21, 0
      %s262 = scalar_select %p261, %s21, 0
      %s263 = smul.addr %s262, 12
      %s264 = sadd.s32 4, %s263
      %s265 = smul.addr %s260, 12
      %s266 = sadd.s32 %s264, %s265
      %s267 = smul.addr %s266, 8
      %s268 = scalar_lea.vmem %s1, %s267
      %p269 = scmp.lt.s32.totalorder %s19, 1
      %s270 = scalar_select %p269, %s19, 1
      %p271 = scmp.lt.s32.totalorder %s21, 0
      %s272 = scalar_select %p271, %s21, 0
      %s273 = smul.addr %s272, 12
      %s274 = sadd.s32 8, %s273
      %s275 = smul.addr %s270, 12
      %s276 = sadd.s32 %s274, %s275
      %s277 = smul.addr %s276, 8
      %s278 = scalar_lea.vmem %s2, %s277
      %p279 = scmp.lt.s32.totalorder %s19, 1
      %s280 = scalar_select %p279, %s19, 1
      %p281 = scmp.lt.s32.totalorder %s20, 0
      %s282 = scalar_select %p281, %s20, 0
      %s283 = smul.addr %s282, 4
      %s284 = smul.addr %s280, 4
      %s285 = sadd.s32 %s283, %s284
      %s286 = smul.addr %s285, 8
      %s287 = scalar_lea.vmem %s3, %s286
      %p288 = scmp.eq.s32.totalorder %s21, 0
      // Predicated region
      $region33: #{attention_forward.4} parent=31 // pred_check
        %p289 = pneg %p288
      $region34: #{attention_forward.4} parent=31 // pred_check_branch
        %291 = sbr.rel (%p289) target = $region36
      $region35: #{attention_forward.4} parent=31 // pred_region
        %vm292 = vcmask 523264
        %293 = vst.msk [vmem:[#allocation2] sm:$0xff] %vm292, 0.0
        %294 = vst.msk [vmem:[#allocation2 + $0x8] sm:$0xff] %vm292, 0.0
        %295 = vst.msk [vmem:[#allocation2 + $0x10] sm:$0xff] %vm292, 0.0
        %296 = vst.msk [vmem:[#allocation2 + $0x18] sm:$0xff] %vm292, 0.0
        %297 = vst.msk [vmem:[#allocation2 + $0x20] sm:$0xff] %vm292, 0.0
        %298 = vst.msk [vmem:[#allocation2 + $0x28] sm:$0xff] %vm292, 0.0
        %299 = vst.msk [vmem:[#allocation2 + $0x30] sm:$0xff] %vm292, 0.0
        %300 = vst.msk [vmem:[#allocation2 + $0x38] sm:$0xff] %vm292, 0.0
        %vm301 = vcmask 7168
        %302 = vst.msk [vmem:[#allocation3] sm:$0xff] %vm301, -inf
        %303 = vst.msk [vmem:[#allocation3 + $0x8] sm:$0xff] %vm301, -inf
        %304 = vst.msk [vmem:[#allocation3 + $0x10] sm:$0xff] %vm301, -inf
        %305 = vst.msk [vmem:[#allocation3 + $0x18] sm:$0xff] %vm301, -inf
        %306 = vst.msk [vmem:[#allocation3 + $0x20] sm:$0xff] %vm301, -inf
        %307 = vst.msk [vmem:[#allocation3 + $0x28] sm:$0xff] %vm301, -inf
        %308 = vst.msk [vmem:[#allocation3 + $0x30] sm:$0xff] %vm301, -inf
        %309 = vst.msk [vmem:[#allocation3 + $0x38] sm:$0xff] %vm301, -inf
        %310 = vst.msk [vmem:[#allocation4] sm:$0xff] %vm301, 0.0
        %311 = vst.msk [vmem:[#allocation4 + $0x8] sm:$0xff] %vm301, 0.0
        %312 = vst.msk [vmem:[#allocation4 + $0x10] sm:$0xff] %vm301, 0.0
        %313 = vst.msk [vmem:[#allocation4 + $0x18] sm:$0xff] %vm301, 0.0
        %314 = vst.msk [vmem:[#allocation4 + $0x20] sm:$0xff] %vm301, 0.0
        %315 = vst.msk [vmem:[#allocation4 + $0x28] sm:$0xff] %vm301, 0.0
        %316 = vst.msk [vmem:[#allocation4 + $0x30] sm:$0xff] %vm301, 0.0
        %317 = vst.msk [vmem:[#allocation4 + $0x38] sm:$0xff] %vm301, 0.0
      $region36: #{attention_forward.4} parent=31 // pred_fallthru
        _
      %v318 = vld [vmem:[%s258] sm:$0xff]
      %v319 = vld [vmem:[%s268] sm:$0xff]
      %v320 = vld [vmem:[%s278] sm:$0xff]
      %vm321 = vcmask 523264
      %v323 = vsel %vm321, %v318, 0
      %v326 = vsel %vm321, %v319, 0
      %328 = vmatpush.xpose.msra.mxu0 0.0
      %329 = vmatpush.xpose.msra.mxu0 0.0
      %330 = vmatpush.xpose.msra.mxu0 0.0
      %331 = vmatpush.xpose.msra.mxu0 0.0
      %332 = vmatpush.xpose.msra.mxu0 0.0
      %333 = vmatpush.xpose.msra.mxu0 0.0
      %334 = vmatpush.xpose.msra.mxu0 0.0
      %335 = vmatpush.xpose.msra.mxu0 0.0
      %336 = vmatpush.xpose.msra.mxu0 0.0
      %337 = vmatpush.xpose.msra.mxu0 0.0
      %338 = vmatpush.xpose.msra.mxu0 0.0
      %339 = vmatpush.xpose.msra.mxu0 0.0
      %340 = vmatpush.xpose.msra.mxu0 0.0
      %341 = vmatpush.xpose.msra.mxu0 0.0
      %342 = vmatpush.xpose.msra.mxu0 0.0
      %343 = vmatpush.xpose.msra.mxu0 %v326
      %344 = vmatmul.f32.gmra.mxu0 %v323
      %v345 = vpop.f32.mrf.mxu0
      %v346 = vadd.f32 0.0, %v345
      %347 = vdwg.mxu0
      %v348 = vld [vmem:[#allocation3] sm:$0xff]
      %vm349 = vcmask 64512
      %v350 = vsel %vm349, %v346, -inf
      %351 = vmax.xlane.f32.xlu0 %v350
      %v352 = vpop.xlane.xlu0 %351
      %v353 = vmax.f32 %v348, %v352
      %v354 = vsub.f32 %v348, %v353
      %v355 = vmul.f32 %v354, 1.442695
      %v356 = vpow.pop %v355
      %358 = vset.pattern.permute.xlu0 0
      %359 = vperm.xlu0 %358, %v353
      %v360 = vpop.permute.xlu0 %359
      %v362 = vsub.f32 %v346, %v360
      %v363 = vmul.f32 %v362, 1.442695
      %v364 = vpow.pop %v363
      %v365 = vld [vmem:[#allocation4] sm:$0xff]
      %v366 = vmul.f32 %v356, %v365
      %v367 = vsel %vm349, %v364, 0.0
      %368 = vadd.xlane.f32.xlu0 %v367
      %v369 = vpop.xlane.xlu0 %368
      %v370 = vadd.f32 %v366, %v369
      %vm371 = vcmask 7168
      %372 = vst.msk [vmem:[#allocation4] sm:$0xff] %vm371, %v370
      %v373 = vld [vmem:[#allocation2] sm:$0xff]
      %375 = vset.pattern.permute.xlu0 0
      %376 = vperm.xlu0 %375, %v356
      %v377 = vpop.permute.xlu0 %376
      %v379 = vmul.f32 %v377, %v373
      %v381 = vsel %vm349, %v364, 0
      %383 = vmatpush.msra.mxu0 0.0
      %384 = vmatpush.msra.mxu0 0.0
      %385 = vmatpush.msra.mxu0 0.0
      %386 = vmatpush.msra.mxu0 0.0
      %387 = vmatpush.msra.mxu0 0.0
      %388 = vmatpush.msra.mxu0 0.0
      %389 = vmatpush.msra.mxu0 0.0
      %390 = vmatpush.msra.mxu0 0.0
      %391 = vmatpush.msra.mxu0 0.0
      %392 = vmatpush.msra.mxu0 0.0
      %393 = vmatpush.msra.mxu0 0.0
      %394 = vmatpush.msra.mxu0 0.0
      %395 = vmatpush.msra.mxu0 0.0
      %396 = vmatpush.msra.mxu0 0.0
      %397 = vmatpush.msra.mxu0 0.0
      %398 = vmatpush.msra.mxu0 %v320
      %399 = vmatmul.f32.gmra.mxu0 %v381
      %v400 = vpop.f32.mrf.mxu0
      %v401 = vadd.f32 0.0, %v400
      %402 = vdwg.mxu0
      %v403 = vadd.f32 %v379, %v401
      %404 = vst.msk [vmem:[#allocation2] sm:$0xff] %vm321, %v403
      %405 = vst.msk [vmem:[#allocation3] sm:$0xff] %vm371, %v353
      %v406 = vld [vmem:[%s258] sm:$0xff]
      %v407 = vld [vmem:[%s268] sm:$0xff]
      %v408 = vld [vmem:[%s278] sm:$0xff]
      %410 = vrot.lane.b32.xlu0 %v406, 64
      %v411 = vpop.permute.xlu0 %410
      %413 = vrot.lane.b32.xlu0 %v407, 64
      %v414 = vpop.permute.xlu0 %413
      %v415 = vsel %vm321, %v411, 0
      %v417 = vsel %vm321, %v414, 0
      %419 = vmatpush.xpose.msra.mxu0 0.0
      %420 = vmatpush.xpose.msra.mxu0 0.0
      %421 = vmatpush.xpose.msra.mxu0 0.0
      %422 = vmatpush.xpose.msra.mxu0 0.0
      %423 = vmatpush.xpose.msra.mxu0 0.0
      %424 = vmatpush.xpose.msra.mxu0 0.0
      %425 = vmatpush.xpose.msra.mxu0 0.0
      %426 = vmatpush.xpose.msra.mxu0 0.0
      %427 = vmatpush.xpose.msra.mxu0 0.0
      %428 = vmatpush.xpose.msra.mxu0 0.0
      %429 = vmatpush.xpose.msra.mxu0 0.0
      %430 = vmatpush.xpose.msra.mxu0 0.0
      %431 = vmatpush.xpose.msra.mxu0 0.0
      %432 = vmatpush.xpose.msra.mxu0 0.0
      %433 = vmatpush.xpose.msra.mxu0 0.0
      %434 = vmatpush.xpose.msra.mxu0 %v417
      %435 = vmatmul.f32.gmra.mxu0 %v415
      %v436 = vpop.f32.mrf.mxu0
      %v437 = vadd.f32 0.0, %v436
      %438 = vdwg.mxu0
      %s439 = scalar_lea.vmem [#allocation3], 8
      %v440 = vld [vmem:[%s439] sm:$0xff]
      %v441 = vsel %vm349, %v437, -inf
      %442 = vmax.xlane.f32.xlu0 %v441
      %v443 = vpop.xlane.xlu0 %442
      %v444 = vmax.f32 %v440, %v443
      %v445 = vsub.f32 %v440, %v444
      %v446 = vmul.f32 %v445, 1.442695
      %v447 = vpow.pop %v446
      %449 = vset.pattern.permute.xlu0 0
      %450 = vperm.xlu0 %449, %v444
      %v451 = vpop.permute.xlu0 %450
      %v453 = vsub.f32 %v437, %v451
      %v454 = vmul.f32 %v453, 1.442695
      %v455 = vpow.pop %v454
      %s456 = scalar_lea.vmem [#allocation4], 8
      %v457 = vld [vmem:[%s456] sm:$0xff]
      %v458 = vmul.f32 %v447, %v457
      %v459 = vsel %vm349, %v455, 0.0
      %460 = vadd.xlane.f32.xlu0 %v459
      %v461 = vpop.xlane.xlu0 %460
      %v462 = vadd.f32 %v458, %v461
      %463 = vst.msk [vmem:[%s456] sm:$0xff] %vm371, %v462
      %s464 = scalar_lea.vmem [#allocation2], 8
      %v465 = vld [vmem:[%s464] sm:$0xff]
      %467 = vset.pattern.permute.xlu0 0
      %468 = vperm.xlu0 %467, %v447
      %v469 = vpop.permute.xlu0 %468
      %v471 = vmul.f32 %v469, %v465
      %473 = vrot.lane.b32.xlu0 %v408, 64
      %v474 = vpop.permute.xlu0 %473
      %v477 = vsel %vm349, %v455, 0
      %479 = vmatpush.msra.mxu0 0.0
      %480 = vmatpush.msra.mxu0 0.0
      %481 = vmatpush.msra.mxu0 0.0
      %482 = vmatpush.msra.mxu0 0.0
      %483 = vmatpush.msra.mxu0 0.0
      %484 = vmatpush.msra.mxu0 0.0
      %485 = vmatpush.msra.mxu0 0.0
      %486 = vmatpush.msra.mxu0 0.0
      %487 = vmatpush.msra.mxu0 0.0
      %488 = vmatpush.msra.mxu0 0.0
      %489 = vmatpush.msra.mxu0 0.0
      %490 = vmatpush.msra.mxu0 0.0
      %491 = vmatpush.msra.mxu0 0.0
      %492 = vmatpush.msra.mxu0 0.0
      %493 = vmatpush.msra.mxu0 0.0
      %494 = vmatpush.msra.mxu0 %v474
      %495 = vmatmul.f32.gmra.mxu0 %v477
      %v496 = vpop.f32.mrf.mxu0
      %v497 = vadd.f32 0.0, %v496
      %498 = vdwg.mxu0
      %v499 = vadd.f32 %v471, %v497
      %500 = vst.msk [vmem:[%s464] sm:$0xff] %vm321, %v499
      %501 = vst.msk [vmem:[%s439] sm:$0xff] %vm371, %v444
      %v502 = vld [vmem:[%s258 + $0x8] sm:$0xff]
      %v503 = vld [vmem:[%s268 + $0x8] sm:$0xff]
      %v504 = vld [vmem:[%s278 + $0x8] sm:$0xff]
      %v506 = vsel %vm321, %v502, 0
      %v509 = vsel %vm321, %v503, 0
      %511 = vmatpush.xpose.msra.mxu0 0.0
      %512 = vmatpush.xpose.msra.mxu0 0.0
      %513 = vmatpush.xpose.msra.mxu0 0.0
      %514 = vmatpush.xpose.msra.mxu0 0.0
      %515 = vmatpush.xpose.msra.mxu0 0.0
      %516 = vmatpush.xpose.msra.mxu0 0.0
      %517 = vmatpush.xpose.msra.mxu0 0.0
      %518 = vmatpush.xpose.msra.mxu0 0.0
      %519 = vmatpush.xpose.msra.mxu0 0.0
      %520 = vmatpush.xpose.msra.mxu0 0.0
      %521 = vmatpush.xpose.msra.mxu0 0.0
      %522 = vmatpush.xpose.msra.mxu0 0.0
      %523 = vmatpush.xpose.msra.mxu0 0.0
      %524 = vmatpush.xpose.msra.mxu0 0.0
      %525 = vmatpush.xpose.msra.mxu0 0.0
      %526 = vmatpush.xpose.msra.mxu0 %v509
      %527 = vmatmul.f32.gmra.mxu0 %v506
      %v528 = vpop.f32.mrf.mxu0
      %v529 = vadd.f32 0.0, %v528
      %530 = vdwg.mxu0
      %s531 = scalar_lea.vmem [#allocation3], 16
      %v532 = vld [vmem:[%s531] sm:$0xff]
      %v533 = vsel %vm349, %v529, -inf
      %534 = vmax.xlane.f32.xlu0 %v533
      %v535 = vpop.xlane.xlu0 %534
      %v536 = vmax.f32 %v532, %v535
      %v537 = vsub.f32 %v532, %v536
      %v538 = vmul.f32 %v537, 1.442695
      %v539 = vpow.pop %v538
      %541 = vset.pattern.permute.xlu0 0
      %542 = vperm.xlu0 %541, %v536
      %v543 = vpop.permute.xlu0 %542
      %v545 = vsub.f32 %v529, %v543
      %v546 = vmul.f32 %v545, 1.442695
      %v547 = vpow.pop %v546
      %s548 = scalar_lea.vmem [#allocation4], 16
      %v549 = vld [vmem:[%s548] sm:$0xff]
      %v550 = vmul.f32 %v539, %v549
      %v551 = vsel %vm349, %v547, 0.0
      %552 = vadd.xlane.f32.xlu0 %v551
      %v553 = vpop.xlane.xlu0 %552
      %v554 = vadd.f32 %v550, %v553
      %555 = vst.msk [vmem:[%s548] sm:$0xff] %vm371, %v554
      %s556 = scalar_lea.vmem [#allocation2], 16
      %v557 = vld [vmem:[%s556] sm:$0xff]
      %559 = vset.pattern.permute.xlu0 0
      %560 = vperm.xlu0 %559, %v539
      %v561 = vpop.permute.xlu0 %560
      %v563 = vmul.f32 %v561, %v557
      %v565 = vsel %vm349, %v547, 0
      %567 = vmatpush.msra.mxu0 0.0
      %568 = vmatpush.msra.mxu0 0.0
      %569 = vmatpush.msra.mxu0 0.0
      %570 = vmatpush.msra.mxu0 0.0
      %571 = vmatpush.msra.mxu0 0.0
      %572 = vmatpush.msra.mxu0 0.0
      %573 = vmatpush.msra.mxu0 0.0
      %574 = vmatpush.msra.mxu0 0.0
      %575 = vmatpush.msra.mxu0 0.0
      %576 = vmatpush.msra.mxu0 0.0
      %577 = vmatpush.msra.mxu0 0.0
      %578 = vmatpush.msra.mxu0 0.0
      %579 = vmatpush.msra.mxu0 0.0
      %580 = vmatpush.msra.mxu0 0.0
      %581 = vmatpush.msra.mxu0 0.0
      %582 = vmatpush.msra.mxu0 %v504
      %583 = vmatmul.f32.gmra.mxu0 %v565
      %v584 = vpop.f32.mrf.mxu0
      %v585 = vadd.f32 0.0, %v584
      %586 = vdwg.mxu0
      %v587 = vadd.f32 %v563, %v585
      %588 = vst.msk [vmem:[%s556] sm:$0xff] %vm321, %v587
      %589 = vst.msk [vmem:[%s531] sm:$0xff] %vm371, %v536
      %v590 = vld [vmem:[%s258 + $0x8] sm:$0xff]
      %v591 = vld [vmem:[%s268 + $0x8] sm:$0xff]
      %v592 = vld [vmem:[%s278 + $0x8] sm:$0xff]
      %594 = vrot.lane.b32.xlu0 %v590, 64
      %v595 = vpop.permute.xlu0 %594
      %597 = vrot.lane.b32.xlu0 %v591, 64
      %v598 = vpop.permute.xlu0 %597
      %v599 = vsel %vm321, %v595, 0
      %v601 = vsel %vm321, %v598, 0
      %603 = vmatpush.xpose.msra.mxu0 0.0
      %604 = vmatpush.xpose.msra.mxu0 0.0
      %605 = vmatpush.xpose.msra.mxu0 0.0
      %606 = vmatpush.xpose.msra.mxu0 0.0
      %607 = vmatpush.xpose.msra.mxu0 0.0
      %608 = vmatpush.xpose.msra.mxu0 0.0
      %609 = vmatpush.xpose.msra.mxu0 0.0
      %610 = vmatpush.xpose.msra.mxu0 0.0
      %611 = vmatpush.xpose.msra.mxu0 0.0
      %612 = vmatpush.xpose.msra.mxu0 0.0
      %613 = vmatpush.xpose.msra.mxu0 0.0
      %614 = vmatpush.xpose.msra.mxu0 0.0
      %615 = vmatpush.xpose.msra.mxu0 0.0
      %616 = vmatpush.xpose.msra.mxu0 0.0
      %617 = vmatpush.xpose.msra.mxu0 0.0
      %618 = vmatpush.xpose.msra.mxu0 %v601
      %619 = vmatmul.f32.gmra.mxu0 %v599
      %v620 = vpop.f32.mrf.mxu0
      %v621 = vadd.f32 0.0, %v620
      %622 = vdwg.mxu0
      %s623 = scalar_lea.vmem [#allocation3], 24
      %v624 = vld [vmem:[%s623] sm:$0xff]
      %v625 = vsel %vm349, %v621, -inf
      %626 = vmax.xlane.f32.xlu0 %v625
      %v627 = vpop.xlane.xlu0 %626
      %v628 = vmax.f32 %v624, %v627
      %v629 = vsub.f32 %v624, %v628
      %v630 = vmul.f32 %v629, 1.442695
      %v631 = vpow.pop %v630
      %633 = vset.pattern.permute.xlu0 0
      %634 = vperm.xlu0 %633, %v628
      %v635 = vpop.permute.xlu0 %634
      %v637 = vsub.f32 %v621, %v635
      %v638 = vmul.f32 %v637, 1.442695
      %v639 = vpow.pop %v638
      %s640 = scalar_lea.vmem [#allocation4], 24
      %v641 = vld [vmem:[%s640] sm:$0xff]
      %v642 = vmul.f32 %v631, %v641
      %v643 = vsel %vm349, %v639, 0.0
      %644 = vadd.xlane.f32.xlu0 %v643
      %v645 = vpop.xlane.xlu0 %644
      %v646 = vadd.f32 %v642, %v645
      %647 = vst.msk [vmem:[%s640] sm:$0xff] %vm371, %v646
      %s648 = scalar_lea.vmem [#allocation2], 24
      %v649 = vld [vmem:[%s648] sm:$0xff]
      %651 = vset.pattern.permute.xlu0 0
      %652 = vperm.xlu0 %651, %v631
      %v653 = vpop.permute.xlu0 %652
      %v655 = vmul.f32 %v653, %v649
      %657 = vrot.lane.b32.xlu0 %v592, 64
      %v658 = vpop.permute.xlu0 %657
      %v661 = vsel %vm349, %v639, 0
      %663 = vmatpush.msra.mxu0 0.0
      %664 = vmatpush.msra.mxu0 0.0
      %665 = vmatpush.msra.mxu0 0.0
      %666 = vmatpush.msra.mxu0 0.0
      %667 = vmatpush.msra.mxu0 0.0
      %668 = vmatpush.msra.mxu0 0.0
      %669 = vmatpush.msra.mxu0 0.0
      %670 = vmatpush.msra.mxu0 0.0
      %671 = vmatpush.msra.mxu0 0.0
      %672 = vmatpush.msra.mxu0 0.0
      %673 = vmatpush.msra.mxu0 0.0
      %674 = vmatpush.msra.mxu0 0.0
      %675 = vmatpush.msra.mxu0 0.0
      %676 = vmatpush.msra.mxu0 0.0
      %677 = vmatpush.msra.mxu0 0.0
      %678 = vmatpush.msra.mxu0 %v658
      %679 = vmatmul.f32.gmra.mxu0 %v661
      %v680 = vpop.f32.mrf.mxu0
      %v681 = vadd.f32 0.0, %v680
      %682 = vdwg.mxu0
      %v683 = vadd.f32 %v655, %v681
      %684 = vst.msk [vmem:[%s648] sm:$0xff] %vm321, %v683
      %685 = vst.msk [vmem:[%s623] sm:$0xff] %vm371, %v628
      %v686 = vld [vmem:[%s258 + $0x10] sm:$0xff]
      %v687 = vld [vmem:[%s268 + $0x10] sm:$0xff]
      %v688 = vld [vmem:[%s278 + $0x10] sm:$0xff]
      %v690 = vsel %vm321, %v686, 0
      %v693 = vsel %vm321, %v687, 0
      %695 = vmatpush.xpose.msra.mxu0 0.0
      %696 = vmatpush.xpose.msra.mxu0 0.0
      %697 = vmatpush.xpose.msra.mxu0 0.0
      %698 = vmatpush.xpose.msra.mxu0 0.0
      %699 = vmatpush.xpose.msra.mxu0 0.0
      %700 = vmatpush.xpose.msra.mxu0 0.0
      %701 = vmatpush.xpose.msra.mxu0 0.0
      %702 = vmatpush.xpose.msra.mxu0 0.0
      %703 = vmatpush.xpose.msra.mxu0 0.0
      %704 = vmatpush.xpose.msra.mxu0 0.0
      %705 = vmatpush.xpose.msra.mxu0 0.0
      %706 = vmatpush.xpose.msra.mxu0 0.0
      %707 = vmatpush.xpose.msra.mxu0 0.0
      %708 = vmatpush.xpose.msra.mxu0 0.0
      %709 = vmatpush.xpose.msra.mxu0 0.0
      %710 = vmatpush.xpose.msra.mxu0 %v693
      %711 = vmatmul.f32.gmra.mxu0 %v690
      %v712 = vpop.f32.mrf.mxu0
      %v713 = vadd.f32 0.0, %v712
      %714 = vdwg.mxu0
      %s715 = scalar_lea.vmem [#allocation3], 32
      %v716 = vld [vmem:[%s715] sm:$0xff]
      %v717 = vsel %vm349, %v713, -inf
      %718 = vmax.xlane.f32.xlu0 %v717
      %v719 = vpop.xlane.xlu0 %718
      %v720 = vmax.f32 %v716, %v719
      %v721 = vsub.f32 %v716, %v720
      %v722 = vmul.f32 %v721, 1.442695
      %v723 = vpow.pop %v722
      %725 = vset.pattern.permute.xlu0 0
      %726 = vperm.xlu0 %725, %v720
      %v727 = vpop.permute.xlu0 %726
      %v729 = vsub.f32 %v713, %v727
      %v730 = vmul.f32 %v729, 1.442695
      %v731 = vpow.pop %v730
      %s732 = scalar_lea.vmem [#allocation4], 32
      %v733 = vld [vmem:[%s732] sm:$0xff]
      %v734 = vmul.f32 %v723, %v733
      %v735 = vsel %vm349, %v731, 0.0
      %736 = vadd.xlane.f32.xlu0 %v735
      %v737 = vpop.xlane.xlu0 %736
      %v738 = vadd.f32 %v734, %v737
      %739 = vst.msk [vmem:[%s732] sm:$0xff] %vm371, %v738
      %s740 = scalar_lea.vmem [#allocation2], 32
      %v741 = vld [vmem:[%s740] sm:$0xff]
      %743 = vset.pattern.permute.xlu0 0
      %744 = vperm.xlu0 %743, %v723
      %v745 = vpop.permute.xlu0 %744
      %v747 = vmul.f32 %v745, %v741
      %v749 = vsel %vm349, %v731, 0
      %751 = vmatpush.msra.mxu0 0.0
      %752 = vmatpush.msra.mxu0 0.0
      %753 = vmatpush.msra.mxu0 0.0
      %754 = vmatpush.msra.mxu0 0.0
      %755 = vmatpush.msra.mxu0 0.0
      %756 = vmatpush.msra.mxu0 0.0
      %757 = vmatpush.msra.mxu0 0.0
      %758 = vmatpush.msra.mxu0 0.0
      %759 = vmatpush.msra.mxu0 0.0
      %760 = vmatpush.msra.mxu0 0.0
      %761 = vmatpush.msra.mxu0 0.0
      %762 = vmatpush.msra.mxu0 0.0
      %763 = vmatpush.msra.mxu0 0.0
      %764 = vmatpush.msra.mxu0 0.0
      %765 = vmatpush.msra.mxu0 0.0
      %766 = vmatpush.msra.mxu0 %v688
      %767 = vmatmul.f32.gmra.mxu0 %v749
      %v768 = vpop.f32.mrf.mxu0
      %v769 = vadd.f32 0.0, %v768
      %770 = vdwg.mxu0
      %v771 = vadd.f32 %v747, %v769
      %772 = vst.msk [vmem:[%s740] sm:$0xff] %vm321, %v771
      %773 = vst.msk [vmem:[%s715] sm:$0xff] %vm371, %v720
      %v774 = vld [vmem:[%s258 + $0x10] sm:$0xff]
      %v775 = vld [vmem:[%s268 + $0x10] sm:$0xff]
      %v776 = vld [vmem:[%s278 + $0x10] sm:$0xff]
      %778 = vrot.lane.b32.xlu0 %v774, 64
      %v779 = vpop.permute.xlu0 %778
      %781 = vrot.lane.b32.xlu0 %v775, 64
      %v782 = vpop.permute.xlu0 %781
      %v783 = vsel %vm321, %v779, 0
      %v785 = vsel %vm321, %v782, 0
      %787 = vmatpush.xpose.msra.mxu0 0.0
      %788 = vmatpush.xpose.msra.mxu0 0.0
      %789 = vmatpush.xpose.msra.mxu0 0.0
      %790 = vmatpush.xpose.msra.mxu0 0.0
      %791 = vmatpush.xpose.msra.mxu0 0.0
      %792 = vmatpush.xpose.msra.mxu0 0.0
      %793 = vmatpush.xpose.msra.mxu0 0.0
      %794 = vmatpush.xpose.msra.mxu0 0.0
      %795 = vmatpush.xpose.msra.mxu0 0.0
      %796 = vmatpush.xpose.msra.mxu0 0.0
      %797 = vmatpush.xpose.msra.mxu0 0.0
      %798 = vmatpush.xpose.msra.mxu0 0.0
      %799 = vmatpush.xpose.msra.mxu0 0.0
      %800 = vmatpush.xpose.msra.mxu0 0.0
      %801 = vmatpush.xpose.msra.mxu0 0.0
      %802 = vmatpush.xpose.msra.mxu0 %v785
      %803 = vmatmul.f32.gmra.mxu0 %v783
      %v804 = vpop.f32.mrf.mxu0
      %v805 = vadd.f32 0.0, %v804
      %806 = vdwg.mxu0
      %s807 = scalar_lea.vmem [#allocation3], 40
      %v808 = vld [vmem:[%s807] sm:$0xff]
      %v809 = vsel %vm349, %v805, -inf
      %810 = vmax.xlane.f32.xlu0 %v809
      %v811 = vpop.xlane.xlu0 %810
      %v812 = vmax.f32 %v808, %v811
      %v813 = vsub.f32 %v808, %v812
      %v814 = vmul.f32 %v813, 1.442695
      %v815 = vpow.pop %v814
      %817 = vset.pattern.permute.xlu0 0
      %818 = vperm.xlu0 %817, %v812
      %v819 = vpop.permute.xlu0 %818
      %v821 = vsub.f32 %v805, %v819
      %v822 = vmul.f32 %v821, 1.442695
      %v823 = vpow.pop %v822
      %s824 = scalar_lea.vmem [#allocation4], 40
      %v825 = vld [vmem:[%s824] sm:$0xff]
      %v826 = vmul.f32 %v815, %v825
      %v827 = vsel %vm349, %v823, 0.0
      %828 = vadd.xlane.f32.xlu0 %v827
      %v829 = vpop.xlane.xlu0 %828
      %v830 = vadd.f32 %v826, %v829
      %831 = vst.msk [vmem:[%s824] sm:$0xff] %vm371, %v830
      %s832 = scalar_lea.vmem [#allocation2], 40
      %v833 = vld [vmem:[%s832] sm:$0xff]
      %835 = vset.pattern.permute.xlu0 0
      %836 = vperm.xlu0 %835, %v815
      %v837 = vpop.permute.xlu0 %836
      %v839 = vmul.f32 %v837, %v833
      %841 = vrot.lane.b32.xlu0 %v776, 64
      %v842 = vpop.permute.xlu0 %841
      %v845 = vsel %vm349, %v823, 0
      %847 = vmatpush.msra.mxu0 0.0
      %848 = vmatpush.msra.mxu0 0.0
      %849 = vmatpush.msra.mxu0 0.0
      %850 = vmatpush.msra.mxu0 0.0
      %851 = vmatpush.msra.mxu0 0.0
      %852 = vmatpush.msra.mxu0 0.0
      %853 = vmatpush.msra.mxu0 0.0
      %854 = vmatpush.msra.mxu0 0.0
      %855 = vmatpush.msra.mxu0 0.0
      %856 = vmatpush.msra.mxu0 0.0
      %857 = vmatpush.msra.mxu0 0.0
      %858 = vmatpush.msra.mxu0 0.0
      %859 = vmatpush.msra.mxu0 0.0
      %860 = vmatpush.msra.mxu0 0.0
      %861 = vmatpush.msra.mxu0 0.0
      %862 = vmatpush.msra.mxu0 %v842
      %863 = vmatmul.f32.gmra.mxu0 %v845
      %v864 = vpop.f32.mrf.mxu0
      %v865 = vadd.f32 0.0, %v864
      %866 = vdwg.mxu0
      %v867 = vadd.f32 %v839, %v865
      %868 = vst.msk [vmem:[%s832] sm:$0xff] %vm321, %v867
      %869 = vst.msk [vmem:[%s807] sm:$0xff] %vm371, %v812
      %v870 = vld [vmem:[%s258 + $0x18] sm:$0xff]
      %v871 = vld [vmem:[%s268 + $0x18] sm:$0xff]
      %v872 = vld [vmem:[%s278 + $0x18] sm:$0xff]
      %v874 = vsel %vm321, %v870, 0
      %v877 = vsel %vm321, %v871, 0
      %879 = vmatpush.xpose.msra.mxu0 0.0
      %880 = vmatpush.xpose.msra.mxu0 0.0
      %881 = vmatpush.xpose.msra.mxu0 0.0
      %882 = vmatpush.xpose.msra.mxu0 0.0
      %883 = vmatpush.xpose.msra.mxu0 0.0
      %884 = vmatpush.xpose.msra.mxu0 0.0
      %885 = vmatpush.xpose.msra.mxu0 0.0
      %886 = vmatpush.xpose.msra.mxu0 0.0
      %887 = vmatpush.xpose.msra.mxu0 0.0
      %888 = vmatpush.xpose.msra.mxu0 0.0
      %889 = vmatpush.xpose.msra.mxu0 0.0
      %890 = vmatpush.xpose.msra.mxu0 0.0
      %891 = vmatpush.xpose.msra.mxu0 0.0
      %892 = vmatpush.xpose.msra.mxu0 0.0
      %893 = vmatpush.xpose.msra.mxu0 0.0
      %894 = vmatpush.xpose.msra.mxu0 %v877
      %895 = vmatmul.f32.gmra.mxu0 %v874
      %v896 = vpop.f32.mrf.mxu0
      %v897 = vadd.f32 0.0, %v896
      %898 = vdwg.mxu0
      %s899 = scalar_lea.vmem [#allocation3], 48
      %v900 = vld [vmem:[%s899] sm:$0xff]
      %v901 = vsel %vm349, %v897, -inf
      %902 = vmax.xlane.f32.xlu0 %v901
      %v903 = vpop.xlane.xlu0 %902
      %v904 = vmax.f32 %v900, %v903
      %v905 = vsub.f32 %v900, %v904
      %v906 = vmul.f32 %v905, 1.442695
      %v907 = vpow.pop %v906
      %909 = vset.pattern.permute.xlu0 0
      %910 = vperm.xlu0 %909, %v904
      %v911 = vpop.permute.xlu0 %910
      %v913 = vsub.f32 %v897, %v911
      %v914 = vmul.f32 %v913, 1.442695
      %v915 = vpow.pop %v914
      %s916 = scalar_lea.vmem [#allocation4], 48
      %v917 = vld [vmem:[%s916] sm:$0xff]
      %v918 = vmul.f32 %v907, %v917
      %v919 = vsel %vm349, %v915, 0.0
      %920 = vadd.xlane.f32.xlu0 %v919
      %v921 = vpop.xlane.xlu0 %920
      %v922 = vadd.f32 %v918, %v921
      %923 = vst.msk [vmem:[%s916] sm:$0xff] %vm371, %v922
      %s924 = scalar_lea.vmem [#allocation2], 48
      %v925 = vld [vmem:[%s924] sm:$0xff]
      %927 = vset.pattern.permute.xlu0 0
      %928 = vperm.xlu0 %927, %v907
      %v929 = vpop.permute.xlu0 %928
      %v931 = vmul.f32 %v929, %v925
      %v933 = vsel %vm349, %v915, 0
      %935 = vmatpush.msra.mxu0 0.0
      %936 = vmatpush.msra.mxu0 0.0
      %937 = vmatpush.msra.mxu0 0.0
      %938 = vmatpush.msra.mxu0 0.0
      %939 = vmatpush.msra.mxu0 0.0
      %940 = vmatpush.msra.mxu0 0.0
      %941 = vmatpush.msra.mxu0 0.0
      %942 = vmatpush.msra.mxu0 0.0
      %943 = vmatpush.msra.mxu0 0.0
      %944 = vmatpush.msra.mxu0 0.0
      %945 = vmatpush.msra.mxu0 0.0
      %946 = vmatpush.msra.mxu0 0.0
      %947 = vmatpush.msra.mxu0 0.0
      %948 = vmatpush.msra.mxu0 0.0
      %949 = vmatpush.msra.mxu0 0.0
      %950 = vmatpush.msra.mxu0 %v872
      %951 = vmatmul.f32.gmra.mxu0 %v933
      %v952 = vpop.f32.mrf.mxu0
      %v953 = vadd.f32 0.0, %v952
      %954 = vdwg.mxu0
      %v955 = vadd.f32 %v931, %v953
      %956 = vst.msk [vmem:[%s924] sm:$0xff] %vm321, %v955
      %957 = vst.msk [vmem:[%s899] sm:$0xff] %vm371, %v904
      %v958 = vld [vmem:[%s258 + $0x18] sm:$0xff]
      %v959 = vld [vmem:[%s268 + $0x18] sm:$0xff]
      %v960 = vld [vmem:[%s278 + $0x18] sm:$0xff]
      %962 = vrot.lane.b32.xlu0 %v958, 64
      %v963 = vpop.permute.xlu0 %962
      %965 = vrot.lane.b32.xlu0 %v959, 64
      %v966 = vpop.permute.xlu0 %965
      %v967 = vsel %vm321, %v963, 0
      %v969 = vsel %vm321, %v966, 0
      %971 = vmatpush.xpose.msra.mxu0 0.0
      %972 = vmatpush.xpose.msra.mxu0 0.0
      %973 = vmatpush.xpose.msra.mxu0 0.0
      %974 = vmatpush.xpose.msra.mxu0 0.0
      %975 = vmatpush.xpose.msra.mxu0 0.0
      %976 = vmatpush.xpose.msra.mxu0 0.0
      %977 = vmatpush.xpose.msra.mxu0 0.0
      %978 = vmatpush.xpose.msra.mxu0 0.0
      %979 = vmatpush.xpose.msra.mxu0 0.0
      %980 = vmatpush.xpose.msra.mxu0 0.0
      %981 = vmatpush.xpose.msra.mxu0 0.0
      %982 = vmatpush.xpose.msra.mxu0 0.0
      %983 = vmatpush.xpose.msra.mxu0 0.0
      %984 = vmatpush.xpose.msra.mxu0 0.0
      %985 = vmatpush.xpose.msra.mxu0 0.0
      %986 = vmatpush.xpose.msra.mxu0 %v969
      %987 = vmatmul.f32.gmra.mxu0 %v967
      %v988 = vpop.f32.mrf.mxu0
      %v989 = vadd.f32 0.0, %v988
      %990 = vdwg.mxu0
      %s991 = scalar_lea.vmem [#allocation3], 56
      %v992 = vld [vmem:[%s991] sm:$0xff]
      %v993 = vsel %vm349, %v989, -inf
      %994 = vmax.xlane.f32.xlu0 %v993
      %v995 = vpop.xlane.xlu0 %994
      %v996 = vmax.f32 %v992, %v995
      %v997 = vsub.f32 %v992, %v996
      %v998 = vmul.f32 %v997, 1.442695
      %v999 = vpow.pop %v998
      %1001 = vset.pattern.permute.xlu0 0
      %1002 = vperm.xlu0 %1001, %v996
      %v1003 = vpop.permute.xlu0 %1002
      %v1005 = vsub.f32 %v989, %v1003
      %v1006 = vmul.f32 %v1005, 1.442695
      %v1007 = vpow.pop %v1006
      %s1008 = scalar_lea.vmem [#allocation4], 56
      %v1009 = vld [vmem:[%s1008] sm:$0xff]
      %v1010 = vmul.f32 %v999, %v1009
      %v1011 = vsel %vm349, %v1007, 0.0
      %1012 = vadd.xlane.f32.xlu0 %v1011
      %v1013 = vpop.xlane.xlu0 %1012
      %v1014 = vadd.f32 %v1010, %v1013
      %1015 = vst.msk [vmem:[%s1008] sm:$0xff] %vm371, %v1014
      %s1016 = scalar_lea.vmem [#allocation2], 56
      %v1017 = vld [vmem:[%s1016] sm:$0xff]
      %1019 = vset.pattern.permute.xlu0 0
      %1020 = vperm.xlu0 %1019, %v999
      %v1021 = vpop.permute.xlu0 %1020
      %v1023 = vmul.f32 %v1021, %v1017
      %1025 = vrot.lane.b32.xlu0 %v960, 64
      %v1026 = vpop.permute.xlu0 %1025
      %v1029 = vsel %vm349, %v1007, 0
      %1031 = vmatpush.msra.mxu0 0.0
      %1032 = vmatpush.msra.mxu0 0.0
      %1033 = vmatpush.msra.mxu0 0.0
      %1034 = vmatpush.msra.mxu0 0.0
      %1035 = vmatpush.msra.mxu0 0.0
      %1036 = vmatpush.msra.mxu0 0.0
      %1037 = vmatpush.msra.mxu0 0.0
      %1038 = vmatpush.msra.mxu0 0.0
      %1039 = vmatpush.msra.mxu0 0.0
      %1040 = vmatpush.msra.mxu0 0.0
      %1041 = vmatpush.msra.mxu0 0.0
      %1042 = vmatpush.msra.mxu0 0.0
      %1043 = vmatpush.msra.mxu0 0.0
      %1044 = vmatpush.msra.mxu0 0.0
      %1045 = vmatpush.msra.mxu0 0.0
      %1046 = vmatpush.msra.mxu0 %v1026
      %1047 = vmatmul.f32.gmra.mxu0 %v1029
      %v1048 = vpop.f32.mrf.mxu0
      %v1049 = vadd.f32 0.0, %v1048
      %1050 = vdwg.mxu0
      %v1051 = vadd.f32 %v1023, %v1049
      %1052 = vst.msk [vmem:[%s1016] sm:$0xff] %vm321, %v1051
      %1053 = vst.msk [vmem:[%s991] sm:$0xff] %vm371, %v996
      // Predicated region
      $region37: #{attention_forward.4} parent=31 // pred_check
        %p1054 = pneg %p288
      $region38: #{attention_forward.4} parent=31 // pred_check_branch
        %1056 = sbr.rel (%p1054) target = $region40
      $region39: #{attention_forward.4} parent=31 // pred_region
        %v1057 = vld [vmem:[#allocation2] sm:$0xff]
        %v1058 = vld [vmem:[#allocation4] sm:$0xff]
        %1060 = vset.pattern.permute.xlu0 0
        %1061 = vperm.xlu0 %1060, %v1058
        %v1062 = vpop.permute.xlu0 %1061
        %v1064 = vrcp.pop %v1062
        %v1065 = vmul.f32 %v1062, %v1064
        %v1066 = vsub.f32 1.0, %v1065
        %v1067 = vmul.f32 %v1064, %v1066
        %v1068 = vadd.f32 %v1064, %v1067
        %vm1069 = vweird.f32 %v1062
        %vm1070 = vweird.f32 %v1064
        %vm1071 = vmor %vm1069, %vm1070
        %v1072 = vsel %vm1071, %v1064, %v1068
        %v1073 = vand.u32 2147483647, %v1062
        %vm1074 = vcmp.eq.f32.partialorder %v1073, 8.507059e+37
        %v1075 = vand.u32 %v1062, 2147483648
        %v1076 = vor.u32 1.1754944e-38, %v1075
        %v1077 = vsel %vm1074, %v1076, %v1072
        %v1078 = vmul.f32 %v1057, %v1077
        %1079 = vst.msk [vmem:[%s287] sm:$0xff] %vm321, %v1078
        %v1080 = vld [vmem:[%s464] sm:$0xff]
        %v1081 = vld [vmem:[%s456] sm:$0xff]
        %1083 = vset.pattern.permute.xlu0 0
        %1084 = vperm.xlu0 %1083, %v1081
        %v1085 = vpop.permute.xlu0 %1084
        %v1087 = vrcp.pop %v1085
        %v1088 = vmul.f32 %v1085, %v1087
        %v1089 = vsub.f32 1.0, %v1088
        %v1090 = vmul.f32 %v1087, %v1089
        %v1091 = vadd.f32 %v1087, %v1090
        %vm1092 = vweird.f32 %v1085
        %vm1093 = vweird.f32 %v1087
        %vm1094 = vmor %vm1092, %vm1093
        %v1095 = vsel %vm1094, %v1087, %v1091
        %v1096 = vand.u32 2147483647, %v1085
        %vm1097 = vcmp.eq.f32.partialorder %v1096, 8.507059e+37
        %v1098 = vand.u32 %v1085, 2147483648
        %v1099 = vor.u32 1.1754944e-38, %v1098
        %v1100 = vsel %vm1097, %v1099, %v1095
        %v1101 = vmul.f32 %v1080, %v1100
        %1103 = vrot.lane.b32.xlu0 %v1101, 64
        %v1104 = vpop.permute.xlu0 %1103
        %vm1106 = vcmask 1048064
        %1107 = vst.msk [vmem:[%s287] sm:$0xff] %vm1106, %v1104
        %v1108 = vld [vmem:[%s556] sm:$0xff]
        %v1109 = vld [vmem:[%s548] sm:$0xff]
        %1111 = vset.pattern.permute.xlu0 0
        %1112 = vperm.xlu0 %1111, %v1109
        %v1113 = vpop.permute.xlu0 %1112
        %v1115 = vrcp.pop %v1113
        %v1116 = vmul.f32 %v1113, %v1115
        %v1117 = vsub.f32 1.0, %v1116
        %v1118 = vmul.f32 %v1115, %v1117
        %v1119 = vadd.f32 %v1115, %v1118
        %vm1120 = vweird.f32 %v1113
        %vm1121 = vweird.f32 %v1115
        %vm1122 = vmor %vm1120, %vm1121
        %v1123 = vsel %vm1122, %v1115, %v1119
        %v1124 = vand.u32 2147483647, %v1113
        %vm1125 = vcmp.eq.f32.partialorder %v1124, 8.507059e+37
        %v1126 = vand.u32 %v1113, 2147483648
        %v1127 = vor.u32 1.1754944e-38, %v1126
        %v1128 = vsel %vm1125, %v1127, %v1123
        %v1129 = vmul.f32 %v1108, %v1128
        %1130 = vst.msk [vmem:[%s287 + $0x8] sm:$0xff] %vm321, %v1129
        %v1131 = vld [vmem:[%s648] sm:$0xff]
        %v1132 = vld [vmem:[%s640] sm:$0xff]
        %1134 = vset.pattern.permute.xlu0 0
        %1135 = vperm.xlu0 %1134, %v1132
        %v1136 = vpop.permute.xlu0 %1135
        %v1138 = vrcp.pop %v1136
        %v1139 = vmul.f32 %v1136, %v1138
        %v1140 = vsub.f32 1.0, %v1139
        %v1141 = vmul.f32 %v1138, %v1140
        %v1142 = vadd.f32 %v1138, %v1141
        %vm1143 = vweird.f32 %v1136
        %vm1144 = vweird.f32 %v1138
        %vm1145 = vmor %vm1143, %vm1144
        %v1146 = vsel %vm1145, %v1138, %v1142
        %v1147 = vand.u32 2147483647, %v1136
        %vm1148 = vcmp.eq.f32.partialorder %v1147, 8.507059e+37
        %v1149 = vand.u32 %v1136, 2147483648
        %v1150 = vor.u32 1.1754944e-38, %v1149
        %v1151 = vsel %vm1148, %v1150, %v1146
        %v1152 = vmul.f32 %v1131, %v1151
        %1154 = vrot.lane.b32.xlu0 %v1152, 64
        %v1155 = vpop.permute.xlu0 %1154
        %1157 = vst.msk [vmem:[%s287 + $0x8] sm:$0xff] %vm1106, %v1155
        %v1158 = vld [vmem:[%s740] sm:$0xff]
        %v1159 = vld [vmem:[%s732] sm:$0xff]
        %1161 = vset.pattern.permute.xlu0 0
        %1162 = vperm.xlu0 %1161, %v1159
        %v1163 = vpop.permute.xlu0 %1162
        %v1165 = vrcp.pop %v1163
        %v1166 = vmul.f32 %v1163, %v1165
        %v1167 = vsub.f32 1.0, %v1166
        %v1168 = vmul.f32 %v1165, %v1167
        %v1169 = vadd.f32 %v1165, %v1168
        %vm1170 = vweird.f32 %v1163
        %vm1171 = vweird.f32 %v1165
        %vm1172 = vmor %vm1170, %vm1171
        %v1173 = vsel %vm1172, %v1165, %v1169
        %v1174 = vand.u32 2147483647, %v1163
        %vm1175 = vcmp.eq.f32.partialorder %v1174, 8.507059e+37
        %v1176 = vand.u32 %v1163, 2147483648
        %v1177 = vor.u32 1.1754944e-38, %v1176
        %v1178 = vsel %vm1175, %v1177, %v1173
        %v1179 = vmul.f32 %v1158, %v1178
        %1180 = vst.msk [vmem:[%s287 + $0x10] sm:$0xff] %vm321, %v1179
        %v1181 = vld [vmem:[%s832] sm:$0xff]
        %v1182 = vld [vmem:[%s824] sm:$0xff]
        %1184 = vset.pattern.permute.xlu0 0
        %1185 = vperm.xlu0 %1184, %v1182
        %v1186 = vpop.permute.xlu0 %1185
        %v1188 = vrcp.pop %v1186
        %v1189 = vmul.f32 %v1186, %v1188
        %v1190 = vsub.f32 1.0, %v1189
        %v1191 = vmul.f32 %v1188, %v1190
        %v1192 = vadd.f32 %v1188, %v1191
        %vm1193 = vweird.f32 %v1186
        %vm1194 = vweird.f32 %v1188
        %vm1195 = vmor %vm1193, %vm1194
        %v1196 = vsel %vm1195, %v1188, %v1192
        %v1197 = vand.u32 2147483647, %v1186
        %vm1198 = vcmp.eq.f32.partialorder %v1197, 8.507059e+37
        %v1199 = vand.u32 %v1186, 2147483648
        %v1200 = vor.u32 1.1754944e-38, %v1199
        %v1201 = vsel %vm1198, %v1200, %v1196
        %v1202 = vmul.f32 %v1181, %v1201
        %1204 = vrot.lane.b32.xlu0 %v1202, 64
        %v1205 = vpop.permute.xlu0 %1204
        %1207 = vst.msk [vmem:[%s287 + $0x10] sm:$0xff] %vm1106, %v1205
        %v1208 = vld [vmem:[%s924] sm:$0xff]
        %v1209 = vld [vmem:[%s916] sm:$0xff]
        %1211 = vset.pattern.permute.xlu0 0
        %1212 = vperm.xlu0 %1211, %v1209
        %v1213 = vpop.permute.xlu0 %1212
        %v1215 = vrcp.pop %v1213
        %v1216 = vmul.f32 %v1213, %v1215
        %v1217 = vsub.f32 1.0, %v1216
        %v1218 = vmul.f32 %v1215, %v1217
        %v1219 = vadd.f32 %v1215, %v1218
        %vm1220 = vweird.f32 %v1213
        %vm1221 = vweird.f32 %v1215
        %vm1222 = vmor %vm1220, %vm1221
        %v1223 = vsel %vm1222, %v1215, %v1219
        %v1224 = vand.u32 2147483647, %v1213
        %vm1225 = vcmp.eq.f32.partialorder %v1224, 8.507059e+37
        %v1226 = vand.u32 %v1213, 2147483648
        %v1227 = vor.u32 1.1754944e-38, %v1226
        %v1228 = vsel %vm1225, %v1227, %v1223
        %v1229 = vmul.f32 %v1208, %v1228
        %1230 = vst.msk [vmem:[%s287 + $0x18] sm:$0xff] %vm321, %v1229
        %v1231 = vld [vmem:[%s1016] sm:$0xff]
        %v1232 = vld [vmem:[%s1008] sm:$0xff]
        %1234 = vset.pattern.permute.xlu0 0
        %1235 = vperm.xlu0 %1234, %v1232
        %v1236 = vpop.permute.xlu0 %1235
        %v1238 = vrcp.pop %v1236
        %v1239 = vmul.f32 %v1236, %v1238
        %v1240 = vsub.f32 1.0, %v1239
        %v1241 = vmul.f32 %v1238, %v1240
        %v1242 = vadd.f32 %v1238, %v1241
        %vm1243 = vweird.f32 %v1236
        %vm1244 = vweird.f32 %v1238
        %vm1245 = vmor %vm1243, %vm1244
        %v1246 = vsel %vm1245, %v1238, %v1242
        %v1247 = vand.u32 2147483647, %v1236
        %vm1248 = vcmp.eq.f32.partialorder %v1247, 8.507059e+37
        %v1249 = vand.u32 %v1236, 2147483648
        %v1250 = vor.u32 1.1754944e-38, %v1249
        %v1251 = vsel %vm1248, %v1250, %v1246
        %v1252 = vmul.f32 %v1231, %v1251
        %1254 = vrot.lane.b32.xlu0 %v1252, 64
        %v1255 = vpop.permute.xlu0 %1254
        %1257 = vst.msk [vmem:[%s287 + $0x18] sm:$0xff] %vm1106, %v1255
      $region40: #{attention_forward.4} parent=31 // pred_fallthru
        _
      %p1258 = scmp.lt.s32.totalorder %s19, 1
      %s1259 = scalar_select %p1258, %s19, 1
      %p1260 = scmp.lt.s32.totalorder %s20, 0
      %s1261 = scalar_select %p1260, %s20, 0
      %s1262 = smul.addr %s1261, 4
      %s1263 = smul.addr %s1259, 4
      %s1264 = sadd.s32 %s1262, %s1263
      %s1265 = smul.addr %s1264, 8
      %s1266 = scalar_lea.vmem %s3, %s1265
      // Predicated region
      $region41: #{attention_forward.4} parent=31 // pred_check
        %p1267 = pneg %p137
      $region42: #{attention_forward.4} parent=31 // pred_check_branch
        %1269 = sbr.rel (%p1267) target = $region44
      $region43: #{attention_forward.4} parent=31 // pred_region
        _
      $region44: #{attention_forward.4} parent=31 // pred_fallthru
        _
    $region32: #{attention_forward.4} parent=5 // pred_fallthru
      _
    %p1270 = scmp.le.s32.totalorder 2, %s9
    // Predicated region
    $region45: #{attention_forward.4} parent=5 // pred_check
      %p1271 = pneg %p1270
    $region46: #{attention_forward.4} parent=5 // pred_check_branch
      %1273 = sbr.rel (%p1271) target = $region48
    $region47: #{attention_forward.4} parent=5 // pred_region
      %s1274 = ssub.s32 %s9, 2
      // Predicated region
      $region49: #{attention_forward.4} parent=47 // pred_check
        %p1275 = pneg %p143
      $region50: #{attention_forward.4} parent=47 // pred_check_branch
        %1277 = sbr.rel (%p1275) target = $region52
      $region51: #{attention_forward.4} parent=47 // pred_region
        %p1278 = scmp.lt.s32.totalorder %s22, 1
        %s1279 = scalar_select %p1278, %s22, 1
        %p1280 = scmp.lt.s32.totalorder %s23, 0
        %s1281 = scalar_select %p1280, %s23, 0
        %s1282 = smul.addr %s1281, 4
        %s1283 = smul.addr %s1279, 4
        %s1284 = sadd.s32 %s1282, %s1283
        %s1285 = smul.addr %s1284, 8
        %s1286 = scalar_lea.vmem %s3, %s1285
      $region52: #{attention_forward.4} parent=47 // pred_fallthru
        _
    $region48: #{attention_forward.4} parent=5 // pred_fallthru
      _
  $region6: #{attention_forward.4} parent=0 // loop_footer
    %s13 = sadd.s32 1, %s9
  $region7: #{attention_forward.4} parent=0 // loop_footer_branch
    %8 = sbr.rel target = $region3
  $region8: #{attention_forward.4} parent=0 // loop_exit
    _

</llo_original>
